<compile_context>
chip_gen: v6e
topology: v6e:2x2x1
jax: 0.10.0
libtpu: 0.0.40
codegen_flags: <defaults>
</compile_context>

<pallas_src>
import math

import jax
import jax.numpy as jnp
from jax.experimental import pallas as pl
from jax.experimental.pallas import tpu as pltpu

# ---------------- config ----------------
DIM = 32                 # dim
HEAD = 2                 # head
DK = DIM // HEAD         # per-head dim
FF = 64                  # linear_unit
LAYERS = 2               # layer
KSIZE = 4                # CNNUpsampler ConvTranspose1d kernel size
STRIDE = 2               # CNNUpsampler stride (2x time upsampling)
EPS = 1e-12              # ESPnet LayerNorm eps
NEG_INF = float(jnp.finfo(jnp.float32).min)
SQRT_DIM = math.sqrt(DIM)
INV_SQRT_DK = 1.0 / math.sqrt(DK)


def _layer_norm(v, g, b):
    mu = jnp.mean(v, axis=-1, keepdims=True)
    var = jnp.mean((v - mu) ** 2, axis=-1, keepdims=True)
    return (v - mu) * jax.lax.rsqrt(var + EPS) * g + b


# ---------------- fused kernel (one batch element per grid step) ----------------
def fused_prosody_kernel(x_poly_ref, mask_ref, pe_ref,
                         w_up_ref, b_up_ref,
                         wqkv_ref, bqkv_ref, wo_ref, bo_ref, ln_ref,
                         w1_ref, b1_ref, w2_ref, b2_ref,
                         o_ref):
    """Whole ProsodyPredictor forward for one batch element.

    Internal time order is [even output steps | odd output steps] so the
    polyphase transposed conv needs no in-kernel interleave.  pe / mask are
    supplied pre-permuted; the wrapper un-permutes the output.  The sqrt(D)
    PositionalEncoding scale is pre-folded into w_up/b_up.
    """
    # ---- CNNUpsampler: polyphase ConvTranspose1d(D, D, K=4, s=2, p=1) ----
    #   y[2m]   = [x[m], x[m-1]] @ [W1; W3] + b
    #   y[2m+1] = [x[m], x[m+1]] @ [W2; W0] + b
    xp = x_poly_ref[0]                      # (2, T_in, 2D)
    b_up = b_up_ref[...]                    # (1, D)  (already scaled by sqrt(D))
    y_even = jnp.dot(xp[0], w_up_ref[0],
                     preferred_element_type=jnp.float32) + b_up
    y_odd = jnp.dot(xp[1], w_up_ref[1],
                    preferred_element_type=jnp.float32) + b_up

    # ---- PositionalEncoding (abs_pos): x * sqrt(D) + pe  (scale folded; dropout = id) ----
    x = jnp.concatenate([y_even, y_odd], axis=0) + pe_ref[...]            # (T, D)

    mvalid = mask_ref[...] > 0.0            # (1, 1, T): key-validity mask

    # ---- stacked EncoderLayers (pre-norm MHA + pre-norm FFN, ReLU) ----
    for l in range(LAYERS):                 # unrolled; static ref indices
        lnp = ln_ref[l]                     # (4, D): ln1_g, ln1_b, ln2_g, ln2_b

        # -- multi-headed self-attention --
        xn = _layer_norm(x, lnp[0:1], lnp[1:2])
        qkv = jnp.dot(xn, wqkv_ref[l],
                      preferred_element_type=jnp.float32) + bqkv_ref[l]   # (T, 3D)
        qh = jnp.stack([qkv[:, h * DK:(h + 1) * DK]
                        for h in range(HEAD)], axis=0)                    # (H, T, DK)
        kh = jnp.stack([qkv[:, DIM + h * DK:DIM + (h + 1) * DK]
                        for h in range(HEAD)], axis=0)
        vh = jnp.stack([qkv[:, 2 * DIM + h * DK:2 * DIM + (h + 1) * DK]
                        for h in range(HEAD)], axis=0)

        sc = jnp.einsum('hqd,hkd->hqk', qh, kh,
                        preferred_element_type=jnp.float32) * INV_SQRT_DK  # (H,T,T)
        sc = jnp.where(mvalid, sc, NEG_INF)
        e = jnp.exp(sc - jnp.max(sc, axis=-1, keepdims=True))
        a = e / jnp.sum(e, axis=-1, keepdims=True)
        a = jnp.where(mvalid, a, 0.0)                      # ESPnet post-softmax zeroing
        ctx = jnp.einsum('hqk,hkd->hqd', a, vh,
                         preferred_element_type=jnp.float32)               # (H,T,DK)

        # Concatenate heads along lanes and do ONE output-projection matmul.
        ctx_cat = jnp.concatenate([ctx[h] for h in range(HEAD)], axis=-1)  # (T, D)
        x = x + jnp.dot(ctx_cat, wo_ref[l],
                        preferred_element_type=jnp.float32) + bo_ref[l]

        # -- position-wise feed forward --
        xn = _layer_norm(x, lnp[2:3], lnp[3:4])
        h1 = jnp.maximum(
            jnp.dot(xn, w1_ref[l], preferred_element_type=jnp.float32) + b1_ref[l],
            0.0)
        x = x + jnp.dot(h1, w2_ref[l],
                        preferred_element_type=jnp.float32) + b2_ref[l]

    o_ref[0] = x
    # NOTE: scores are fully materialized (T is tiny here); a flash-style
    # tiled softmax would be required at large T, especially on v7x (64 MiB VMEM).


# ---------------- forward wrapper ----------------
def prosody_predictor_forward(params, x, enc_len):
    B, T_in, D = x.shape
    assert D == DIM
    T_out = T_in * STRIDE

    # ---------- wrapper-side layout plumbing (tiny, one-time) ----------
    # Polyphase inputs: [x[m], x[m-1]] (even phase) and [x[m], x[m+1]] (odd phase).
    x_prev = jnp.pad(x, ((0, 0), (1, 0), (0, 0)))[:, :T_in]
    x_next = jnp.pad(x, ((0, 0), (0, 1), (0, 0)))[:, 1:]
    x_poly = jnp.stack([jnp.concatenate([x, x_prev], axis=-1),
                        jnp.concatenate([x, x_next], axis=-1)], axis=1)  # (B,2,T_in,2D)

    # Polyphase weight slabs from ConvTranspose1d weight (C_in, C_out, K);
    # fold the PositionalEncoding sqrt(D) scale into weights + bias (constant fold).
    w = params['up_w']
    w_up = jnp.stack([jnp.concatenate([w[:, :, 1], w[:, :, 3]], axis=0),
                      jnp.concatenate([w[:, :, 2], w[:, :, 0]], axis=0)],
                     axis=0) * SQRT_DIM
    b_up = params['up_b'].reshape(1, DIM) * SQRT_DIM

    # TODO(synk): exact CNNUpsampler internals are not in the reference; modeled
    # as a single ConvTranspose1d(dim, dim, K=4, stride=2, padding=1) that
    # doubles both the sequence length and enc_len.
    enc_len_out = enc_len * STRIDE

    # make_non_pad_mask (normal time order) + permuted copy for the kernel.
    mask2d = (jnp.arange(T_out)[None, :] < enc_len_out[:, None]).astype(jnp.float32)
    mask_perm = jnp.concatenate([mask2d[:, 0::2], mask2d[:, 1::2]], axis=1)[:, None, :]

    # Sinusoidal positional encoding, permuted to the internal [even | odd] order.
    pos = jnp.arange(T_out, dtype=jnp.float32)[:, None]
    div = jnp.exp(jnp.arange(0, DIM, 2, dtype=jnp.float32)
                  * (-math.log(10000.0) / DIM))
    pe = jnp.zeros((T_out, DIM), jnp.float32)
    pe = pe.at[:, 0::2].set(jnp.sin(pos * div))
    pe = pe.at[:, 1::2].set(jnp.cos(pos * div))
    pe_perm = jnp.concatenate([pe[0::2], pe[1::2]], axis=0)

    # Stack per-layer weights over layers; fuse Q/K/V; pack LN params.
    L = params['layers']
    wqkv = jnp.stack([jnp.concatenate([p['wq'], p['wk'], p['wv']], axis=1) for p in L])
    bqkv = jnp.stack([jnp.concatenate([p['bq'], p['bk'], p['bv']])[None, :] for p in L])
    wo = jnp.stack([p['wo'] for p in L])                 # (L, D, D)
    bo = jnp.stack([p['bo'][None, :] for p in L])
    ln = jnp.stack([jnp.stack([p['ln1_g'], p['ln1_b'], p['ln2_g'], p['ln2_b']])
                    for p in L])
    w1 = jnp.stack([p['w1'] for p in L])
    b1 = jnp.stack([p['b1'][None, :] for p in L])
    w2 = jnp.stack([p['w2'] for p in L])
    b2 = jnp.stack([p['b2'][None, :] for p in L])

    # ---------- one fused pallas_call, grid parallel over batch ----------
    def per_batch(shape):
        nd = len(shape)
        return pl.BlockSpec((1,) + tuple(shape[1:]),
                            lambda b: (b,) + (0,) * (nd - 1))

    def shared(shape):
        nd = len(shape)
        return pl.BlockSpec(tuple(shape), lambda b: (0,) * nd)

    inputs = [x_poly, mask_perm, pe_perm, w_up, b_up,
              wqkv, bqkv, wo, bo, ln, w1, b1, w2, b2]
    in_specs = ([per_batch(x_poly.shape), per_batch(mask_perm.shape)]
                + [shared(a.shape) for a in inputs[2:]])

    y_perm = pl.pallas_call(
        fused_prosody_kernel,
        out_shape=jax.ShapeDtypeStruct((B, T_out, DIM), jnp.float32),
        grid=(B,),
        in_specs=in_specs,
        out_specs=per_batch((B, T_out, DIM)),
        compiler_params=pltpu.CompilerParams(
            dimension_semantics=("parallel",),        # v7x: shard batch over 2 TCs
            vmem_limit_bytes=32 * 1024 * 1024),
    )(*inputs)

    # Undo the internal [even | odd] time permutation (layout plumbing only).
    y = y_perm.reshape(B, 2, T_in, DIM).transpose(0, 2, 1, 3).reshape(B, T_out, DIM)

    enc_mask = (mask2d > 0)[:, None, :]               # (B, 1, T_out) bool
    return enc_len_out, y, enc_mask


# ---------------- plain-JAX reference (normal time order) ----------------
def _reference_forward(params, x, enc_len):
    B, T_in, D = x.shape
    T_out = T_in * STRIDE
    w, b = params['up_w'], params['up_b']
    y = jnp.zeros((B, T_out, D), jnp.float32)
    for t in range(T_in):
        for k in range(KSIZE):
            o = t * STRIDE - 1 + k
            if 0 <= o < T_out:
                y = y.at[:, o].add(x[:, t] @ w[:, :, k])
    y = y + b[None, None, :]

    enc_len_out = enc_len * STRIDE
    mask = jnp.arange(T_out)[None, :] < enc_len_out[:, None]

    pos = jnp.arange(T_out, dtype=jnp.float32)[:, None]
    div = jnp.exp(jnp.arange(0, D, 2, dtype=jnp.float32) * (-math.log(10000.0) / D))
    pe = jnp.zeros((T_out, D), jnp.float32)
    pe = pe.at[:, 0::2].set(jnp.sin(pos * div))
    pe = pe.at[:, 1::2].set(jnp.cos(pos * div))
    h = y * math.sqrt(D) + pe[None]

    def ln_(v, g, bb):
        mu = jnp.mean(v, -1, keepdims=True)
        var = jnp.mean((v - mu) ** 2, -1, keepdims=True)
        return (v - mu) * jax.lax.rsqrt(var + EPS) * g + bb

    for p in params['layers']:
        xn = ln_(h, p['ln1_g'], p['ln1_b'])
        q = xn @ p['wq'] + p['bq']
        k_ = xn @ p['wk'] + p['bk']
        v = xn @ p['wv'] + p['bv']
        att = jnp.zeros_like(h)
        for hh in range(HEAD):
            sl = slice(hh * DK, (hh + 1) * DK)
            sc = jnp.einsum('bqd,bkd->bqk', q[..., sl], k_[..., sl]) / math.sqrt(DK)
            sc = jnp.where(mask[:, None, :], sc, NEG_INF)
            a = jax.nn.softmax(sc, axis=-1)
            a = jnp.where(mask[:, None, :], a, 0.0)
            att = att + jnp.einsum('bqk,bkd->bqd', a, v[..., sl]) @ p['wo'][sl, :]
        h = h + att + p['bo']
        xn = ln_(h, p['ln2_g'], p['ln2_b'])
        h = h + jnp.maximum(xn @ p['w1'] + p['b1'], 0.0) @ p['w2'] + p['b2']
    return enc_len_out, h, mask[:, None, :]


# ---------------- deterministic parameter init ----------------
def init_params(key):
    keys = iter(jax.random.split(key, 64))

    def nrm(shape, scale=0.05):
        return (scale * jax.random.normal(next(keys), shape)).astype(jnp.float32)

    params = {
        'up_w': nrm((DIM, DIM, KSIZE)),   # ConvTranspose1d weight (C_in, C_out, K)
        'up_b': nrm((DIM,)),
        'layers': [],
    }
    for _ in range(LAYERS):
        params['layers'].append({
            'wq': nrm((DIM, DIM)), 'bq': nrm((DIM,)),
            'wk': nrm((DIM, DIM)), 'bk': nrm((DIM,)),
            'wv': nrm((DIM, DIM)), 'bv': nrm((DIM,)),
            'wo': nrm((DIM, DIM)), 'bo': nrm((DIM,)),
            'ln1_g': jnp.ones((DIM,), jnp.float32),
            'ln1_b': jnp.zeros((DIM,), jnp.float32),
            'ln2_g': jnp.ones((DIM,), jnp.float32),
            'ln2_b': jnp.zeros((DIM,), jnp.float32),
            'w1': nrm((DIM, FF)), 'b1': nrm((FF,)),
            'w2': nrm((FF, DIM)), 'b2': nrm((DIM,)),
        })
    return params


if __name__ == "__main__":
    key = jax.random.PRNGKey(0)
    pkey, xkey = jax.random.split(key)
    params = init_params(pkey)

    B, T_in = 2, 8
    x = jax.random.normal(xkey, (B, T_in, DIM), jnp.float32)
    enc_len = jnp.array([8, 6], dtype=jnp.int32)

    fwd = jax.jit(prosody_predictor_forward)
    enc_len_out, y, enc_mask = fwd(params, x, enc_len)
    jax.block_until_ready((enc_len_out, y, enc_mask))

    assert y.shape == (B, T_in * STRIDE, DIM)
    assert enc_mask.shape == (B, 1, T_in * STRIDE)

    # Validate the fused kernel against a plain-JAX reference of the same forward.
    ref_len, ref_y, ref_mask = _reference_forward(params, x, enc_len)
    assert bool(jnp.all(ref_len == enc_len_out))
    assert bool(jnp.all(ref_mask == enc_mask))
    assert bool(jnp.allclose(y, ref_y, atol=1e-4, rtol=1e-3)), \
        float(jnp.max(jnp.abs(y - ref_y)))

    print("KERNEL_OK")
</pallas_src>

<mosaic_0001>
module attributes {stable_mosaic.version = 11 : i64} {
  func.func @fused_prosody_kernel(%arg0: i32, %arg1: memref<1x2x8x64xf32, #tpu.memory_space<vmem>>, %arg2: memref<1x1x16xf32, #tpu.memory_space<vmem>>, %arg3: memref<16x32xf32, #tpu.memory_space<vmem>>, %arg4: memref<2x64x32xf32, #tpu.memory_space<vmem>>, %arg5: memref<1x32xf32, #tpu.memory_space<vmem>>, %arg6: memref<2x32x96xf32, #tpu.memory_space<vmem>>, %arg7: memref<2x1x96xf32, #tpu.memory_space<vmem>>, %arg8: memref<2x32x32xf32, #tpu.memory_space<vmem>>, %arg9: memref<2x1x32xf32, #tpu.memory_space<vmem>>, %arg10: memref<2x4x32xf32, #tpu.memory_space<vmem>>, %arg11: memref<2x32x64xf32, #tpu.memory_space<vmem>>, %arg12: memref<2x1x64xf32, #tpu.memory_space<vmem>>, %arg13: memref<2x64x32xf32, #tpu.memory_space<vmem>>, %arg14: memref<2x1x32xf32, #tpu.memory_space<vmem>>, %arg15: memref<1x16x32xf32, #tpu.memory_space<vmem>>) attributes {dimension_semantics = [#tpu.dimension_semantics<parallel>], iteration_bounds = array<i64: 2>, scalar_prefetch = 0 : i64, scratch_operands = 0 : i64, tpu.core_type = #tpu.core_type<tc>, window_params = [{transform_indices = @transform_0, window_bounds = array<i64: 1, 2, 8, 64>}, {transform_indices = @transform_1, window_bounds = array<i64: 1, 1, 16>}, {pipeline_mode = #tpu.pipeline_mode<synchronous>, transform_indices = @transform_2, window_bounds = array<i64: 16, 32>}, {pipeline_mode = #tpu.pipeline_mode<synchronous>, transform_indices = @transform_3, window_bounds = array<i64: 2, 64, 32>}, {pipeline_mode = #tpu.pipeline_mode<synchronous>, transform_indices = @transform_4, window_bounds = array<i64: 1, 32>}, {pipeline_mode = #tpu.pipeline_mode<synchronous>, transform_indices = @transform_5, window_bounds = array<i64: 2, 32, 96>}, {pipeline_mode = #tpu.pipeline_mode<synchronous>, transform_indices = @transform_6, window_bounds = array<i64: 2, 1, 96>}, {pipeline_mode = #tpu.pipeline_mode<synchronous>, transform_indices = @transform_7, window_bounds = array<i64: 2, 32, 32>}, {pipeline_mode = #tpu.pipeline_mode<synchronous>, transform_indices = @transform_8, window_bounds = array<i64: 2, 1, 32>}, {pipeline_mode = #tpu.pipeline_mode<synchronous>, transform_indices = @transform_9, window_bounds = array<i64: 2, 4, 32>}, {pipeline_mode = #tpu.pipeline_mode<synchronous>, transform_indices = @transform_10, window_bounds = array<i64: 2, 32, 64>}, {pipeline_mode = #tpu.pipeline_mode<synchronous>, transform_indices = @transform_11, window_bounds = array<i64: 2, 1, 64>}, {pipeline_mode = #tpu.pipeline_mode<synchronous>, transform_indices = @transform_12, window_bounds = array<i64: 2, 64, 32>}, {pipeline_mode = #tpu.pipeline_mode<synchronous>, transform_indices = @transform_13, window_bounds = array<i64: 2, 1, 32>}, {transform_indices = @transform_14, window_bounds = array<i64: 1, 16, 32>}]} {
    %c0 = arith.constant 0 : index
    %c0_0 = arith.constant 0 : index
    %c0_1 = arith.constant 0 : index
    %c0_2 = arith.constant 0 : index
    %0 = vector.load %arg1[%c0, %c0_0, %c0_1, %c0_2] : memref<1x2x8x64xf32, #tpu.memory_space<vmem>>, vector<1x2x8x64xf32>
    %1 = vector.shape_cast %0 : vector<1x2x8x64xf32> to vector<2x8x64xf32>
    %c0_3 = arith.constant 0 : index
    %c0_4 = arith.constant 0 : index
    %2 = vector.load %arg5[%c0_3, %c0_4] : memref<1x32xf32, #tpu.memory_space<vmem>>, vector<1x32xf32>
    %3 = vector.extract_strided_slice %1 {offsets = [0, 0, 0], sizes = [1, 8, 64], strides = [1, 1, 1]} : vector<2x8x64xf32> to vector<1x8x64xf32>
    %4 = vector.shape_cast %3 : vector<1x8x64xf32> to vector<8x64xf32>
    %c0_5 = arith.constant 0 : index
    %c0_6 = arith.constant 0 : index
    %c0_7 = arith.constant 0 : index
    %5 = vector.load %arg4[%c0_5, %c0_6, %c0_7] : memref<2x64x32xf32, #tpu.memory_space<vmem>>, vector<1x64x32xf32>
    %6 = vector.shape_cast %5 : vector<1x64x32xf32> to vector<64x32xf32>
    %cst = arith.constant dense<0.000000e+00> : vector<8x32xf32>
    %7 = tpu.matmul %4, %6, %cst {dimension_numbers = #tpu.dot_dimension_numbers<[1], [0], [0], [1], [0, 0, 1, 1], [], []>} : vector<8x64xf32>, vector<64x32xf32>, vector<8x32xf32> -> vector<8x32xf32>
    %8 = vector.broadcast %2 : vector<1x32xf32> to vector<8x32xf32>
    %9 = arith.addf %7, %8 : vector<8x32xf32>
    %10 = vector.extract_strided_slice %1 {offsets = [1, 0, 0], sizes = [1, 8, 64], strides = [1, 1, 1]} : vector<2x8x64xf32> to vector<1x8x64xf32>
    %11 = vector.shape_cast %10 : vector<1x8x64xf32> to vector<8x64xf32>
    %c1 = arith.constant 1 : index
    %c0_8 = arith.constant 0 : index
    %c0_9 = arith.constant 0 : index
    %12 = vector.load %arg4[%c1, %c0_8, %c0_9] : memref<2x64x32xf32, #tpu.memory_space<vmem>>, vector<1x64x32xf32>
    %13 = vector.shape_cast %12 : vector<1x64x32xf32> to vector<64x32xf32>
    %cst_10 = arith.constant dense<0.000000e+00> : vector<8x32xf32>
    %14 = tpu.matmul %11, %13, %cst_10 {dimension_numbers = #tpu.dot_dimension_numbers<[1], [0], [0], [1], [0, 0, 1, 1], [], []>} : vector<8x64xf32>, vector<64x32xf32>, vector<8x32xf32> -> vector<8x32xf32>
    %15 = vector.broadcast %2 : vector<1x32xf32> to vector<8x32xf32>
    %16 = arith.addf %14, %15 : vector<8x32xf32>
    %17 = tpu.concatenate %9, %16 in 0 : vector<8x32xf32>, vector<8x32xf32> -> vector<16x32xf32>
    %c0_11 = arith.constant 0 : index
    %c0_12 = arith.constant 0 : index
    %18 = vector.load %arg3[%c0_11, %c0_12] : memref<16x32xf32, #tpu.memory_space<vmem>>, vector<16x32xf32>
    %19 = arith.addf %17, %18 : vector<16x32xf32>
    %c0_13 = arith.constant 0 : index
    %c0_14 = arith.constant 0 : index
    %c0_15 = arith.constant 0 : index
    %20 = vector.load %arg2[%c0_13, %c0_14, %c0_15] : memref<1x1x16xf32, #tpu.memory_space<vmem>>, vector<1x1x16xf32>
    %cst_16 = arith.constant 0.000000e+00 : f32
    %21 = vector.broadcast %cst_16 : f32 to vector<1x1x16xf32>
    %22 = arith.cmpf ogt, %20, %21 : vector<1x1x16xf32>
    %c0_17 = arith.constant 0 : index
    %c0_18 = arith.constant 0 : index
    %c0_19 = arith.constant 0 : index
    %23 = vector.load %arg10[%c0_17, %c0_18, %c0_19] : memref<2x4x32xf32, #tpu.memory_space<vmem>>, vector<1x4x32xf32>
    %24 = vector.shape_cast %23 : vector<1x4x32xf32> to vector<4x32xf32>
    %25 = vector.extract_strided_slice %24 {offsets = [0, 0], sizes = [1, 32], strides = [1, 1]} : vector<4x32xf32> to vector<1x32xf32>
    %26 = vector.extract_strided_slice %24 {offsets = [1, 0], sizes = [1, 32], strides = [1, 1]} : vector<4x32xf32> to vector<1x32xf32>
    %cst_20 = arith.constant dense<0.000000e+00> : vector<16xf32>
    %27 = vector.multi_reduction <add>, %19, %cst_20 [1] : vector<16x32xf32> to vector<16xf32>
    %28 = vector.shape_cast %27 : vector<16xf32> to vector<16x1xf32>
    %cst_21 = arith.constant 3.200000e+01 : f32
    %29 = vector.broadcast %cst_21 : f32 to vector<16x1xf32>
    %30 = arith.divf %28, %29 : vector<16x1xf32>
    %31 = vector.broadcast %30 : vector<16x1xf32> to vector<16x32xf32>
    %32 = arith.subf %19, %31 : vector<16x32xf32>
    %33 = arith.mulf %32, %32 : vector<16x32xf32>
    %cst_22 = arith.constant dense<0.000000e+00> : vector<16xf32>
    %34 = vector.multi_reduction <add>, %33, %cst_22 [1] : vector<16x32xf32> to vector<16xf32>
    %35 = vector.shape_cast %34 : vector<16xf32> to vector<16x1xf32>
    %cst_23 = arith.constant 3.200000e+01 : f32
    %36 = vector.broadcast %cst_23 : f32 to vector<16x1xf32>
    %37 = arith.divf %35, %36 : vector<16x1xf32>
    %38 = vector.broadcast %30 : vector<16x1xf32> to vector<16x32xf32>
    %39 = arith.subf %19, %38 : vector<16x32xf32>
    %cst_24 = arith.constant 9.99999996E-13 : f32
    %40 = vector.broadcast %cst_24 : f32 to vector<16x1xf32>
    %41 = arith.addf %37, %40 : vector<16x1xf32>
    %42 = math.rsqrt %41 : vector<16x1xf32>
    %43 = vector.broadcast %42 : vector<16x1xf32> to vector<16x32xf32>
    %44 = arith.mulf %39, %43 : vector<16x32xf32>
    %45 = vector.broadcast %25 : vector<1x32xf32> to vector<16x32xf32>
    %46 = arith.mulf %44, %45 : vector<16x32xf32>
    %47 = vector.broadcast %26 : vector<1x32xf32> to vector<16x32xf32>
    %48 = arith.addf %46, %47 : vector<16x32xf32>
    %c0_25 = arith.constant 0 : index
    %c0_26 = arith.constant 0 : index
    %c0_27 = arith.constant 0 : index
    %49 = vector.load %arg6[%c0_25, %c0_26, %c0_27] : memref<2x32x96xf32, #tpu.memory_space<vmem>>, vector<1x32x96xf32>
    %50 = vector.shape_cast %49 : vector<1x32x96xf32> to vector<32x96xf32>
    %cst_28 = arith.constant dense<0.000000e+00> : vector<16x96xf32>
    %51 = tpu.matmul %48, %50, %cst_28 {dimension_numbers = #tpu.dot_dimension_numbers<[1], [0], [0], [1], [0, 0, 1, 1], [], []>} : vector<16x32xf32>, vector<32x96xf32>, vector<16x96xf32> -> vector<16x96xf32>
    %c0_29 = arith.constant 0 : index
    %c0_30 = arith.constant 0 : index
    %c0_31 = arith.constant 0 : index
    %52 = vector.load %arg7[%c0_29, %c0_30, %c0_31] : memref<2x1x96xf32, #tpu.memory_space<vmem>>, vector<1x1x96xf32>
    %53 = vector.shape_cast %52 : vector<1x1x96xf32> to vector<1x96xf32>
    %54 = vector.broadcast %53 : vector<1x96xf32> to vector<16x96xf32>
    %55 = arith.addf %51, %54 : vector<16x96xf32>
    %56 = vector.extract_strided_slice %55 {offsets = [0, 0], sizes = [16, 16], strides = [1, 1]} : vector<16x96xf32> to vector<16x16xf32>
    %57 = vector.extract_strided_slice %55 {offsets = [0, 16], sizes = [16, 16], strides = [1, 1]} : vector<16x96xf32> to vector<16x16xf32>
    %58 = vector.shape_cast %56 : vector<16x16xf32> to vector<1x16x16xf32>
    %59 = vector.shape_cast %57 : vector<16x16xf32> to vector<1x16x16xf32>
    %60 = tpu.concatenate %58, %59 in 0 : vector<1x16x16xf32>, vector<1x16x16xf32> -> vector<2x16x16xf32>
    %61 = vector.extract_strided_slice %55 {offsets = [0, 32], sizes = [16, 16], strides = [1, 1]} : vector<16x96xf32> to vector<16x16xf32>
    %62 = vector.extract_strided_slice %55 {offsets = [0, 48], sizes = [16, 16], strides = [1, 1]} : vector<16x96xf32> to vector<16x16xf32>
    %63 = vector.shape_cast %61 : vector<16x16xf32> to vector<1x16x16xf32>
    %64 = vector.shape_cast %62 : vector<16x16xf32> to vector<1x16x16xf32>
    %65 = tpu.concatenate %63, %64 in 0 : vector<1x16x16xf32>, vector<1x16x16xf32> -> vector<2x16x16xf32>
    %66 = vector.extract_strided_slice %55 {offsets = [0, 64], sizes = [16, 16], strides = [1, 1]} : vector<16x96xf32> to vector<16x16xf32>
    %67 = vector.extract_strided_slice %55 {offsets = [0, 80], sizes = [16, 16], strides = [1, 1]} : vector<16x96xf32> to vector<16x16xf32>
    %68 = vector.shape_cast %66 : vector<16x16xf32> to vector<1x16x16xf32>
    %69 = vector.shape_cast %67 : vector<16x16xf32> to vector<1x16x16xf32>
    %70 = tpu.concatenate %68, %69 in 0 : vector<1x16x16xf32>, vector<1x16x16xf32> -> vector<2x16x16xf32>
    "tpu.trace_start"() <{level = 10 : i32, message = "hqd,hkd->hqk"}> : () -> ()
    %cst_32 = arith.constant dense<0.000000e+00> : vector<2x16x16xf32>
    %71 = tpu.matmul %60, %65, %cst_32 {dimension_numbers = #tpu.dot_dimension_numbers<[2], [2], [1], [1], [0, 0, 0, 1, 1, 1], [0], [0]>} : vector<2x16x16xf32>, vector<2x16x16xf32>, vector<2x16x16xf32> -> vector<2x16x16xf32>
    "tpu.trace_stop"() : () -> ()
    %cst_33 = arith.constant 2.500000e-01 : f32
    %72 = vector.broadcast %cst_33 : f32 to vector<2x16x16xf32>
    %73 = arith.mulf %71, %72 : vector<2x16x16xf32>
    %cst_34 = arith.constant -3.40282347E+38 : f32
    %74 = vector.shape_cast %22 : vector<1x1x16xi1> to vector<1x1x16xi1>
    %75 = vector.broadcast %74 : vector<1x1x16xi1> to vector<2x16x16xi1>
    %76 = vector.broadcast %cst_34 : f32 to vector<2x16x16xf32>
    %77 = arith.select %75, %73, %76 : vector<2x16x16xi1>, vector<2x16x16xf32>
    %cst_35 = arith.constant dense<0xFF800000> : vector<2x16xf32>
    %78 = vector.multi_reduction <maximumf>, %77, %cst_35 [2] : vector<2x16x16xf32> to vector<2x16xf32>
    %79 = vector.shape_cast %78 : vector<2x16xf32> to vector<2x16x1xf32>
    %80 = vector.broadcast %79 : vector<2x16x1xf32> to vector<2x16x16xf32>
    %81 = arith.subf %77, %80 : vector<2x16x16xf32>
    %82 = math.exp %81 : vector<2x16x16xf32>
    %cst_36 = arith.constant dense<0.000000e+00> : vector<2x16xf32>
    %83 = vector.multi_reduction <add>, %82, %cst_36 [2] : vector<2x16x16xf32> to vector<2x16xf32>
    %84 = vector.shape_cast %83 : vector<2x16xf32> to vector<2x16x1xf32>
    %85 = vector.broadcast %84 : vector<2x16x1xf32> to vector<2x16x16xf32>
    %86 = arith.divf %82, %85 : vector<2x16x16xf32>
    %cst_37 = arith.constant 0.000000e+00 : f32
    %87 = vector.shape_cast %22 : vector<1x1x16xi1> to vector<1x1x16xi1>
    %88 = vector.broadcast %87 : vector<1x1x16xi1> to vector<2x16x16xi1>
    %89 = vector.broadcast %cst_37 : f32 to vector<2x16x16xf32>
    %90 = arith.select %88, %86, %89 : vector<2x16x16xi1>, vector<2x16x16xf32>
    "tpu.trace_start"() <{level = 10 : i32, message = "hqk,hkd->hqd"}> : () -> ()
    %cst_38 = arith.constant dense<0.000000e+00> : vector<2x16x16xf32>
    %91 = tpu.matmul %90, %70, %cst_38 {dimension_numbers = #tpu.dot_dimension_numbers<[2], [1], [1], [2], [0, 0, 0, 1, 1, 2], [0], [0]>} : vector<2x16x16xf32>, vector<2x16x16xf32>, vector<2x16x16xf32> -> vector<2x16x16xf32>
    "tpu.trace_stop"() : () -> ()
    %92 = vector.extract_strided_slice %91 {offsets = [0, 0, 0], sizes = [1, 16, 16], strides = [1, 1, 1]} : vector<2x16x16xf32> to vector<1x16x16xf32>
    %93 = vector.shape_cast %92 : vector<1x16x16xf32> to vector<16x16xf32>
    %94 = vector.extract_strided_slice %91 {offsets = [1, 0, 0], sizes = [1, 16, 16], strides = [1, 1, 1]} : vector<2x16x16xf32> to vector<1x16x16xf32>
    %95 = vector.shape_cast %94 : vector<1x16x16xf32> to vector<16x16xf32>
    %96 = tpu.concatenate %93, %95 in 1 : vector<16x16xf32>, vector<16x16xf32> -> vector<16x32xf32>
    %c0_39 = arith.constant 0 : index
    %c0_40 = arith.constant 0 : index
    %c0_41 = arith.constant 0 : index
    %97 = vector.load %arg8[%c0_39, %c0_40, %c0_41] : memref<2x32x32xf32, #tpu.memory_space<vmem>>, vector<1x32x32xf32>
    %98 = vector.shape_cast %97 : vector<1x32x32xf32> to vector<32x32xf32>
    %cst_42 = arith.constant dense<0.000000e+00> : vector<16x32xf32>
    %99 = tpu.matmul %96, %98, %cst_42 {dimension_numbers = #tpu.dot_dimension_numbers<[1], [0], [0], [1], [0, 0, 1, 1], [], []>} : vector<16x32xf32>, vector<32x32xf32>, vector<16x32xf32> -> vector<16x32xf32>
    %100 = arith.addf %19, %99 : vector<16x32xf32>
    %c0_43 = arith.constant 0 : index
    %c0_44 = arith.constant 0 : index
    %c0_45 = arith.constant 0 : index
    %101 = vector.load %arg9[%c0_43, %c0_44, %c0_45] : memref<2x1x32xf32, #tpu.memory_space<vmem>>, vector<1x1x32xf32>
    %102 = vector.shape_cast %101 : vector<1x1x32xf32> to vector<1x32xf32>
    %103 = vector.broadcast %102 : vector<1x32xf32> to vector<16x32xf32>
    %104 = arith.addf %100, %103 : vector<16x32xf32>
    %105 = vector.extract_strided_slice %24 {offsets = [2, 0], sizes = [1, 32], strides = [1, 1]} : vector<4x32xf32> to vector<1x32xf32>
    %106 = vector.extract_strided_slice %24 {offsets = [3, 0], sizes = [1, 32], strides = [1, 1]} : vector<4x32xf32> to vector<1x32xf32>
    %cst_46 = arith.constant dense<0.000000e+00> : vector<16xf32>
    %107 = vector.multi_reduction <add>, %104, %cst_46 [1] : vector<16x32xf32> to vector<16xf32>
    %108 = vector.shape_cast %107 : vector<16xf32> to vector<16x1xf32>
    %cst_47 = arith.constant 3.200000e+01 : f32
    %109 = vector.broadcast %cst_47 : f32 to vector<16x1xf32>
    %110 = arith.divf %108, %109 : vector<16x1xf32>
    %111 = vector.broadcast %110 : vector<16x1xf32> to vector<16x32xf32>
    %112 = arith.subf %104, %111 : vector<16x32xf32>
    %113 = arith.mulf %112, %112 : vector<16x32xf32>
    %cst_48 = arith.constant dense<0.000000e+00> : vector<16xf32>
    %114 = vector.multi_reduction <add>, %113, %cst_48 [1] : vector<16x32xf32> to vector<16xf32>
    %115 = vector.shape_cast %114 : vector<16xf32> to vector<16x1xf32>
    %cst_49 = arith.constant 3.200000e+01 : f32
    %116 = vector.broadcast %cst_49 : f32 to vector<16x1xf32>
    %117 = arith.divf %115, %116 : vector<16x1xf32>
    %118 = vector.broadcast %110 : vector<16x1xf32> to vector<16x32xf32>
    %119 = arith.subf %104, %118 : vector<16x32xf32>
    %cst_50 = arith.constant 9.99999996E-13 : f32
    %120 = vector.broadcast %cst_50 : f32 to vector<16x1xf32>
    %121 = arith.addf %117, %120 : vector<16x1xf32>
    %122 = math.rsqrt %121 : vector<16x1xf32>
    %123 = vector.broadcast %122 : vector<16x1xf32> to vector<16x32xf32>
    %124 = arith.mulf %119, %123 : vector<16x32xf32>
    %125 = vector.broadcast %105 : vector<1x32xf32> to vector<16x32xf32>
    %126 = arith.mulf %124, %125 : vector<16x32xf32>
    %127 = vector.broadcast %106 : vector<1x32xf32> to vector<16x32xf32>
    %128 = arith.addf %126, %127 : vector<16x32xf32>
    %c0_51 = arith.constant 0 : index
    %c0_52 = arith.constant 0 : index
    %c0_53 = arith.constant 0 : index
    %129 = vector.load %arg11[%c0_51, %c0_52, %c0_53] : memref<2x32x64xf32, #tpu.memory_space<vmem>>, vector<1x32x64xf32>
    %130 = vector.shape_cast %129 : vector<1x32x64xf32> to vector<32x64xf32>
    %cst_54 = arith.constant dense<0.000000e+00> : vector<16x64xf32>
    %131 = tpu.matmul %128, %130, %cst_54 {dimension_numbers = #tpu.dot_dimension_numbers<[1], [0], [0], [1], [0, 0, 1, 1], [], []>} : vector<16x32xf32>, vector<32x64xf32>, vector<16x64xf32> -> vector<16x64xf32>
    %c0_55 = arith.constant 0 : index
    %c0_56 = arith.constant 0 : index
    %c0_57 = arith.constant 0 : index
    %132 = vector.load %arg12[%c0_55, %c0_56, %c0_57] : memref<2x1x64xf32, #tpu.memory_space<vmem>>, vector<1x1x64xf32>
    %133 = vector.shape_cast %132 : vector<1x1x64xf32> to vector<1x64xf32>
    %134 = vector.broadcast %133 : vector<1x64xf32> to vector<16x64xf32>
    %135 = arith.addf %131, %134 : vector<16x64xf32>
    %cst_58 = arith.constant 0.000000e+00 : f32
    %136 = vector.broadcast %cst_58 : f32 to vector<16x64xf32>
    %137 = arith.maximumf %135, %136 : vector<16x64xf32>
    %c0_59 = arith.constant 0 : index
    %c0_60 = arith.constant 0 : index
    %c0_61 = arith.constant 0 : index
    %138 = vector.load %arg13[%c0_59, %c0_60, %c0_61] : memref<2x64x32xf32, #tpu.memory_space<vmem>>, vector<1x64x32xf32>
    %139 = vector.shape_cast %138 : vector<1x64x32xf32> to vector<64x32xf32>
    %cst_62 = arith.constant dense<0.000000e+00> : vector<16x32xf32>
    %140 = tpu.matmul %137, %139, %cst_62 {dimension_numbers = #tpu.dot_dimension_numbers<[1], [0], [0], [1], [0, 0, 1, 1], [], []>} : vector<16x64xf32>, vector<64x32xf32>, vector<16x32xf32> -> vector<16x32xf32>
    %141 = arith.addf %104, %140 : vector<16x32xf32>
    %c0_63 = arith.constant 0 : index
    %c0_64 = arith.constant 0 : index
    %c0_65 = arith.constant 0 : index
    %142 = vector.load %arg14[%c0_63, %c0_64, %c0_65] : memref<2x1x32xf32, #tpu.memory_space<vmem>>, vector<1x1x32xf32>
    %143 = vector.shape_cast %142 : vector<1x1x32xf32> to vector<1x32xf32>
    %144 = vector.broadcast %143 : vector<1x32xf32> to vector<16x32xf32>
    %145 = arith.addf %141, %144 : vector<16x32xf32>
    %c1_66 = arith.constant 1 : index
    %c0_67 = arith.constant 0 : index
    %c0_68 = arith.constant 0 : index
    %146 = vector.load %arg10[%c1_66, %c0_67, %c0_68] : memref<2x4x32xf32, #tpu.memory_space<vmem>>, vector<1x4x32xf32>
    %147 = vector.shape_cast %146 : vector<1x4x32xf32> to vector<4x32xf32>
    %148 = vector.extract_strided_slice %147 {offsets = [0, 0], sizes = [1, 32], strides = [1, 1]} : vector<4x32xf32> to vector<1x32xf32>
    %149 = vector.extract_strided_slice %147 {offsets = [1, 0], sizes = [1, 32], strides = [1, 1]} : vector<4x32xf32> to vector<1x32xf32>
    %cst_69 = arith.constant dense<0.000000e+00> : vector<16xf32>
    %150 = vector.multi_reduction <add>, %145, %cst_69 [1] : vector<16x32xf32> to vector<16xf32>
    %151 = vector.shape_cast %150 : vector<16xf32> to vector<16x1xf32>
    %cst_70 = arith.constant 3.200000e+01 : f32
    %152 = vector.broadcast %cst_70 : f32 to vector<16x1xf32>
    %153 = arith.divf %151, %152 : vector<16x1xf32>
    %154 = vector.broadcast %153 : vector<16x1xf32> to vector<16x32xf32>
    %155 = arith.subf %145, %154 : vector<16x32xf32>
    %156 = arith.mulf %155, %155 : vector<16x32xf32>
    %cst_71 = arith.constant dense<0.000000e+00> : vector<16xf32>
    %157 = vector.multi_reduction <add>, %156, %cst_71 [1] : vector<16x32xf32> to vector<16xf32>
    %158 = vector.shape_cast %157 : vector<16xf32> to vector<16x1xf32>
    %cst_72 = arith.constant 3.200000e+01 : f32
    %159 = vector.broadcast %cst_72 : f32 to vector<16x1xf32>
    %160 = arith.divf %158, %159 : vector<16x1xf32>
    %161 = vector.broadcast %153 : vector<16x1xf32> to vector<16x32xf32>
    %162 = arith.subf %145, %161 : vector<16x32xf32>
    %cst_73 = arith.constant 9.99999996E-13 : f32
    %163 = vector.broadcast %cst_73 : f32 to vector<16x1xf32>
    %164 = arith.addf %160, %163 : vector<16x1xf32>
    %165 = math.rsqrt %164 : vector<16x1xf32>
    %166 = vector.broadcast %165 : vector<16x1xf32> to vector<16x32xf32>
    %167 = arith.mulf %162, %166 : vector<16x32xf32>
    %168 = vector.broadcast %148 : vector<1x32xf32> to vector<16x32xf32>
    %169 = arith.mulf %167, %168 : vector<16x32xf32>
    %170 = vector.broadcast %149 : vector<1x32xf32> to vector<16x32xf32>
    %171 = arith.addf %169, %170 : vector<16x32xf32>
    %c1_74 = arith.constant 1 : index
    %c0_75 = arith.constant 0 : index
    %c0_76 = arith.constant 0 : index
    %172 = vector.load %arg6[%c1_74, %c0_75, %c0_76] : memref<2x32x96xf32, #tpu.memory_space<vmem>>, vector<1x32x96xf32>
    %173 = vector.shape_cast %172 : vector<1x32x96xf32> to vector<32x96xf32>
    %cst_77 = arith.constant dense<0.000000e+00> : vector<16x96xf32>
    %174 = tpu.matmul %171, %173, %cst_77 {dimension_numbers = #tpu.dot_dimension_numbers<[1], [0], [0], [1], [0, 0, 1, 1], [], []>} : vector<16x32xf32>, vector<32x96xf32>, vector<16x96xf32> -> vector<16x96xf32>
    %c1_78 = arith.constant 1 : index
    %c0_79 = arith.constant 0 : index
    %c0_80 = arith.constant 0 : index
    %175 = vector.load %arg7[%c1_78, %c0_79, %c0_80] : memref<2x1x96xf32, #tpu.memory_space<vmem>>, vector<1x1x96xf32>
    %176 = vector.shape_cast %175 : vector<1x1x96xf32> to vector<1x96xf32>
    %177 = vector.broadcast %176 : vector<1x96xf32> to vector<16x96xf32>
    %178 = arith.addf %174, %177 : vector<16x96xf32>
    %179 = vector.extract_strided_slice %178 {offsets = [0, 0], sizes = [16, 16], strides = [1, 1]} : vector<16x96xf32> to vector<16x16xf32>
    %180 = vector.extract_strided_slice %178 {offsets = [0, 16], sizes = [16, 16], strides = [1, 1]} : vector<16x96xf32> to vector<16x16xf32>
    %181 = vector.shape_cast %179 : vector<16x16xf32> to vector<1x16x16xf32>
    %182 = vector.shape_cast %180 : vector<16x16xf32> to vector<1x16x16xf32>
    %183 = tpu.concatenate %181, %182 in 0 : vector<1x16x16xf32>, vector<1x16x16xf32> -> vector<2x16x16xf32>
    %184 = vector.extract_strided_slice %178 {offsets = [0, 32], sizes = [16, 16], strides = [1, 1]} : vector<16x96xf32> to vector<16x16xf32>
    %185 = vector.extract_strided_slice %178 {offsets = [0, 48], sizes = [16, 16], strides = [1, 1]} : vector<16x96xf32> to vector<16x16xf32>
    %186 = vector.shape_cast %184 : vector<16x16xf32> to vector<1x16x16xf32>
    %187 = vector.shape_cast %185 : vector<16x16xf32> to vector<1x16x16xf32>
    %188 = tpu.concatenate %186, %187 in 0 : vector<1x16x16xf32>, vector<1x16x16xf32> -> vector<2x16x16xf32>
    %189 = vector.extract_strided_slice %178 {offsets = [0, 64], sizes = [16, 16], strides = [1, 1]} : vector<16x96xf32> to vector<16x16xf32>
    %190 = vector.extract_strided_slice %178 {offsets = [0, 80], sizes = [16, 16], strides = [1, 1]} : vector<16x96xf32> to vector<16x16xf32>
    %191 = vector.shape_cast %189 : vector<16x16xf32> to vector<1x16x16xf32>
    %192 = vector.shape_cast %190 : vector<16x16xf32> to vector<1x16x16xf32>
    %193 = tpu.concatenate %191, %192 in 0 : vector<1x16x16xf32>, vector<1x16x16xf32> -> vector<2x16x16xf32>
    "tpu.trace_start"() <{level = 10 : i32, message = "hqd,hkd->hqk"}> : () -> ()
    %cst_81 = arith.constant dense<0.000000e+00> : vector<2x16x16xf32>
    %194 = tpu.matmul %183, %188, %cst_81 {dimension_numbers = #tpu.dot_dimension_numbers<[2], [2], [1], [1], [0, 0, 0, 1, 1, 1], [0], [0]>} : vector<2x16x16xf32>, vector<2x16x16xf32>, vector<2x16x16xf32> -> vector<2x16x16xf32>
    "tpu.trace_stop"() : () -> ()
    %cst_82 = arith.constant 2.500000e-01 : f32
    %195 = vector.broadcast %cst_82 : f32 to vector<2x16x16xf32>
    %196 = arith.mulf %194, %195 : vector<2x16x16xf32>
    %cst_83 = arith.constant -3.40282347E+38 : f32
    %197 = vector.shape_cast %22 : vector<1x1x16xi1> to vector<1x1x16xi1>
    %198 = vector.broadcast %197 : vector<1x1x16xi1> to vector<2x16x16xi1>
    %199 = vector.broadcast %cst_83 : f32 to vector<2x16x16xf32>
    %200 = arith.select %198, %196, %199 : vector<2x16x16xi1>, vector<2x16x16xf32>
    %cst_84 = arith.constant dense<0xFF800000> : vector<2x16xf32>
    %201 = vector.multi_reduction <maximumf>, %200, %cst_84 [2] : vector<2x16x16xf32> to vector<2x16xf32>
    %202 = vector.shape_cast %201 : vector<2x16xf32> to vector<2x16x1xf32>
    %203 = vector.broadcast %202 : vector<2x16x1xf32> to vector<2x16x16xf32>
    %204 = arith.subf %200, %203 : vector<2x16x16xf32>
    %205 = math.exp %204 : vector<2x16x16xf32>
    %cst_85 = arith.constant dense<0.000000e+00> : vector<2x16xf32>
    %206 = vector.multi_reduction <add>, %205, %cst_85 [2] : vector<2x16x16xf32> to vector<2x16xf32>
    %207 = vector.shape_cast %206 : vector<2x16xf32> to vector<2x16x1xf32>
    %208 = vector.broadcast %207 : vector<2x16x1xf32> to vector<2x16x16xf32>
    %209 = arith.divf %205, %208 : vector<2x16x16xf32>
    %cst_86 = arith.constant 0.000000e+00 : f32
    %210 = vector.shape_cast %22 : vector<1x1x16xi1> to vector<1x1x16xi1>
    %211 = vector.broadcast %210 : vector<1x1x16xi1> to vector<2x16x16xi1>
    %212 = vector.broadcast %cst_86 : f32 to vector<2x16x16xf32>
    %213 = arith.select %211, %209, %212 : vector<2x16x16xi1>, vector<2x16x16xf32>
    "tpu.trace_start"() <{level = 10 : i32, message = "hqk,hkd->hqd"}> : () -> ()
    %cst_87 = arith.constant dense<0.000000e+00> : vector<2x16x16xf32>
    %214 = tpu.matmul %213, %193, %cst_87 {dimension_numbers = #tpu.dot_dimension_numbers<[2], [1], [1], [2], [0, 0, 0, 1, 1, 2], [0], [0]>} : vector<2x16x16xf32>, vector<2x16x16xf32>, vector<2x16x16xf32> -> vector<2x16x16xf32>
    "tpu.trace_stop"() : () -> ()
    %215 = vector.extract_strided_slice %214 {offsets = [0, 0, 0], sizes = [1, 16, 16], strides = [1, 1, 1]} : vector<2x16x16xf32> to vector<1x16x16xf32>
    %216 = vector.shape_cast %215 : vector<1x16x16xf32> to vector<16x16xf32>
    %217 = vector.extract_strided_slice %214 {offsets = [1, 0, 0], sizes = [1, 16, 16], strides = [1, 1, 1]} : vector<2x16x16xf32> to vector<1x16x16xf32>
    %218 = vector.shape_cast %217 : vector<1x16x16xf32> to vector<16x16xf32>
    %219 = tpu.concatenate %216, %218 in 1 : vector<16x16xf32>, vector<16x16xf32> -> vector<16x32xf32>
    %c1_88 = arith.constant 1 : index
    %c0_89 = arith.constant 0 : index
    %c0_90 = arith.constant 0 : index
    %220 = vector.load %arg8[%c1_88, %c0_89, %c0_90] : memref<2x32x32xf32, #tpu.memory_space<vmem>>, vector<1x32x32xf32>
    %221 = vector.shape_cast %220 : vector<1x32x32xf32> to vector<32x32xf32>
    %cst_91 = arith.constant dense<0.000000e+00> : vector<16x32xf32>
    %222 = tpu.matmul %219, %221, %cst_91 {dimension_numbers = #tpu.dot_dimension_numbers<[1], [0], [0], [1], [0, 0, 1, 1], [], []>} : vector<16x32xf32>, vector<32x32xf32>, vector<16x32xf32> -> vector<16x32xf32>
    %223 = arith.addf %145, %222 : vector<16x32xf32>
    %c1_92 = arith.constant 1 : index
    %c0_93 = arith.constant 0 : index
    %c0_94 = arith.constant 0 : index
    %224 = vector.load %arg9[%c1_92, %c0_93, %c0_94] : memref<2x1x32xf32, #tpu.memory_space<vmem>>, vector<1x1x32xf32>
    %225 = vector.shape_cast %224 : vector<1x1x32xf32> to vector<1x32xf32>
    %226 = vector.broadcast %225 : vector<1x32xf32> to vector<16x32xf32>
    %227 = arith.addf %223, %226 : vector<16x32xf32>
    %228 = vector.extract_strided_slice %147 {offsets = [2, 0], sizes = [1, 32], strides = [1, 1]} : vector<4x32xf32> to vector<1x32xf32>
    %229 = vector.extract_strided_slice %147 {offsets = [3, 0], sizes = [1, 32], strides = [1, 1]} : vector<4x32xf32> to vector<1x32xf32>
    %cst_95 = arith.constant dense<0.000000e+00> : vector<16xf32>
    %230 = vector.multi_reduction <add>, %227, %cst_95 [1] : vector<16x32xf32> to vector<16xf32>
    %231 = vector.shape_cast %230 : vector<16xf32> to vector<16x1xf32>
    %cst_96 = arith.constant 3.200000e+01 : f32
    %232 = vector.broadcast %cst_96 : f32 to vector<16x1xf32>
    %233 = arith.divf %231, %232 : vector<16x1xf32>
    %234 = vector.broadcast %233 : vector<16x1xf32> to vector<16x32xf32>
    %235 = arith.subf %227, %234 : vector<16x32xf32>
    %236 = arith.mulf %235, %235 : vector<16x32xf32>
    %cst_97 = arith.constant dense<0.000000e+00> : vector<16xf32>
    %237 = vector.multi_reduction <add>, %236, %cst_97 [1] : vector<16x32xf32> to vector<16xf32>
    %238 = vector.shape_cast %237 : vector<16xf32> to vector<16x1xf32>
    %cst_98 = arith.constant 3.200000e+01 : f32
    %239 = vector.broadcast %cst_98 : f32 to vector<16x1xf32>
    %240 = arith.divf %238, %239 : vector<16x1xf32>
    %241 = vector.broadcast %233 : vector<16x1xf32> to vector<16x32xf32>
    %242 = arith.subf %227, %241 : vector<16x32xf32>
    %cst_99 = arith.constant 9.99999996E-13 : f32
    %243 = vector.broadcast %cst_99 : f32 to vector<16x1xf32>
    %244 = arith.addf %240, %243 : vector<16x1xf32>
    %245 = math.rsqrt %244 : vector<16x1xf32>
    %246 = vector.broadcast %245 : vector<16x1xf32> to vector<16x32xf32>
    %247 = arith.mulf %242, %246 : vector<16x32xf32>
    %248 = vector.broadcast %228 : vector<1x32xf32> to vector<16x32xf32>
    %249 = arith.mulf %247, %248 : vector<16x32xf32>
    %250 = vector.broadcast %229 : vector<1x32xf32> to vector<16x32xf32>
    %251 = arith.addf %249, %250 : vector<16x32xf32>
    %c1_100 = arith.constant 1 : index
    %c0_101 = arith.constant 0 : index
    %c0_102 = arith.constant 0 : index
    %252 = vector.load %arg11[%c1_100, %c0_101, %c0_102] : memref<2x32x64xf32, #tpu.memory_space<vmem>>, vector<1x32x64xf32>
    %253 = vector.shape_cast %252 : vector<1x32x64xf32> to vector<32x64xf32>
    %cst_103 = arith.constant dense<0.000000e+00> : vector<16x64xf32>
    %254 = tpu.matmul %251, %253, %cst_103 {dimension_numbers = #tpu.dot_dimension_numbers<[1], [0], [0], [1], [0, 0, 1, 1], [], []>} : vector<16x32xf32>, vector<32x64xf32>, vector<16x64xf32> -> vector<16x64xf32>
    %c1_104 = arith.constant 1 : index
    %c0_105 = arith.constant 0 : index
    %c0_106 = arith.constant 0 : index
    %255 = vector.load %arg12[%c1_104, %c0_105, %c0_106] : memref<2x1x64xf32, #tpu.memory_space<vmem>>, vector<1x1x64xf32>
    %256 = vector.shape_cast %255 : vector<1x1x64xf32> to vector<1x64xf32>
    %257 = vector.broadcast %256 : vector<1x64xf32> to vector<16x64xf32>
    %258 = arith.addf %254, %257 : vector<16x64xf32>
    %cst_107 = arith.constant 0.000000e+00 : f32
    %259 = vector.broadcast %cst_107 : f32 to vector<16x64xf32>
    %260 = arith.maximumf %258, %259 : vector<16x64xf32>
    %c1_108 = arith.constant 1 : index
    %c0_109 = arith.constant 0 : index
    %c0_110 = arith.constant 0 : index
    %261 = vector.load %arg13[%c1_108, %c0_109, %c0_110] : memref<2x64x32xf32, #tpu.memory_space<vmem>>, vector<1x64x32xf32>
    %262 = vector.shape_cast %261 : vector<1x64x32xf32> to vector<64x32xf32>
    %cst_111 = arith.constant dense<0.000000e+00> : vector<16x32xf32>
    %263 = tpu.matmul %260, %262, %cst_111 {dimension_numbers = #tpu.dot_dimension_numbers<[1], [0], [0], [1], [0, 0, 1, 1], [], []>} : vector<16x64xf32>, vector<64x32xf32>, vector<16x32xf32> -> vector<16x32xf32>
    %264 = arith.addf %227, %263 : vector<16x32xf32>
    %c1_112 = arith.constant 1 : index
    %c0_113 = arith.constant 0 : index
    %c0_114 = arith.constant 0 : index
    %265 = vector.load %arg14[%c1_112, %c0_113, %c0_114] : memref<2x1x32xf32, #tpu.memory_space<vmem>>, vector<1x1x32xf32>
    %266 = vector.shape_cast %265 : vector<1x1x32xf32> to vector<1x32xf32>
    %267 = vector.broadcast %266 : vector<1x32xf32> to vector<16x32xf32>
    %268 = arith.addf %264, %267 : vector<16x32xf32>
    %c0_115 = arith.constant 0 : index
    %c0_116 = arith.constant 0 : index
    %c0_117 = arith.constant 0 : index
    %269 = vector.load %arg15[%c0_115, %c0_116, %c0_117] : memref<1x16x32xf32, #tpu.memory_space<vmem>>, vector<1x16x32xf32>
    %270 = vector.shape_cast %269 : vector<1x16x32xf32> to vector<16x32xf32>
    %271 = vector.shape_cast %268 : vector<16x32xf32> to vector<1x16x32xf32>
    tpu.vector_store %arg15[%c0_115, %c0_116, %c0_117], %271 {strides = array<i32>} : memref<1x16x32xf32, #tpu.memory_space<vmem>>, vector<1x16x32xf32>,
    return
  }
  func.func @transform_0(%arg0: i32) -> (i32, i32, i32, i32) {
    %c0_i32 = arith.constant 0 : i32
    %c0_i32_0 = arith.constant 0 : i32
    %c0_i32_1 = arith.constant 0 : i32
    %c0_i32_2 = arith.constant 0 : i32
    return %arg0, %c0_i32, %c0_i32_0, %c0_i32_1 : i32, i32, i32, i32
  }
  func.func @transform_1(%arg0: i32) -> (i32, i32, i32) {
    %c0_i32 = arith.constant 0 : i32
    %c0_i32_0 = arith.constant 0 : i32
    %c0_i32_1 = arith.constant 0 : i32
    return %arg0, %c0_i32, %c0_i32_0 : i32, i32, i32
  }
  func.func @transform_2(%arg0: i32) -> (i32, i32) {
    %c0_i32 = arith.constant 0 : i32
    %c0_i32_0 = arith.constant 0 : i32
    %c0_i32_1 = arith.constant 0 : i32
    return %c0_i32, %c0_i32_0 : i32, i32
  }
  func.func @transform_3(%arg0: i32) -> (i32, i32, i32) {
    %c0_i32 = arith.constant 0 : i32
    %c0_i32_0 = arith.constant 0 : i32
    %c0_i32_1 = arith.constant 0 : i32
    %c0_i32_2 = arith.constant 0 : i32
    return %c0_i32, %c0_i32_0, %c0_i32_1 : i32, i32, i32
  }
  func.func @transform_4(%arg0: i32) -> (i32, i32) {
    %c0_i32 = arith.constant 0 : i32
    %c0_i32_0 = arith.constant 0 : i32
    %c0_i32_1 = arith.constant 0 : i32
    return %c0_i32, %c0_i32_0 : i32, i32
  }
  func.func @transform_5(%arg0: i32) -> (i32, i32, i32) {
    %c0_i32 = arith.constant 0 : i32
    %c0_i32_0 = arith.constant 0 : i32
    %c0_i32_1 = arith.constant 0 : i32
    %c0_i32_2 = arith.constant 0 : i32
    return %c0_i32, %c0_i32_0, %c0_i32_1 : i32, i32, i32
  }
  func.func @transform_6(%arg0: i32) -> (i32, i32, i32) {
    %c0_i32 = arith.constant 0 : i32
    %c0_i32_0 = arith.constant 0 : i32
    %c0_i32_1 = arith.constant 0 : i32
    %c0_i32_2 = arith.constant 0 : i32
    return %c0_i32, %c0_i32_0, %c0_i32_1 : i32, i32, i32
  }
  func.func @transform_7(%arg0: i32) -> (i32, i32, i32) {
    %c0_i32 = arith.constant 0 : i32
    %c0_i32_0 = arith.constant 0 : i32
    %c0_i32_1 = arith.constant 0 : i32
    %c0_i32_2 = arith.constant 0 : i32
    return %c0_i32, %c0_i32_0, %c0_i32_1 : i32, i32, i32
  }
  func.func @transform_8(%arg0: i32) -> (i32, i32, i32) {
    %c0_i32 = arith.constant 0 : i32
    %c0_i32_0 = arith.constant 0 : i32
    %c0_i32_1 = arith.constant 0 : i32
    %c0_i32_2 = arith.constant 0 : i32
    return %c0_i32, %c0_i32_0, %c0_i32_1 : i32, i32, i32
  }
  func.func @transform_9(%arg0: i32) -> (i32, i32, i32) {
    %c0_i32 = arith.constant 0 : i32
    %c0_i32_0 = arith.constant 0 : i32
    %c0_i32_1 = arith.constant 0 : i32
    %c0_i32_2 = arith.constant 0 : i32
    return %c0_i32, %c0_i32_0, %c0_i32_1 : i32, i32, i32
  }
  func.func @transform_10(%arg0: i32) -> (i32, i32, i32) {
    %c0_i32 = arith.constant 0 : i32
    %c0_i32_0 = arith.constant 0 : i32
    %c0_i32_1 = arith.constant 0 : i32
    %c0_i32_2 = arith.constant 0 : i32
    return %c0_i32, %c0_i32_0, %c0_i32_1 : i32, i32, i32
  }
  func.func @transform_11(%arg0: i32) -> (i32, i32, i32) {
    %c0_i32 = arith.constant 0 : i32
    %c0_i32_0 = arith.constant 0 : i32
    %c0_i32_1 = arith.constant 0 : i32
    %c0_i32_2 = arith.constant 0 : i32
    return %c0_i32, %c0_i32_0, %c0_i32_1 : i32, i32, i32
  }
  func.func @transform_12(%arg0: i32) -> (i32, i32, i32) {
    %c0_i32 = arith.constant 0 : i32
    %c0_i32_0 = arith.constant 0 : i32
    %c0_i32_1 = arith.constant 0 : i32
    %c0_i32_2 = arith.constant 0 : i32
    return %c0_i32, %c0_i32_0, %c0_i32_1 : i32, i32, i32
  }
  func.func @transform_13(%arg0: i32) -> (i32, i32, i32) {
    %c0_i32 = arith.constant 0 : i32
    %c0_i32_0 = arith.constant 0 : i32
    %c0_i32_1 = arith.constant 0 : i32
    %c0_i32_2 = arith.constant 0 : i32
    return %c0_i32, %c0_i32_0, %c0_i32_1 : i32, i32, i32
  }
  func.func @transform_14(%arg0: i32) -> (i32, i32, i32) {
    %c0_i32 = arith.constant 0 : i32
    %c0_i32_0 = arith.constant 0 : i32
    %c0_i32_1 = arith.constant 0 : i32
    return %arg0, %c0_i32, %c0_i32_0 : i32, i32, i32
  }
}

</mosaic_0001>

<llo_original>
// kernel: prosody_predictor_forward.1
$region0: #{prosody_predictor_forward.1}
  #allocation0 [shape = 'u32[]', space=smem, size = 0x4, offset = 0x4, fixed_abs, tag = 'smem constant byte address 0x4 - core index']
  #allocation1 [shape = 'u32[144,128]{1,0:T(1,128)}', space=vmem, size = 0x12000, scoped, tag = 'internal scratch']
  %s0 = inlined_call_operand.vmem [shape: f32[2,2,8,64], index: 0, kind: input, shape index: {}]
  %s1 = inlined_call_operand.vmem [shape: f32[2,1,16], index: 1, kind: input, shape index: {}]
  %s2 = inlined_call_operand.vmem [shape: f32[16,32], index: 2, kind: input, shape index: {}]
  %s3 = inlined_call_operand.vmem [shape: f32[2,64,32], index: 3, kind: input, shape index: {}]
  %s4 = inlined_call_operand.vmem [shape: f32[1,32], index: 4, kind: input, shape index: {}]
  %s5 = inlined_call_operand.vmem [shape: f32[2,32,96], index: 5, kind: input, shape index: {}]
  %s6 = inlined_call_operand.vmem [shape: f32[2,1,96], index: 6, kind: input, shape index: {}]
  %s7 = inlined_call_operand.vmem [shape: f32[2,32,32], index: 7, kind: input, shape index: {}]
  %s8 = inlined_call_operand.vmem [shape: f32[2,1,32], index: 8, kind: input, shape index: {}]
  %s9 = inlined_call_operand.vmem [shape: f32[2,4,32], index: 9, kind: input, shape index: {}]
  %s10 = inlined_call_operand.vmem [shape: f32[2,32,64], index: 10, kind: input, shape index: {}]
  %s11 = inlined_call_operand.vmem [shape: f32[2,1,64], index: 11, kind: input, shape index: {}]
  %s12 = inlined_call_operand.vmem [shape: f32[2,64,32], index: 12, kind: input, shape index: {}]
  %s13 = inlined_call_operand.vmem [shape: f32[2,1,32], index: 13, kind: input, shape index: {}]
  %s14 = inlined_call_operand.vmem [shape: f32[2,16,32], index: 14, kind: output, shape index: {}]
  %s15 = sld [smem:[#allocation0]]
  $region89: #{prosody_predictor_forward.1} parent=0
    _
  %s17 = ssub.s32 1, %s15
  %s18 = scalar_select 0, %s17, %s15
  loop: start=0, step=1, limit=4
  $region2: #{prosody_predictor_forward.1} parent=0 // loop_pre_header
    _
  $region3: #{prosody_predictor_forward.1} parent=0 // loop_header
    %s20 = sphi 0, %s24
    %p21 = scmp.ge.s32.totalorder %s20, 4
    %s30 = sphi 0, %s32
    %s33 = sphi 0, %s30
    %s34 = sphi 0, %s33
    %s50 = sphi 0, %s34
    %s56 = sphi 0, %s58
    %s59 = sphi 0, %s56
    %s60 = sphi 0, %s59
    %s76 = sphi 0, %s60
    %s80 = sphi 0, %s80
    %s82 = sphi 0, %s80
    %s83 = sphi 0, %s82
    %s97 = sphi 0, %s83
    %s101 = sphi 0, %s101
    %s103 = sphi 0, %s101
    %s104 = sphi 0, %s103
    %s118 = sphi 0, %s104
    %s122 = sphi 0, %s122
    %s124 = sphi 0, %s122
    %s125 = sphi 0, %s124
    %s139 = sphi 0, %s125
    %s143 = sphi 0, %s143
    %s145 = sphi 0, %s143
    %s146 = sphi 0, %s145
    %s160 = sphi 0, %s146
    %s164 = sphi 0, %s164
    %s166 = sphi 0, %s164
    %s167 = sphi 0, %s166
    %s181 = sphi 0, %s167
    %s185 = sphi 0, %s185
    %s187 = sphi 0, %s185
    %s188 = sphi 0, %s187
    %s202 = sphi 0, %s188
    %s206 = sphi 0, %s206
    %s208 = sphi 0, %s206
    %s209 = sphi 0, %s208
    %s223 = sphi 0, %s209
    %s227 = sphi 0, %s227
    %s229 = sphi 0, %s227
    %s230 = sphi 0, %s229
    %s244 = sphi 0, %s230
    %s248 = sphi 0, %s248
    %s250 = sphi 0, %s248
    %s251 = sphi 0, %s250
    %s265 = sphi 0, %s251
    %s269 = sphi 0, %s269
    %s271 = sphi 0, %s269
    %s272 = sphi 0, %s271
    %s286 = sphi 0, %s272
    %s290 = sphi 0, %s290
    %s292 = sphi 0, %s290
    %s293 = sphi 0, %s292
    %s307 = sphi 0, %s293
    %s311 = sphi 0, %s311
    %s313 = sphi 0, %s311
    %s314 = sphi 0, %s313
    %s328 = sphi 0, %s314
    %s334 = sphi 0, %s336
    %s337 = sphi 0, %s334
    %s338 = sphi 0, %s337
    %s354 = sphi 0, %s338
  $region4: #{prosody_predictor_forward.1} parent=0 // loop_header_branch
    %23 = sbr.rel (%p21) target = $region8
  $region5: #{prosody_predictor_forward.1} parent=0 // loop_body
    %s25 = ssub.s32 %s20, 1
    %s26 = ssub.s32 %s20, 2
    %s27 = sadd.s32 %s20, 1
    %s28 = ssub.s32 %s20, %s27
    %p29 = scmp.eq.s32.totalorder %s28, 0
    %s31 = sadd.s32 %s30, 1
    %s32 = scalar_select %p29, %s30, %s31
    %p35 = pneg %p29
    %p36 = scmp.eq.s32.totalorder %s20, 1
    %p37 = por %p35, %p36
    %p38 = scmp.ne.s32.totalorder %s30, %s33
    %p39 = scmp.eq.s32.totalorder %s20, 0
    %p40 = por %p38, %p39
    %p41 = scmp.ne.s32.totalorder %s30, %s33
    %p42 = scmp.eq.s32.totalorder %s25, 1
    %p43 = por %p41, %p42
    %p44 = scmp.ne.s32.totalorder %s33, %s34
    %p45 = scmp.eq.s32.totalorder %s25, 0
    %p46 = por %p44, %p45
    %p47 = scmp.ne.s32.totalorder %s33, %s34
    %p48 = scmp.eq.s32.totalorder %s26, 1
    %p49 = por %p47, %p48
    %p51 = scmp.ne.s32.totalorder %s34, %s50
    %p52 = scmp.eq.s32.totalorder %s26, 0
    %p53 = por %p51, %p52
    %s54 = ssub.s32 %s20, %s27
    %p55 = scmp.eq.s32.totalorder %s54, 0
    %s57 = sadd.s32 %s56, 1
    %s58 = scalar_select %p55, %s56, %s57
    %p61 = pneg %p55
    %p62 = scmp.eq.s32.totalorder %s20, 1
    %p63 = por %p61, %p62
    %p64 = scmp.ne.s32.totalorder %s56, %s59
    %p65 = scmp.eq.s32.totalorder %s20, 0
    %p66 = por %p64, %p65
    %p67 = scmp.ne.s32.totalorder %s56, %s59
    %p68 = scmp.eq.s32.totalorder %s25, 1
    %p69 = por %p67, %p68
    %p70 = scmp.ne.s32.totalorder %s59, %s60
    %p71 = scmp.eq.s32.totalorder %s25, 0
    %p72 = por %p70, %p71
    %p73 = scmp.ne.s32.totalorder %s59, %s60
    %p74 = scmp.eq.s32.totalorder %s26, 1
    %p75 = por %p73, %p74
    %p77 = scmp.ne.s32.totalorder %s60, %s76
    %p78 = scmp.eq.s32.totalorder %s26, 0
    %p79 = por %p77, %p78
    %s81 = sadd.s32 %s80, 1
    %p84 = scmp.eq.s32.totalorder %s20, 1
    %p85 = scmp.ne.s32.totalorder %s80, %s82
    %p86 = scmp.eq.s32.totalorder %s20, 0
    %p87 = por %p85, %p86
    %p88 = scmp.ne.s32.totalorder %s80, %s82
    %p89 = scmp.eq.s32.totalorder %s25, 1
    %p90 = por %p88, %p89
    %p91 = scmp.ne.s32.totalorder %s82, %s83
    %p92 = scmp.eq.s32.totalorder %s25, 0
    %p93 = por %p91, %p92
    %p94 = scmp.ne.s32.totalorder %s82, %s83
    %p95 = scmp.eq.s32.totalorder %s26, 1
    %p96 = por %p94, %p95
    %p98 = scmp.ne.s32.totalorder %s83, %s97
    %p99 = scmp.eq.s32.totalorder %s26, 0
    %p100 = por %p98, %p99
    %s102 = sadd.s32 %s101, 1
    %p105 = scmp.eq.s32.totalorder %s20, 1
    %p106 = scmp.ne.s32.totalorder %s101, %s103
    %p107 = scmp.eq.s32.totalorder %s20, 0
    %p108 = por %p106, %p107
    %p109 = scmp.ne.s32.totalorder %s101, %s103
    %p110 = scmp.eq.s32.totalorder %s25, 1
    %p111 = por %p109, %p110
    %p112 = scmp.ne.s32.totalorder %s103, %s104
    %p113 = scmp.eq.s32.totalorder %s25, 0
    %p114 = por %p112, %p113
    %p115 = scmp.ne.s32.totalorder %s103, %s104
    %p116 = scmp.eq.s32.totalorder %s26, 1
    %p117 = por %p115, %p116
    %p119 = scmp.ne.s32.totalorder %s104, %s118
    %p120 = scmp.eq.s32.totalorder %s26, 0
    %p121 = por %p119, %p120
    %s123 = sadd.s32 %s122, 1
    %p126 = scmp.eq.s32.totalorder %s20, 1
    %p127 = scmp.ne.s32.totalorder %s122, %s124
    %p128 = scmp.eq.s32.totalorder %s20, 0
    %p129 = por %p127, %p128
    %p130 = scmp.ne.s32.totalorder %s122, %s124
    %p131 = scmp.eq.s32.totalorder %s25, 1
    %p132 = por %p130, %p131
    %p133 = scmp.ne.s32.totalorder %s124, %s125
    %p134 = scmp.eq.s32.totalorder %s25, 0
    %p135 = por %p133, %p134
    %p136 = scmp.ne.s32.totalorder %s124, %s125
    %p137 = scmp.eq.s32.totalorder %s26, 1
    %p138 = por %p136, %p137
    %p140 = scmp.ne.s32.totalorder %s125, %s139
    %p141 = scmp.eq.s32.totalorder %s26, 0
    %p142 = por %p140, %p141
    %s144 = sadd.s32 %s143, 1
    %p147 = scmp.eq.s32.totalorder %s20, 1
    %p148 = scmp.ne.s32.totalorder %s143, %s145
    %p149 = scmp.eq.s32.totalorder %s20, 0
    %p150 = por %p148, %p149
    %p151 = scmp.ne.s32.totalorder %s143, %s145
    %p152 = scmp.eq.s32.totalorder %s25, 1
    %p153 = por %p151, %p152
    %p154 = scmp.ne.s32.totalorder %s145, %s146
    %p155 = scmp.eq.s32.totalorder %s25, 0
    %p156 = por %p154, %p155
    %p157 = scmp.ne.s32.totalorder %s145, %s146
    %p158 = scmp.eq.s32.totalorder %s26, 1
    %p159 = por %p157, %p158
    %p161 = scmp.ne.s32.totalorder %s146, %s160
    %p162 = scmp.eq.s32.totalorder %s26, 0
    %p163 = por %p161, %p162
    %s165 = sadd.s32 %s164, 1
    %p168 = scmp.eq.s32.totalorder %s20, 1
    %p169 = scmp.ne.s32.totalorder %s164, %s166
    %p170 = scmp.eq.s32.totalorder %s20, 0
    %p171 = por %p169, %p170
    %p172 = scmp.ne.s32.totalorder %s164, %s166
    %p173 = scmp.eq.s32.totalorder %s25, 1
    %p174 = por %p172, %p173
    %p175 = scmp.ne.s32.totalorder %s166, %s167
    %p176 = scmp.eq.s32.totalorder %s25, 0
    %p177 = por %p175, %p176
    %p178 = scmp.ne.s32.totalorder %s166, %s167
    %p179 = scmp.eq.s32.totalorder %s26, 1
    %p180 = por %p178, %p179
    %p182 = scmp.ne.s32.totalorder %s167, %s181
    %p183 = scmp.eq.s32.totalorder %s26, 0
    %p184 = por %p182, %p183
    %s186 = sadd.s32 %s185, 1
    %p189 = scmp.eq.s32.totalorder %s20, 1
    %p190 = scmp.ne.s32.totalorder %s185, %s187
    %p191 = scmp.eq.s32.totalorder %s20, 0
    %p192 = por %p190, %p191
    %p193 = scmp.ne.s32.totalorder %s185, %s187
    %p194 = scmp.eq.s32.totalorder %s25, 1
    %p195 = por %p193, %p194
    %p196 = scmp.ne.s32.totalorder %s187, %s188
    %p197 = scmp.eq.s32.totalorder %s25, 0
    %p198 = por %p196, %p197
    %p199 = scmp.ne.s32.totalorder %s187, %s188
    %p200 = scmp.eq.s32.totalorder %s26, 1
    %p201 = por %p199, %p200
    %p203 = scmp.ne.s32.totalorder %s188, %s202
    %p204 = scmp.eq.s32.totalorder %s26, 0
    %p205 = por %p203, %p204
    %s207 = sadd.s32 %s206, 1
    %p210 = scmp.eq.s32.totalorder %s20, 1
    %p211 = scmp.ne.s32.totalorder %s206, %s208
    %p212 = scmp.eq.s32.totalorder %s20, 0
    %p213 = por %p211, %p212
    %p214 = scmp.ne.s32.totalorder %s206, %s208
    %p215 = scmp.eq.s32.totalorder %s25, 1
    %p216 = por %p214, %p215
    %p217 = scmp.ne.s32.totalorder %s208, %s209
    %p218 = scmp.eq.s32.totalorder %s25, 0
    %p219 = por %p217, %p218
    %p220 = scmp.ne.s32.totalorder %s208, %s209
    %p221 = scmp.eq.s32.totalorder %s26, 1
    %p222 = por %p220, %p221
    %p224 = scmp.ne.s32.totalorder %s209, %s223
    %p225 = scmp.eq.s32.totalorder %s26, 0
    %p226 = por %p224, %p225
    %s228 = sadd.s32 %s227, 1
    %p231 = scmp.eq.s32.totalorder %s20, 1
    %p232 = scmp.ne.s32.totalorder %s227, %s229
    %p233 = scmp.eq.s32.totalorder %s20, 0
    %p234 = por %p232, %p233
    %p235 = scmp.ne.s32.totalorder %s227, %s229
    %p236 = scmp.eq.s32.totalorder %s25, 1
    %p237 = por %p235, %p236
    %p238 = scmp.ne.s32.totalorder %s229, %s230
    %p239 = scmp.eq.s32.totalorder %s25, 0
    %p240 = por %p238, %p239
    %p241 = scmp.ne.s32.totalorder %s229, %s230
    %p242 = scmp.eq.s32.totalorder %s26, 1
    %p243 = por %p241, %p242
    %p245 = scmp.ne.s32.totalorder %s230, %s244
    %p246 = scmp.eq.s32.totalorder %s26, 0
    %p247 = por %p245, %p246
    %s249 = sadd.s32 %s248, 1
    %p252 = scmp.eq.s32.totalorder %s20, 1
    %p253 = scmp.ne.s32.totalorder %s248, %s250
    %p254 = scmp.eq.s32.totalorder %s20, 0
    %p255 = por %p253, %p254
    %p256 = scmp.ne.s32.totalorder %s248, %s250
    %p257 = scmp.eq.s32.totalorder %s25, 1
    %p258 = por %p256, %p257
    %p259 = scmp.ne.s32.totalorder %s250, %s251
    %p260 = scmp.eq.s32.totalorder %s25, 0
    %p261 = por %p259, %p260
    %p262 = scmp.ne.s32.totalorder %s250, %s251
    %p263 = scmp.eq.s32.totalorder %s26, 1
    %p264 = por %p262, %p263
    %p266 = scmp.ne.s32.totalorder %s251, %s265
    %p267 = scmp.eq.s32.totalorder %s26, 0
    %p268 = por %p266, %p267
    %s270 = sadd.s32 %s269, 1
    %p273 = scmp.eq.s32.totalorder %s20, 1
    %p274 = scmp.ne.s32.totalorder %s269, %s271
    %p275 = scmp.eq.s32.totalorder %s20, 0
    %p276 = por %p274, %p275
    %p277 = scmp.ne.s32.totalorder %s269, %s271
    %p278 = scmp.eq.s32.totalorder %s25, 1
    %p279 = por %p277, %p278
    %p280 = scmp.ne.s32.totalorder %s271, %s272
    %p281 = scmp.eq.s32.totalorder %s25, 0
    %p282 = por %p280, %p281
    %p283 = scmp.ne.s32.totalorder %s271, %s272
    %p284 = scmp.eq.s32.totalorder %s26, 1
    %p285 = por %p283, %p284
    %p287 = scmp.ne.s32.totalorder %s272, %s286
    %p288 = scmp.eq.s32.totalorder %s26, 0
    %p289 = por %p287, %p288
    %s291 = sadd.s32 %s290, 1
    %p294 = scmp.eq.s32.totalorder %s20, 1
    %p295 = scmp.ne.s32.totalorder %s290, %s292
    %p296 = scmp.eq.s32.totalorder %s20, 0
    %p297 = por %p295, %p296
    %p298 = scmp.ne.s32.totalorder %s290, %s292
    %p299 = scmp.eq.s32.totalorder %s25, 1
    %p300 = por %p298, %p299
    %p301 = scmp.ne.s32.totalorder %s292, %s293
    %p302 = scmp.eq.s32.totalorder %s25, 0
    %p303 = por %p301, %p302
    %p304 = scmp.ne.s32.totalorder %s292, %s293
    %p305 = scmp.eq.s32.totalorder %s26, 1
    %p306 = por %p304, %p305
    %p308 = scmp.ne.s32.totalorder %s293, %s307
    %p309 = scmp.eq.s32.totalorder %s26, 0
    %p310 = por %p308, %p309
    %s312 = sadd.s32 %s311, 1
    %p315 = scmp.eq.s32.totalorder %s20, 1
    %p316 = scmp.ne.s32.totalorder %s311, %s313
    %p317 = scmp.eq.s32.totalorder %s20, 0
    %p318 = por %p316, %p317
    %p319 = scmp.ne.s32.totalorder %s311, %s313
    %p320 = scmp.eq.s32.totalorder %s25, 1
    %p321 = por %p319, %p320
    %p322 = scmp.ne.s32.totalorder %s313, %s314
    %p323 = scmp.eq.s32.totalorder %s25, 0
    %p324 = por %p322, %p323
    %p325 = scmp.ne.s32.totalorder %s313, %s314
    %p326 = scmp.eq.s32.totalorder %s26, 1
    %p327 = por %p325, %p326
    %p329 = scmp.ne.s32.totalorder %s314, %s328
    %p330 = scmp.eq.s32.totalorder %s26, 0
    %p331 = por %p329, %p330
    %s332 = ssub.s32 %s20, %s27
    %p333 = scmp.eq.s32.totalorder %s332, 0
    %s335 = sadd.s32 %s334, 1
    %s336 = scalar_select %p333, %s334, %s335
    %p339 = pneg %p333
    %p340 = scmp.eq.s32.totalorder %s20, 1
    %p341 = por %p339, %p340
    %p342 = scmp.ne.s32.totalorder %s334, %s337
    %p343 = scmp.eq.s32.totalorder %s20, 0
    %p344 = por %p342, %p343
    %p345 = scmp.ne.s32.totalorder %s334, %s337
    %p346 = scmp.eq.s32.totalorder %s25, 1
    %p347 = por %p345, %p346
    %p348 = scmp.ne.s32.totalorder %s337, %s338
    %p349 = scmp.eq.s32.totalorder %s25, 0
    %p350 = por %p348, %p349
    %p351 = scmp.ne.s32.totalorder %s337, %s338
    %p352 = scmp.eq.s32.totalorder %s26, 1
    %p353 = por %p351, %p352
    %p355 = scmp.ne.s32.totalorder %s338, %s354
    %p356 = scmp.eq.s32.totalorder %s26, 0
    %p357 = por %p355, %p356
    %p358 = scmp.le.s32.totalorder 1, %s20
    %p359 = scmp.lt.s32.totalorder %s20, 3
    %p360 = pnand %p358, %p359
    %p361 = pneg %p360
    // Predicated region
    $region9: #{prosody_predictor_forward.1} parent=5 // pred_check
      _
    $region10: #{prosody_predictor_forward.1} parent=5 // pred_check_branch
      %363 = sbr.rel (%p360) target = $region12
    $region11: #{prosody_predictor_forward.1} parent=5 // pred_region
      %s364 = ssub.s32 %s20, 1
      // Predicated region
      $region13: #{prosody_predictor_forward.1} parent=11 // pred_check
        %p365 = pneg %p93
      $region14: #{prosody_predictor_forward.1} parent=11 // pred_check_branch
        %367 = sbr.rel (%p365) target = $region16
      $region15: #{prosody_predictor_forward.1} parent=11 // pred_region
        _
      $region16: #{prosody_predictor_forward.1} parent=11 // pred_fallthru
        _
      // Predicated region
      $region17: #{prosody_predictor_forward.1} parent=11 // pred_check
        %p368 = pneg %p114
      $region18: #{prosody_predictor_forward.1} parent=11 // pred_check_branch
        %370 = sbr.rel (%p368) target = $region20
      $region19: #{prosody_predictor_forward.1} parent=11 // pred_region
        _
      $region20: #{prosody_predictor_forward.1} parent=11 // pred_fallthru
        _
      // Predicated region
      $region21: #{prosody_predictor_forward.1} parent=11 // pred_check
        %p371 = pneg %p135
      $region22: #{prosody_predictor_forward.1} parent=11 // pred_check_branch
        %373 = sbr.rel (%p371) target = $region24
      $region23: #{prosody_predictor_forward.1} parent=11 // pred_region
        _
      $region24: #{prosody_predictor_forward.1} parent=11 // pred_fallthru
        _
      // Predicated region
      $region25: #{prosody_predictor_forward.1} parent=11 // pred_check
        %p374 = pneg %p156
      $region26: #{prosody_predictor_forward.1} parent=11 // pred_check_branch
        %376 = sbr.rel (%p374) target = $region28
      $region27: #{prosody_predictor_forward.1} parent=11 // pred_region
        _
      $region28: #{prosody_predictor_forward.1} parent=11 // pred_fallthru
        _
      // Predicated region
      $region29: #{prosody_predictor_forward.1} parent=11 // pred_check
        %p377 = pneg %p177
      $region30: #{prosody_predictor_forward.1} parent=11 // pred_check_branch
        %379 = sbr.rel (%p377) target = $region32
      $region31: #{prosody_predictor_forward.1} parent=11 // pred_region
        _
      $region32: #{prosody_predictor_forward.1} parent=11 // pred_fallthru
        _
      // Predicated region
      $region33: #{prosody_predictor_forward.1} parent=11 // pred_check
        %p380 = pneg %p198
      $region34: #{prosody_predictor_forward.1} parent=11 // pred_check_branch
        %382 = sbr.rel (%p380) target = $region36
      $region35: #{prosody_predictor_forward.1} parent=11 // pred_region
        _
      $region36: #{prosody_predictor_forward.1} parent=11 // pred_fallthru
        _
      // Predicated region
      $region37: #{prosody_predictor_forward.1} parent=11 // pred_check
        %p383 = pneg %p219
      $region38: #{prosody_predictor_forward.1} parent=11 // pred_check_branch
        %385 = sbr.rel (%p383) target = $region40
      $region39: #{prosody_predictor_forward.1} parent=11 // pred_region
        _
      $region40: #{prosody_predictor_forward.1} parent=11 // pred_fallthru
        _
      // Predicated region
      $region41: #{prosody_predictor_forward.1} parent=11 // pred_check
        %p386 = pneg %p240
      $region42: #{prosody_predictor_forward.1} parent=11 // pred_check_branch
        %388 = sbr.rel (%p386) target = $region44
      $region43: #{prosody_predictor_forward.1} parent=11 // pred_region
        _
      $region44: #{prosody_predictor_forward.1} parent=11 // pred_fallthru
        _
      // Predicated region
      $region45: #{prosody_predictor_forward.1} parent=11 // pred_check
        %p389 = pneg %p261
      $region46: #{prosody_predictor_forward.1} parent=11 // pred_check_branch
        %391 = sbr.rel (%p389) target = $region48
      $region47: #{prosody_predictor_forward.1} parent=11 // pred_region
        _
      $region48: #{prosody_predictor_forward.1} parent=11 // pred_fallthru
        _
      // Predicated region
      $region49: #{prosody_predictor_forward.1} parent=11 // pred_check
        %p392 = pneg %p282
      $region50: #{prosody_predictor_forward.1} parent=11 // pred_check_branch
        %394 = sbr.rel (%p392) target = $region52
      $region51: #{prosody_predictor_forward.1} parent=11 // pred_region
        _
      $region52: #{prosody_predictor_forward.1} parent=11 // pred_fallthru
        _
      // Predicated region
      $region53: #{prosody_predictor_forward.1} parent=11 // pred_check
        %p395 = pneg %p303
      $region54: #{prosody_predictor_forward.1} parent=11 // pred_check_branch
        %397 = sbr.rel (%p395) target = $region56
      $region55: #{prosody_predictor_forward.1} parent=11 // pred_region
        _
      $region56: #{prosody_predictor_forward.1} parent=11 // pred_fallthru
        _
      // Predicated region
      $region57: #{prosody_predictor_forward.1} parent=11 // pred_check
        %p398 = pneg %p324
      $region58: #{prosody_predictor_forward.1} parent=11 // pred_check_branch
        %400 = sbr.rel (%p398) target = $region60
      $region59: #{prosody_predictor_forward.1} parent=11 // pred_region
        _
      $region60: #{prosody_predictor_forward.1} parent=11 // pred_fallthru
        _
    $region12: #{prosody_predictor_forward.1} parent=5 // pred_fallthru
      _
    %p401 = scmp.lt.s32.totalorder %s20, 2
    // Predicated region
    $region61: #{prosody_predictor_forward.1} parent=5 // pred_check
      %p402 = pneg %p401
    $region62: #{prosody_predictor_forward.1} parent=5 // pred_check_branch
      %404 = sbr.rel (%p402) target = $region64
    $region63: #{prosody_predictor_forward.1} parent=5 // pred_region
      // Predicated region
      $region65: #{prosody_predictor_forward.1} parent=63 // pred_check
        %p405 = pneg %p40
      $region66: #{prosody_predictor_forward.1} parent=63 // pred_check_branch
        %407 = sbr.rel (%p405) target = $region68
      $region67: #{prosody_predictor_forward.1} parent=63 // pred_region
        %p408 = scmp.lt.s32.totalorder %s20, 1
        %s409 = scalar_select %p408, %s20, 1
        %s410 = smul.addr %s409, 2
        %s411 = smul.addr %s410, 8
        %s412 = scalar_lea.vmem %s0, %s411
      $region68: #{prosody_predictor_forward.1} parent=63 // pred_fallthru
        _
      // Predicated region
      $region69: #{prosody_predictor_forward.1} parent=63 // pred_check
        %p413 = pneg %p66
      $region70: #{prosody_predictor_forward.1} parent=63 // pred_check_branch
        %415 = sbr.rel (%p413) target = $region72
      $region71: #{prosody_predictor_forward.1} parent=63 // pred_region
        %p416 = scmp.lt.s32.totalorder %s20, 1
        %s417 = scalar_select %p416, %s20, 1
        %s418 = scalar_lea.vmem %s1, %s417
      $region72: #{prosody_predictor_forward.1} parent=63 // pred_fallthru
        _
    $region64: #{prosody_predictor_forward.1} parent=5 // pred_fallthru
      _
    %p419 = scmp.le.s32.totalorder 1, %s20
    %p420 = scmp.lt.s32.totalorder %s20, 3
    %p421 = pnand %p419, %p420
    %p422 = pneg %p421
    // Predicated region
    $region73: #{prosody_predictor_forward.1} parent=5 // pred_check
      _
    $region74: #{prosody_predictor_forward.1} parent=5 // pred_check_branch
      %424 = sbr.rel (%p421) target = $region76
    $region75: #{prosody_predictor_forward.1} parent=5 // pred_region
      %s425 = ssub.s32 %s20, 1
      %p426 = scmp.lt.s32.totalorder %s25, 1
      %s427 = scalar_select %p426, %s25, 1
      %s428 = smul.addr %s427, 2
      %s429 = smul.addr %s428, 8
      %s430 = scalar_lea.vmem %s0, %s429
      %p431 = pneg %p46
      %p432 = pneg %p43
      %p433 = scmp.lt.s32.totalorder %s25, 1
      %s434 = scalar_select %p433, %s25, 1
      %s435 = scalar_lea.vmem %s1, %s434
      %p436 = pneg %p72
      %p437 = pneg %p69
      %p438 = pneg %p93
      %p439 = pneg %p90
      %p440 = pneg %p114
      %p441 = pneg %p111
      %p442 = pneg %p135
      %p443 = pneg %p132
      %p444 = pneg %p156
      %p445 = pneg %p153
      %p446 = pneg %p177
      %p447 = pneg %p174
      %p448 = pneg %p198
      %p449 = pneg %p195
      %p450 = pneg %p219
      %p451 = pneg %p216
      %p452 = pneg %p240
      %p453 = pneg %p237
      %p454 = pneg %p261
      %p455 = pneg %p258
      %p456 = pneg %p282
      %p457 = pneg %p279
      %p458 = pneg %p303
      %p459 = pneg %p300
      %p460 = pneg %p324
      %p461 = pneg %p321
      %p462 = pneg %p350
      %p463 = pneg %p347
      %p464 = scmp.lt.s32.totalorder %s25, 1
      %s465 = scalar_select %p464, %s25, 1
      %s466 = smul.addr %s465, 2
      %s467 = smul.addr %s466, 8
      %s468 = scalar_lea.vmem %s14, %s467
      %p469 = scmp.lt.s32.totalorder %s25, 1
      %s470 = scalar_select %p469, %s25, 1
      %s471 = smul.addr %s470, 2
      %s472 = smul.addr %s471, 8
      %s473 = scalar_lea.vmem %s0, %s472
      %p474 = scmp.lt.s32.totalorder %s25, 1
      %s475 = scalar_select %p474, %s25, 1
      %s476 = scalar_lea.vmem %s1, %s475
      %p477 = scmp.lt.s32.totalorder %s25, 1
      %s478 = scalar_select %p477, %s25, 1
      %s479 = smul.addr %s478, 2
      %s480 = smul.addr %s479, 8
      %s481 = scalar_lea.vmem %s14, %s480
      %v482 = vld [vmem:[%s473] sm:$0xff]
      %v483 = vld [vmem:[%s473 + $0x8] sm:$0xff]
      %v484 = vld [vmem:[%s4] sm:$0x1]
      %v485 = vld [vmem:[%s3] sm:$0xff]
      %v486 = vld [vmem:[%s3 + $0x8] sm:$0xff]
      %v487 = vld [vmem:[%s3 + $0x10] sm:$0xff]
      %v488 = vld [vmem:[%s3 + $0x18] sm:$0xff]
      %v489 = vld [vmem:[%s3 + $0x20] sm:$0xff]
      %v490 = vld [vmem:[%s3 + $0x28] sm:$0xff]
      %v491 = vld [vmem:[%s3 + $0x30] sm:$0xff]
      %v492 = vld [vmem:[%s3 + $0x38] sm:$0xff]
      %v494 = vlaneseq
      %v495 = vshrl.u32 %v494, 7
      %v496 = vsub.s32 0, %v495
      %v497 = vrot.slane %v484, %v496
      %vm499 = vcmask 523264
      %v501 = vsel %vm499, %v482, 0
      %503 = vmatprep.subr.mxu0 0.0
      %504 = vmatpush1.msra.mxu0 0.0
      %505 = vmatprep.subr.mxu0 0.0
      %506 = vmatpush1.msra.mxu0 0.0
      %507 = vmatprep.subr.mxu0 0.0
      %508 = vmatpush1.msra.mxu0 0.0
      %509 = vmatprep.subr.mxu0 0.0
      %510 = vmatpush1.msra.mxu0 0.0
      %511 = vmatprep.subr.mxu0 0.0
      %512 = vmatpush1.msra.mxu0 0.0
      %513 = vmatprep.subr.mxu0 0.0
      %514 = vmatpush1.msra.mxu0 0.0
      %515 = vmatprep.subr.mxu0 0.0
      %516 = vmatpush1.msra.mxu0 0.0
      %517 = vmatprep.subr.mxu0 0.0
      %518 = vmatpush1.msra.mxu0 0.0
      %519 = vmatprep.subr.mxu0 0.0
      %520 = vmatpush1.msra.mxu0 %v492
      %521 = vmatprep.subr.mxu0 0.0
      %522 = vmatpush1.msra.mxu0 %v491
      %523 = vmatprep.subr.mxu0 0.0
      %524 = vmatpush1.msra.mxu0 %v490
      %525 = vmatprep.subr.mxu0 0.0
      %526 = vmatpush1.msra.mxu0 %v489
      %527 = vmatprep.subr.mxu0 0.0
      %528 = vmatpush1.msra.mxu0 %v488
      %529 = vmatprep.subr.mxu0 0.0
      %530 = vmatpush1.msra.mxu0 %v487
      %531 = vmatprep.subr.mxu0 0.0
      %532 = vmatpush1.msra.mxu0 %v486
      %533 = vmatprep.subr.mxu0 0.0
      %534 = vmatpush1.msra.mxu0 %v485
      %535 = vmatprep.subr.mxu0 0.0
      %536 = vmatpush2.msra.mxu0 0.0
      %537 = vmatprep.subr.mxu0 0.0
      %538 = vmatpush2.msra.mxu0 0.0
      %539 = vmatprep.subr.mxu0 0.0
      %540 = vmatpush2.msra.mxu0 0.0
      %541 = vmatprep.subr.mxu0 0.0
      %542 = vmatpush2.msra.mxu0 0.0
      %543 = vmatprep.subr.mxu0 0.0
      %544 = vmatpush2.msra.mxu0 0.0
      %545 = vmatprep.subr.mxu0 0.0
      %546 = vmatpush2.msra.mxu0 0.0
      %547 = vmatprep.subr.mxu0 0.0
      %548 = vmatpush2.msra.mxu0 0.0
      %549 = vmatprep.subr.mxu0 0.0
      %550 = vmatpush2.msra.mxu0 0.0
      %551 = vmatprep.subr.mxu0 0.0
      %552 = vmatpush2.msra.mxu0 0.0
      %553 = vmatprep.subr.mxu0 0.0
      %554 = vmatpush2.msra.mxu0 0.0
      %555 = vmatprep.subr.mxu0 0.0
      %556 = vmatpush2.msra.mxu0 0.0
      %557 = vmatprep.subr.mxu0 0.0
      %558 = vmatpush2.msra.mxu0 0.0
      %559 = vmatprep.subr.mxu0 0.0
      %560 = vmatpush2.msra.mxu0 0.0
      %561 = vmatprep.subr.mxu0 0.0
      %562 = vmatpush2.msra.mxu0 0.0
      %563 = vmatprep.subr.mxu0 0.0
      %564 = vmatpush2.msra.mxu0 0.0
      %565 = vmatprep.subr.mxu0 0.0
      %566 = vmatpush2.msra.mxu0 0.0
      %567 = vmatprep.mubr.f32.mxu0 0.0
      %568 = vmatmul.mubr.f32.gmra.mxu0 %v501
      %v569 = vpop.f32.mrf.mxu0
      %v570 = vadd.f32 %v497, %v569
      %v571 = vpop.f32.mrf.mxu0
      %572 = vdwg.mxu0
      %s573 = scalar_lea.vmem %s3, 64
      %v574 = vld [vmem:[%s573] sm:$0xff]
      %v575 = vld [vmem:[%s573 + $0x8] sm:$0xff]
      %v576 = vld [vmem:[%s573 + $0x10] sm:$0xff]
      %v577 = vld [vmem:[%s573 + $0x18] sm:$0xff]
      %v578 = vld [vmem:[%s573 + $0x20] sm:$0xff]
      %v579 = vld [vmem:[%s573 + $0x28] sm:$0xff]
      %v580 = vld [vmem:[%s573 + $0x30] sm:$0xff]
      %v581 = vld [vmem:[%s573 + $0x38] sm:$0xff]
      %v583 = vsel %vm499, %v483, 0
      %585 = vmatprep.subr.mxu0 0.0
      %586 = vmatpush1.msra.mxu0 0.0
      %587 = vmatprep.subr.mxu0 0.0
      %588 = vmatpush1.msra.mxu0 0.0
      %589 = vmatprep.subr.mxu0 0.0
      %590 = vmatpush1.msra.mxu0 0.0
      %591 = vmatprep.subr.mxu0 0.0
      %592 = vmatpush1.msra.mxu0 0.0
      %593 = vmatprep.subr.mxu0 0.0
      %594 = vmatpush1.msra.mxu0 0.0
      %595 = vmatprep.subr.mxu0 0.0
      %596 = vmatpush1.msra.mxu0 0.0
      %597 = vmatprep.subr.mxu0 0.0
      %598 = vmatpush1.msra.mxu0 0.0
      %599 = vmatprep.subr.mxu0 0.0
      %600 = vmatpush1.msra.mxu0 0.0
      %601 = vmatprep.subr.mxu0 0.0
      %602 = vmatpush1.msra.mxu0 %v581
      %603 = vmatprep.subr.mxu0 0.0
      %604 = vmatpush1.msra.mxu0 %v580
      %605 = vmatprep.subr.mxu0 0.0
      %606 = vmatpush1.msra.mxu0 %v579
      %607 = vmatprep.subr.mxu0 0.0
      %608 = vmatpush1.msra.mxu0 %v578
      %609 = vmatprep.subr.mxu0 0.0
      %610 = vmatpush1.msra.mxu0 %v577
      %611 = vmatprep.subr.mxu0 0.0
      %612 = vmatpush1.msra.mxu0 %v576
      %613 = vmatprep.subr.mxu0 0.0
      %614 = vmatpush1.msra.mxu0 %v575
      %615 = vmatprep.subr.mxu0 0.0
      %616 = vmatpush1.msra.mxu0 %v574
      %617 = vmatprep.subr.mxu0 0.0
      %618 = vmatpush2.msra.mxu0 0.0
      %619 = vmatprep.subr.mxu0 0.0
      %620 = vmatpush2.msra.mxu0 0.0
      %621 = vmatprep.subr.mxu0 0.0
      %622 = vmatpush2.msra.mxu0 0.0
      %623 = vmatprep.subr.mxu0 0.0
      %624 = vmatpush2.msra.mxu0 0.0
      %625 = vmatprep.subr.mxu0 0.0
      %626 = vmatpush2.msra.mxu0 0.0
      %627 = vmatprep.subr.mxu0 0.0
      %628 = vmatpush2.msra.mxu0 0.0
      %629 = vmatprep.subr.mxu0 0.0
      %630 = vmatpush2.msra.mxu0 0.0
      %631 = vmatprep.subr.mxu0 0.0
      %632 = vmatpush2.msra.mxu0 0.0
      %633 = vmatprep.subr.mxu0 0.0
      %634 = vmatpush2.msra.mxu0 0.0
      %635 = vmatprep.subr.mxu0 0.0
      %636 = vmatpush2.msra.mxu0 0.0
      %637 = vmatprep.subr.mxu0 0.0
      %638 = vmatpush2.msra.mxu0 0.0
      %639 = vmatprep.subr.mxu0 0.0
      %640 = vmatpush2.msra.mxu0 0.0
      %641 = vmatprep.subr.mxu0 0.0
      %642 = vmatpush2.msra.mxu0 0.0
      %643 = vmatprep.subr.mxu0 0.0
      %644 = vmatpush2.msra.mxu0 0.0
      %645 = vmatprep.subr.mxu0 0.0
      %646 = vmatpush2.msra.mxu0 0.0
      %647 = vmatprep.subr.mxu0 0.0
      %648 = vmatpush2.msra.mxu0 0.0
      %649 = vmatprep.mubr.f32.mxu0 0.0
      %650 = vmatmul.mubr.f32.gmra.mxu0 %v583
      %v651 = vpop.f32.mrf.mxu0
      %v652 = vadd.f32 %v497, %v651
      %v653 = vpop.f32.mrf.mxu0
      %654 = vdwg.mxu0
      %v655 = vld [vmem:[%s2] sm:$0xff]
      %v656 = vld [vmem:[%s2 + $0x8] sm:$0xff]
      %v657 = vadd.f32 %v570, %v655
      %v658 = vadd.f32 %v652, %v656
      %v659 = vld [vmem:[%s476] sm:$0x1]
      %vm660 = vcmp.gt.f32.partialorder %v659, 0.0
      %v661 = vld [vmem:[%s9] sm:$0xf]
      %vm662 = vcmask 261120
      %v663 = vsel %vm662, %v657, 0.0
      %664 = vadd.xlane.f32.xlu0 %v663
      %v665 = vpop.xlane.xlu0 %664
      %v666 = vsel %vm662, %v658, 0.0
      %667 = vadd.xlane.f32.xlu0 %v666
      %v668 = vpop.xlane.xlu0 %667
      %v669 = vrcp.pop 32.0
      %v670 = vmul.f32 %v665, %v669
      %v671 = vmul.f32 %v668, %v669
      %v672 = vsub.f32 %v657, %v670
      %v673 = vsub.f32 %v658, %v671
      %v674 = vmul.f32 %v672, %v672
      %v675 = vmul.f32 %v673, %v673
      %v676 = vsel %vm662, %v674, 0.0
      %677 = vadd.xlane.f32.xlu0 %v676
      %v678 = vpop.xlane.xlu0 %677
      %v679 = vsel %vm662, %v675, 0.0
      %680 = vadd.xlane.f32.xlu0 %v679
      %v681 = vpop.xlane.xlu0 %680
      %v682 = vmul.f32 %v678, %v669
      %v683 = vmul.f32 %v681, %v669
      %v684 = vadd.f32 %v682, 1e-12
      %v685 = vadd.f32 %v683, 1e-12
      %v686 = vrsqrt.pop %v684
      %v687 = vrsqrt.pop %v685
      %v688 = vmul.f32 %v672, %v686
      %v689 = vmul.f32 %v673, %v687
      %v690 = vlaneseq
      %v691 = vshrl.u32 %v690, 7
      %v692 = vsub.s32 0, %v691
      %v693 = vrot.slane %v661, %v692
      %v694 = vmul.f32 %v688, %v693
      %v695 = vmul.f32 %v689, %v693
      %v696 = vlaneseq
      %v697 = vshrl.u32 %v696, 7
      %v698 = vsub.s32 1, %v697
      %v699 = vrot.slane %v661, %v698
      %v700 = vadd.f32 %v694, %v699
      %v701 = vadd.f32 %v695, %v699
      %v702 = vld [vmem:[%s5] sm:$0xff]
      %v703 = vld [vmem:[%s5 + $0x8] sm:$0xff]
      %v704 = vld [vmem:[%s5 + $0x10] sm:$0xff]
      %v705 = vld [vmem:[%s5 + $0x18] sm:$0xff]
      %v706 = vld [vmem:[%s6] sm:$0x1]
      %v708 = vlaneseq
      %v709 = vshrl.u32 %v708, 7
      %v710 = vsub.s32 0, %v709
      %v711 = vrot.slane %v706, %v710
      %v714 = vsel %vm662, %v700, 0
      %v717 = vsel %vm662, %v701, 0
      %719 = vmatprep.subr.mxu0 0.0
      %720 = vmatpush1.msra.mxu0 0.0
      %721 = vmatprep.subr.mxu0 0.0
      %722 = vmatpush1.msra.mxu0 0.0
      %723 = vmatprep.subr.mxu0 0.0
      %724 = vmatpush1.msra.mxu0 0.0
      %725 = vmatprep.subr.mxu0 0.0
      %726 = vmatpush1.msra.mxu0 0.0
      %727 = vmatprep.subr.mxu0 0.0
      %728 = vmatpush1.msra.mxu0 0.0
      %729 = vmatprep.subr.mxu0 0.0
      %730 = vmatpush1.msra.mxu0 0.0
      %731 = vmatprep.subr.mxu0 0.0
      %732 = vmatpush1.msra.mxu0 0.0
      %733 = vmatprep.subr.mxu0 0.0
      %734 = vmatpush1.msra.mxu0 0.0
      %735 = vmatprep.subr.mxu0 0.0
      %736 = vmatpush1.msra.mxu0 0.0
      %737 = vmatprep.subr.mxu0 0.0
      %738 = vmatpush1.msra.mxu0 0.0
      %739 = vmatprep.subr.mxu0 0.0
      %740 = vmatpush1.msra.mxu0 0.0
      %741 = vmatprep.subr.mxu0 0.0
      %742 = vmatpush1.msra.mxu0 0.0
      %743 = vmatprep.subr.mxu0 0.0
      %744 = vmatpush1.msra.mxu0 %v705
      %745 = vmatprep.subr.mxu0 0.0
      %746 = vmatpush1.msra.mxu0 %v704
      %747 = vmatprep.subr.mxu0 0.0
      %748 = vmatpush1.msra.mxu0 %v703
      %749 = vmatprep.subr.mxu0 0.0
      %750 = vmatpush1.msra.mxu0 %v702
      %751 = vmatprep.subr.mxu0 0.0
      %752 = vmatpush2.msra.mxu0 0.0
      %753 = vmatprep.subr.mxu0 0.0
      %754 = vmatpush2.msra.mxu0 0.0
      %755 = vmatprep.subr.mxu0 0.0
      %756 = vmatpush2.msra.mxu0 0.0
      %757 = vmatprep.subr.mxu0 0.0
      %758 = vmatpush2.msra.mxu0 0.0
      %759 = vmatprep.subr.mxu0 0.0
      %760 = vmatpush2.msra.mxu0 0.0
      %761 = vmatprep.subr.mxu0 0.0
      %762 = vmatpush2.msra.mxu0 0.0
      %763 = vmatprep.subr.mxu0 0.0
      %764 = vmatpush2.msra.mxu0 0.0
      %765 = vmatprep.subr.mxu0 0.0
      %766 = vmatpush2.msra.mxu0 0.0
      %767 = vmatprep.subr.mxu0 0.0
      %768 = vmatpush2.msra.mxu0 0.0
      %769 = vmatprep.subr.mxu0 0.0
      %770 = vmatpush2.msra.mxu0 0.0
      %771 = vmatprep.subr.mxu0 0.0
      %772 = vmatpush2.msra.mxu0 0.0
      %773 = vmatprep.subr.mxu0 0.0
      %774 = vmatpush2.msra.mxu0 0.0
      %775 = vmatprep.subr.mxu0 0.0
      %776 = vmatpush2.msra.mxu0 0.0
      %777 = vmatprep.subr.mxu0 0.0
      %778 = vmatpush2.msra.mxu0 0.0
      %779 = vmatprep.subr.mxu0 0.0
      %780 = vmatpush2.msra.mxu0 0.0
      %781 = vmatprep.subr.mxu0 0.0
      %782 = vmatpush2.msra.mxu0 0.0
      %783 = vmatprep.mubr.f32.mxu0 0.0
      %784 = vmatmul.mubr.f32.gmra.mxu0 %v714
      %v785 = vpop.f32.mrf.mxu0
      %v786 = vadd.f32 %v711, %v785
      %v787 = vpop.f32.mrf.mxu0
      %788 = vmatprep.mubr.f32.mxu0 0.0
      %789 = vmatmul.mubr.f32.gmra.mxu0 %v717
      %v790 = vpop.f32.mrf.mxu0
      %v791 = vadd.f32 %v711, %v790
      %v792 = vpop.f32.mrf.mxu0
      %793 = vdwg.mxu0
      %796 = vrot.lane.b32.xlu0 %v786, 112
      %v797 = vpop.permute.xlu0 %796
      %798 = vrot.lane.b32.xlu0 %v791, 112
      %v799 = vpop.permute.xlu0 %798
      %800 = vrot.lane.b32.xlu0 %v786, 96
      %v801 = vpop.permute.xlu0 %800
      %802 = vrot.lane.b32.xlu0 %v791, 96
      %v803 = vpop.permute.xlu0 %802
      %vm804 = vcmask 130048
      %v805 = vsel %vm804, %v786, 0
      %v807 = vsel %vm804, %v791, 0
      %v809 = vsel %vm804, %v801, 0
      %v811 = vsel %vm804, %v803, 0
      %813 = vmatprep.subr.mxu0 0.0
      %814 = vmatpush1.xpose.msra.mxu0 0.0
      %815 = vmatprep.subr.mxu0 0.0
      %816 = vmatpush1.xpose.msra.mxu0 0.0
      %817 = vmatprep.subr.mxu0 0.0
      %818 = vmatpush1.xpose.msra.mxu0 0.0
      %819 = vmatprep.subr.mxu0 0.0
      %820 = vmatpush1.xpose.msra.mxu0 0.0
      %821 = vmatprep.subr.mxu0 0.0
      %822 = vmatpush1.xpose.msra.mxu0 0.0
      %823 = vmatprep.subr.mxu0 0.0
      %824 = vmatpush1.xpose.msra.mxu0 0.0
      %825 = vmatprep.subr.mxu0 0.0
      %826 = vmatpush1.xpose.msra.mxu0 0.0
      %827 = vmatprep.subr.mxu0 0.0
      %828 = vmatpush1.xpose.msra.mxu0 0.0
      %829 = vmatprep.subr.mxu0 0.0
      %830 = vmatpush1.xpose.msra.mxu0 0.0
      %831 = vmatprep.subr.mxu0 0.0
      %832 = vmatpush1.xpose.msra.mxu0 0.0
      %833 = vmatprep.subr.mxu0 0.0
      %834 = vmatpush1.xpose.msra.mxu0 0.0
      %835 = vmatprep.subr.mxu0 0.0
      %836 = vmatpush1.xpose.msra.mxu0 0.0
      %837 = vmatprep.subr.mxu0 0.0
      %838 = vmatpush1.xpose.msra.mxu0 0.0
      %839 = vmatprep.subr.mxu0 0.0
      %840 = vmatpush1.xpose.msra.mxu0 0.0
      %841 = vmatprep.subr.mxu0 0.0
      %842 = vmatpush1.xpose.msra.mxu0 %v811
      %843 = vmatprep.subr.mxu0 0.0
      %844 = vmatpush1.xpose.msra.mxu0 %v809
      %845 = vmatprep.subr.mxu0 0.0
      %846 = vmatpush2.xpose.msra.mxu0 0.0
      %847 = vmatprep.subr.mxu0 0.0
      %848 = vmatpush2.xpose.msra.mxu0 0.0
      %849 = vmatprep.subr.mxu0 0.0
      %850 = vmatpush2.xpose.msra.mxu0 0.0
      %851 = vmatprep.subr.mxu0 0.0
      %852 = vmatpush2.xpose.msra.mxu0 0.0
      %853 = vmatprep.subr.mxu0 0.0
      %854 = vmatpush2.xpose.msra.mxu0 0.0
      %855 = vmatprep.subr.mxu0 0.0
      %856 = vmatpush2.xpose.msra.mxu0 0.0
      %857 = vmatprep.subr.mxu0 0.0
      %858 = vmatpush2.xpose.msra.mxu0 0.0
      %859 = vmatprep.subr.mxu0 0.0
      %860 = vmatpush2.xpose.msra.mxu0 0.0
      %861 = vmatprep.subr.mxu0 0.0
      %862 = vmatpush2.xpose.msra.mxu0 0.0
      %863 = vmatprep.subr.mxu0 0.0
      %864 = vmatpush2.xpose.msra.mxu0 0.0
      %865 = vmatprep.subr.mxu0 0.0
      %866 = vmatpush2.xpose.msra.mxu0 0.0
      %867 = vmatprep.subr.mxu0 0.0
      %868 = vmatpush2.xpose.msra.mxu0 0.0
      %869 = vmatprep.subr.mxu0 0.0
      %870 = vmatpush2.xpose.msra.mxu0 0.0
      %871 = vmatprep.subr.mxu0 0.0
      %872 = vmatpush2.xpose.msra.mxu0 0.0
      %873 = vmatprep.subr.mxu0 0.0
      %874 = vmatpush2.xpose.msra.mxu0 0.0
      %875 = vmatprep.subr.mxu0 0.0
      %876 = vmatpush2.xpose.msra.mxu0 0.0
      %877 = vmatprep.mubr.f32.mxu0 0.0
      %878 = vmatmul.mubr.f32.gmra.mxu0 %v805
      %v879 = vpop.f32.mrf.mxu0
      %v880 = vadd.f32 0.0, %v879
      %v881 = vpop.f32.mrf.mxu0
      %882 = vmatprep.mubr.f32.mxu0 0.0
      %883 = vmatmul.mubr.f32.gmra.mxu0 %v807
      %v884 = vpop.f32.mrf.mxu0
      %v885 = vadd.f32 0.0, %v884
      %v886 = vpop.f32.mrf.mxu0
      %887 = vdwg.mxu0
      %888 = vrot.lane.b32.xlu0 %v797, 96
      %v889 = vpop.permute.xlu0 %888
      %890 = vrot.lane.b32.xlu0 %v799, 96
      %v891 = vpop.permute.xlu0 %890
      %v892 = vsel %vm804, %v797, 0
      %v894 = vsel %vm804, %v799, 0
      %v896 = vsel %vm804, %v889, 0
      %v898 = vsel %vm804, %v891, 0
      %900 = vmatprep.subr.mxu0 0.0
      %901 = vmatpush1.xpose.msra.mxu0 0.0
      %902 = vmatprep.subr.mxu0 0.0
      %903 = vmatpush1.xpose.msra.mxu0 0.0
      %904 = vmatprep.subr.mxu0 0.0
      %905 = vmatpush1.xpose.msra.mxu0 0.0
      %906 = vmatprep.subr.mxu0 0.0
      %907 = vmatpush1.xpose.msra.mxu0 0.0
      %908 = vmatprep.subr.mxu0 0.0
      %909 = vmatpush1.xpose.msra.mxu0 0.0
      %910 = vmatprep.subr.mxu0 0.0
      %911 = vmatpush1.xpose.msra.mxu0 0.0
      %912 = vmatprep.subr.mxu0 0.0
      %913 = vmatpush1.xpose.msra.mxu0 0.0
      %914 = vmatprep.subr.mxu0 0.0
      %915 = vmatpush1.xpose.msra.mxu0 0.0
      %916 = vmatprep.subr.mxu0 0.0
      %917 = vmatpush1.xpose.msra.mxu0 0.0
      %918 = vmatprep.subr.mxu0 0.0
      %919 = vmatpush1.xpose.msra.mxu0 0.0
      %920 = vmatprep.subr.mxu0 0.0
      %921 = vmatpush1.xpose.msra.mxu0 0.0
      %922 = vmatprep.subr.mxu0 0.0
      %923 = vmatpush1.xpose.msra.mxu0 0.0
      %924 = vmatprep.subr.mxu0 0.0
      %925 = vmatpush1.xpose.msra.mxu0 0.0
      %926 = vmatprep.subr.mxu0 0.0
      %927 = vmatpush1.xpose.msra.mxu0 0.0
      %928 = vmatprep.subr.mxu0 0.0
      %929 = vmatpush1.xpose.msra.mxu0 %v898
      %930 = vmatprep.subr.mxu0 0.0
      %931 = vmatpush1.xpose.msra.mxu0 %v896
      %932 = vmatprep.subr.mxu0 0.0
      %933 = vmatpush2.xpose.msra.mxu0 0.0
      %934 = vmatprep.subr.mxu0 0.0
      %935 = vmatpush2.xpose.msra.mxu0 0.0
      %936 = vmatprep.subr.mxu0 0.0
      %937 = vmatpush2.xpose.msra.mxu0 0.0
      %938 = vmatprep.subr.mxu0 0.0
      %939 = vmatpush2.xpose.msra.mxu0 0.0
      %940 = vmatprep.subr.mxu0 0.0
      %941 = vmatpush2.xpose.msra.mxu0 0.0
      %942 = vmatprep.subr.mxu0 0.0
      %943 = vmatpush2.xpose.msra.mxu0 0.0
      %944 = vmatprep.subr.mxu0 0.0
      %945 = vmatpush2.xpose.msra.mxu0 0.0
      %946 = vmatprep.subr.mxu0 0.0
      %947 = vmatpush2.xpose.msra.mxu0 0.0
      %948 = vmatprep.subr.mxu0 0.0
      %949 = vmatpush2.xpose.msra.mxu0 0.0
      %950 = vmatprep.subr.mxu0 0.0
      %951 = vmatpush2.xpose.msra.mxu0 0.0
      %952 = vmatprep.subr.mxu0 0.0
      %953 = vmatpush2.xpose.msra.mxu0 0.0
      %954 = vmatprep.subr.mxu0 0.0
      %955 = vmatpush2.xpose.msra.mxu0 0.0
      %956 = vmatprep.subr.mxu0 0.0
      %957 = vmatpush2.xpose.msra.mxu0 0.0
      %958 = vmatprep.subr.mxu0 0.0
      %959 = vmatpush2.xpose.msra.mxu0 0.0
      %960 = vmatprep.subr.mxu0 0.0
      %961 = vmatpush2.xpose.msra.mxu0 0.0
      %962 = vmatprep.subr.mxu0 0.0
      %963 = vmatpush2.xpose.msra.mxu0 0.0
      %964 = vmatprep.mubr.f32.mxu0 0.0
      %965 = vmatmul.mubr.f32.gmra.mxu0 %v892
      %v966 = vpop.f32.mrf.mxu0
      %v967 = vadd.f32 0.0, %v966
      %v968 = vpop.f32.mrf.mxu0
      %969 = vmatprep.mubr.f32.mxu0 0.0
      %970 = vmatmul.mubr.f32.gmra.mxu0 %v894
      %v971 = vpop.f32.mrf.mxu0
      %v972 = vadd.f32 0.0, %v971
      %v973 = vpop.f32.mrf.mxu0
      %974 = vdwg.mxu0
      %v975 = vmul.f32 %v880, 0.25
      %v976 = vmul.f32 %v885, 0.25
      %v977 = vmul.f32 %v967, 0.25
      %v978 = vmul.f32 %v972, 0.25
      %v979 = vsel %vm660, 1, 0
      %v980 = vlaneseq
      %v981 = vshrl.u32 %v980, 7
      %v982 = vsub.s32 0, %v981
      %v983 = vrot.slane %v979, %v982
      %vm984 = vcmp.eq.s32.totalorder %v983, 1
      %v985 = vsel %vm984, %v975, -3.4028235e+38
      %v986 = vsel %vm984, %v976, -3.4028235e+38
      %v987 = vsel %vm984, %v977, -3.4028235e+38
      %v988 = vsel %vm984, %v978, -3.4028235e+38
      %v989 = vsel %vm804, %v985, -inf
      %990 = vmax.xlane.f32.xlu0 %v989
      %v991 = vpop.xlane.xlu0 %990
      %v992 = vsel %vm804, %v986, -inf
      %993 = vmax.xlane.f32.xlu0 %v992
      %v994 = vpop.xlane.xlu0 %993
      %v995 = vsel %vm804, %v987, -inf
      %996 = vmax.xlane.f32.xlu0 %v995
      %v997 = vpop.xlane.xlu0 %996
      %v998 = vsel %vm804, %v988, -inf
      %999 = vmax.xlane.f32.xlu0 %v998
      %v1000 = vpop.xlane.xlu0 %999
      %v1001 = vsub.f32 %v985, %v991
      %v1002 = vsub.f32 %v986, %v994
      %v1003 = vsub.f32 %v987, %v997
      %v1004 = vsub.f32 %v988, %v1000
      %v1005 = vmul.f32 %v1001, 1.442695
      %v1006 = vpow.pop %v1005
      %v1007 = vmul.f32 %v1002, 1.442695
      %v1008 = vpow.pop %v1007
      %v1009 = vmul.f32 %v1003, 1.442695
      %v1010 = vpow.pop %v1009
      %v1011 = vmul.f32 %v1004, 1.442695
      %v1012 = vpow.pop %v1011
      %v1013 = vsel %vm804, %v1006, 0.0
      %1014 = vadd.xlane.f32.xlu0 %v1013
      %v1015 = vpop.xlane.xlu0 %1014
      %v1016 = vsel %vm804, %v1008, 0.0
      %1017 = vadd.xlane.f32.xlu0 %v1016
      %v1018 = vpop.xlane.xlu0 %1017
      %v1019 = vsel %vm804, %v1010, 0.0
      %1020 = vadd.xlane.f32.xlu0 %v1019
      %v1021 = vpop.xlane.xlu0 %1020
      %v1022 = vsel %vm804, %v1012, 0.0
      %1023 = vadd.xlane.f32.xlu0 %v1022
      %v1024 = vpop.xlane.xlu0 %1023
      %v1025 = vrcp.pop %v1015
      %v1026 = vmul.f32 %v1006, %v1025
      %v1027 = vrcp.pop %v1018
      %v1028 = vmul.f32 %v1008, %v1027
      %v1029 = vrcp.pop %v1021
      %v1030 = vmul.f32 %v1010, %v1029
      %v1031 = vrcp.pop %v1024
      %v1032 = vmul.f32 %v1012, %v1031
      %v1033 = vsel %vm984, %v1026, 0.0
      %v1034 = vsel %vm984, %v1028, 0.0
      %v1035 = vsel %vm984, %v1030, 0.0
      %v1036 = vsel %vm984, %v1032, 0.0
      %1037 = vrot.lane.b32.xlu0 %v786, 64
      %v1038 = vpop.permute.xlu0 %1037
      %1039 = vrot.lane.b32.xlu0 %v791, 64
      %v1040 = vpop.permute.xlu0 %1039
      %v1044 = vsel %vm804, %v1033, 0
      %v1047 = vsel %vm804, %v1034, 0
      %1049 = vmatprep.subr.mxu0 0.0
      %1050 = vmatpush1.msra.mxu0 0.0
      %1051 = vmatprep.subr.mxu0 0.0
      %1052 = vmatpush1.msra.mxu0 0.0
      %1053 = vmatprep.subr.mxu0 0.0
      %1054 = vmatpush1.msra.mxu0 0.0
      %1055 = vmatprep.subr.mxu0 0.0
      %1056 = vmatpush1.msra.mxu0 0.0
      %1057 = vmatprep.subr.mxu0 0.0
      %1058 = vmatpush1.msra.mxu0 0.0
      %1059 = vmatprep.subr.mxu0 0.0
      %1060 = vmatpush1.msra.mxu0 0.0
      %1061 = vmatprep.subr.mxu0 0.0
      %1062 = vmatpush1.msra.mxu0 0.0
      %1063 = vmatprep.subr.mxu0 0.0
      %1064 = vmatpush1.msra.mxu0 0.0
      %1065 = vmatprep.subr.mxu0 0.0
      %1066 = vmatpush1.msra.mxu0 0.0
      %1067 = vmatprep.subr.mxu0 0.0
      %1068 = vmatpush1.msra.mxu0 0.0
      %1069 = vmatprep.subr.mxu0 0.0
      %1070 = vmatpush1.msra.mxu0 0.0
      %1071 = vmatprep.subr.mxu0 0.0
      %1072 = vmatpush1.msra.mxu0 0.0
      %1073 = vmatprep.subr.mxu0 0.0
      %1074 = vmatpush1.msra.mxu0 0.0
      %1075 = vmatprep.subr.mxu0 0.0
      %1076 = vmatpush1.msra.mxu0 0.0
      %1077 = vmatprep.subr.mxu0 0.0
      %1078 = vmatpush1.msra.mxu0 %v1040
      %1079 = vmatprep.subr.mxu0 0.0
      %1080 = vmatpush1.msra.mxu0 %v1038
      %1081 = vmatprep.subr.mxu0 0.0
      %1082 = vmatpush2.msra.mxu0 0.0
      %1083 = vmatprep.subr.mxu0 0.0
      %1084 = vmatpush2.msra.mxu0 0.0
      %1085 = vmatprep.subr.mxu0 0.0
      %1086 = vmatpush2.msra.mxu0 0.0
      %1087 = vmatprep.subr.mxu0 0.0
      %1088 = vmatpush2.msra.mxu0 0.0
      %1089 = vmatprep.subr.mxu0 0.0
      %1090 = vmatpush2.msra.mxu0 0.0
      %1091 = vmatprep.subr.mxu0 0.0
      %1092 = vmatpush2.msra.mxu0 0.0
      %1093 = vmatprep.subr.mxu0 0.0
      %1094 = vmatpush2.msra.mxu0 0.0
      %1095 = vmatprep.subr.mxu0 0.0
      %1096 = vmatpush2.msra.mxu0 0.0
      %1097 = vmatprep.subr.mxu0 0.0
      %1098 = vmatpush2.msra.mxu0 0.0
      %1099 = vmatprep.subr.mxu0 0.0
      %1100 = vmatpush2.msra.mxu0 0.0
      %1101 = vmatprep.subr.mxu0 0.0
      %1102 = vmatpush2.msra.mxu0 0.0
      %1103 = vmatprep.subr.mxu0 0.0
      %1104 = vmatpush2.msra.mxu0 0.0
      %1105 = vmatprep.subr.mxu0 0.0
      %1106 = vmatpush2.msra.mxu0 0.0
      %1107 = vmatprep.subr.mxu0 0.0
      %1108 = vmatpush2.msra.mxu0 0.0
      %1109 = vmatprep.subr.mxu0 0.0
      %1110 = vmatpush2.msra.mxu0 0.0
      %1111 = vmatprep.subr.mxu0 0.0
      %1112 = vmatpush2.msra.mxu0 0.0
      %1113 = vmatprep.mubr.f32.mxu0 0.0
      %1114 = vmatmul.mubr.f32.gmra.mxu0 %v1044
      %v1115 = vpop.f32.mrf.mxu0
      %v1116 = vadd.f32 0.0, %v1115
      %v1117 = vpop.f32.mrf.mxu0
      %1118 = vmatprep.mubr.f32.mxu0 0.0
      %1119 = vmatmul.mubr.f32.gmra.mxu0 %v1047
      %v1120 = vpop.f32.mrf.mxu0
      %v1121 = vadd.f32 0.0, %v1120
      %v1122 = vpop.f32.mrf.mxu0
      %1123 = vdwg.mxu0
      %1124 = vrot.lane.b32.xlu0 %v797, 64
      %v1125 = vpop.permute.xlu0 %1124
      %1126 = vrot.lane.b32.xlu0 %v799, 64
      %v1127 = vpop.permute.xlu0 %1126
      %v1131 = vsel %vm804, %v1035, 0
      %v1134 = vsel %vm804, %v1036, 0
      %1136 = vmatprep.subr.mxu0 0.0
      %1137 = vmatpush1.msra.mxu0 0.0
      %1138 = vmatprep.subr.mxu0 0.0
      %1139 = vmatpush1.msra.mxu0 0.0
      %1140 = vmatprep.subr.mxu0 0.0
      %1141 = vmatpush1.msra.mxu0 0.0
      %1142 = vmatprep.subr.mxu0 0.0
      %1143 = vmatpush1.msra.mxu0 0.0
      %1144 = vmatprep.subr.mxu0 0.0
      %1145 = vmatpush1.msra.mxu0 0.0
      %1146 = vmatprep.subr.mxu0 0.0
      %1147 = vmatpush1.msra.mxu0 0.0
      %1148 = vmatprep.subr.mxu0 0.0
      %1149 = vmatpush1.msra.mxu0 0.0
      %1150 = vmatprep.subr.mxu0 0.0
      %1151 = vmatpush1.msra.mxu0 0.0
      %1152 = vmatprep.subr.mxu0 0.0
      %1153 = vmatpush1.msra.mxu0 0.0
      %1154 = vmatprep.subr.mxu0 0.0
      %1155 = vmatpush1.msra.mxu0 0.0
      %1156 = vmatprep.subr.mxu0 0.0
      %1157 = vmatpush1.msra.mxu0 0.0
      %1158 = vmatprep.subr.mxu0 0.0
      %1159 = vmatpush1.msra.mxu0 0.0
      %1160 = vmatprep.subr.mxu0 0.0
      %1161 = vmatpush1.msra.mxu0 0.0
      %1162 = vmatprep.subr.mxu0 0.0
      %1163 = vmatpush1.msra.mxu0 0.0
      %1164 = vmatprep.subr.mxu0 0.0
      %1165 = vmatpush1.msra.mxu0 %v1127
      %1166 = vmatprep.subr.mxu0 0.0
      %1167 = vmatpush1.msra.mxu0 %v1125
      %1168 = vmatprep.subr.mxu0 0.0
      %1169 = vmatpush2.msra.mxu0 0.0
      %1170 = vmatprep.subr.mxu0 0.0
      %1171 = vmatpush2.msra.mxu0 0.0
      %1172 = vmatprep.subr.mxu0 0.0
      %1173 = vmatpush2.msra.mxu0 0.0
      %1174 = vmatprep.subr.mxu0 0.0
      %1175 = vmatpush2.msra.mxu0 0.0
      %1176 = vmatprep.subr.mxu0 0.0
      %1177 = vmatpush2.msra.mxu0 0.0
      %1178 = vmatprep.subr.mxu0 0.0
      %1179 = vmatpush2.msra.mxu0 0.0
      %1180 = vmatprep.subr.mxu0 0.0
      %1181 = vmatpush2.msra.mxu0 0.0
      %1182 = vmatprep.subr.mxu0 0.0
      %1183 = vmatpush2.msra.mxu0 0.0
      %1184 = vmatprep.subr.mxu0 0.0
      %1185 = vmatpush2.msra.mxu0 0.0
      %1186 = vmatprep.subr.mxu0 0.0
      %1187 = vmatpush2.msra.mxu0 0.0
      %1188 = vmatprep.subr.mxu0 0.0
      %1189 = vmatpush2.msra.mxu0 0.0
      %1190 = vmatprep.subr.mxu0 0.0
      %1191 = vmatpush2.msra.mxu0 0.0
      %1192 = vmatprep.subr.mxu0 0.0
      %1193 = vmatpush2.msra.mxu0 0.0
      %1194 = vmatprep.subr.mxu0 0.0
      %1195 = vmatpush2.msra.mxu0 0.0
      %1196 = vmatprep.subr.mxu0 0.0
      %1197 = vmatpush2.msra.mxu0 0.0
      %1198 = vmatprep.subr.mxu0 0.0
      %1199 = vmatpush2.msra.mxu0 0.0
      %1200 = vmatprep.mubr.f32.mxu0 0.0
      %1201 = vmatmul.mubr.f32.gmra.mxu0 %v1131
      %v1202 = vpop.f32.mrf.mxu0
      %v1203 = vadd.f32 0.0, %v1202
      %v1204 = vpop.f32.mrf.mxu0
      %1205 = vmatprep.mubr.f32.mxu0 0.0
      %1206 = vmatmul.mubr.f32.gmra.mxu0 %v1134
      %v1207 = vpop.f32.mrf.mxu0
      %v1208 = vadd.f32 0.0, %v1207
      %v1209 = vpop.f32.mrf.mxu0
      %1210 = vdwg.mxu0
      %1213 = vrot.lane.b32.xlu0 %v1203, 16
      %v1214 = vpop.permute.xlu0 %1213
      %1215 = vrot.lane.b32.xlu0 %v1208, 16
      %v1216 = vpop.permute.xlu0 %1215
      %v1219 = vsel %vm804, %v1116, %v1214
      %v1220 = vsel %vm804, %v1121, %v1216
      %v1221 = vld [vmem:[%s7] sm:$0xff]
      %v1222 = vld [vmem:[%s7 + $0x8] sm:$0xff]
      %v1223 = vld [vmem:[%s7 + $0x10] sm:$0xff]
      %v1224 = vld [vmem:[%s7 + $0x18] sm:$0xff]
      %v1226 = vsel %vm662, %v1219, 0
      %v1229 = vsel %vm662, %v1220, 0
      %1231 = vmatprep.subr.mxu0 0.0
      %1232 = vmatpush1.msra.mxu0 0.0
      %1233 = vmatprep.subr.mxu0 0.0
      %1234 = vmatpush1.msra.mxu0 0.0
      %1235 = vmatprep.subr.mxu0 0.0
      %1236 = vmatpush1.msra.mxu0 0.0
      %1237 = vmatprep.subr.mxu0 0.0
      %1238 = vmatpush1.msra.mxu0 0.0
      %1239 = vmatprep.subr.mxu0 0.0
      %1240 = vmatpush1.msra.mxu0 0.0
      %1241 = vmatprep.subr.mxu0 0.0
      %1242 = vmatpush1.msra.mxu0 0.0
      %1243 = vmatprep.subr.mxu0 0.0
      %1244 = vmatpush1.msra.mxu0 0.0
      %1245 = vmatprep.subr.mxu0 0.0
      %1246 = vmatpush1.msra.mxu0 0.0
      %1247 = vmatprep.subr.mxu0 0.0
      %1248 = vmatpush1.msra.mxu0 0.0
      %1249 = vmatprep.subr.mxu0 0.0
      %1250 = vmatpush1.msra.mxu0 0.0
      %1251 = vmatprep.subr.mxu0 0.0
      %1252 = vmatpush1.msra.mxu0 0.0
      %1253 = vmatprep.subr.mxu0 0.0
      %1254 = vmatpush1.msra.mxu0 0.0
      %1255 = vmatprep.subr.mxu0 0.0
      %1256 = vmatpush1.msra.mxu0 %v1224
      %1257 = vmatprep.subr.mxu0 0.0
      %1258 = vmatpush1.msra.mxu0 %v1223
      %1259 = vmatprep.subr.mxu0 0.0
      %1260 = vmatpush1.msra.mxu0 %v1222
      %1261 = vmatprep.subr.mxu0 0.0
      %1262 = vmatpush1.msra.mxu0 %v1221
      %1263 = vmatprep.subr.mxu0 0.0
      %1264 = vmatpush2.msra.mxu0 0.0
      %1265 = vmatprep.subr.mxu0 0.0
      %1266 = vmatpush2.msra.mxu0 0.0
      %1267 = vmatprep.subr.mxu0 0.0
      %1268 = vmatpush2.msra.mxu0 0.0
      %1269 = vmatprep.subr.mxu0 0.0
      %1270 = vmatpush2.msra.mxu0 0.0
      %1271 = vmatprep.subr.mxu0 0.0
      %1272 = vmatpush2.msra.mxu0 0.0
      %1273 = vmatprep.subr.mxu0 0.0
      %1274 = vmatpush2.msra.mxu0 0.0
      %1275 = vmatprep.subr.mxu0 0.0
      %1276 = vmatpush2.msra.mxu0 0.0
      %1277 = vmatprep.subr.mxu0 0.0
      %1278 = vmatpush2.msra.mxu0 0.0
      %1279 = vmatprep.subr.mxu0 0.0
      %1280 = vmatpush2.msra.mxu0 0.0
      %1281 = vmatprep.subr.mxu0 0.0
      %1282 = vmatpush2.msra.mxu0 0.0
      %1283 = vmatprep.subr.mxu0 0.0
      %1284 = vmatpush2.msra.mxu0 0.0
      %1285 = vmatprep.subr.mxu0 0.0
      %1286 = vmatpush2.msra.mxu0 0.0
      %1287 = vmatprep.subr.mxu0 0.0
      %1288 = vmatpush2.msra.mxu0 0.0
      %1289 = vmatprep.subr.mxu0 0.0
      %1290 = vmatpush2.msra.mxu0 0.0
      %1291 = vmatprep.subr.mxu0 0.0
      %1292 = vmatpush2.msra.mxu0 0.0
      %1293 = vmatprep.subr.mxu0 0.0
      %1294 = vmatpush2.msra.mxu0 0.0
      %1295 = vmatprep.mubr.f32.mxu0 0.0
      %1296 = vmatmul.mubr.f32.gmra.mxu0 %v1226
      %v1297 = vpop.f32.mrf.mxu0
      %v1298 = vadd.f32 0.0, %v1297
      %v1299 = vpop.f32.mrf.mxu0
      %1300 = vmatprep.mubr.f32.mxu0 0.0
      %1301 = vmatmul.mubr.f32.gmra.mxu0 %v1229
      %v1302 = vpop.f32.mrf.mxu0
      %v1303 = vadd.f32 0.0, %v1302
      %v1304 = vpop.f32.mrf.mxu0
      %1305 = vdwg.mxu0
      %v1306 = vadd.f32 %v657, %v1298
      %v1307 = vadd.f32 %v658, %v1303
      %v1308 = vld [vmem:[%s8] sm:$0x1]
      %v1310 = vlaneseq
      %v1311 = vshrl.u32 %v1310, 7
      %v1312 = vsub.s32 0, %v1311
      %v1313 = vrot.slane %v1308, %v1312
      %v1315 = vadd.f32 %v1306, %v1313
      %v1316 = vadd.f32 %v1307, %v1313
      %v1317 = vsel %vm662, %v1315, 0.0
      %1318 = vadd.xlane.f32.xlu0 %v1317
      %v1319 = vpop.xlane.xlu0 %1318
      %v1320 = vsel %vm662, %v1316, 0.0
      %1321 = vadd.xlane.f32.xlu0 %v1320
      %v1322 = vpop.xlane.xlu0 %1321
      %v1323 = vmul.f32 %v1319, %v669
      %v1324 = vmul.f32 %v1322, %v669
      %v1325 = vsub.f32 %v1315, %v1323
      %v1326 = vsub.f32 %v1316, %v1324
      %v1327 = vmul.f32 %v1325, %v1325
      %v1328 = vmul.f32 %v1326, %v1326
      %v1329 = vsel %vm662, %v1327, 0.0
      %1330 = vadd.xlane.f32.xlu0 %v1329
      %v1331 = vpop.xlane.xlu0 %1330
      %v1332 = vsel %vm662, %v1328, 0.0
      %1333 = vadd.xlane.f32.xlu0 %v1332
      %v1334 = vpop.xlane.xlu0 %1333
      %v1335 = vmul.f32 %v1331, %v669
      %v1336 = vmul.f32 %v1334, %v669
      %v1337 = vadd.f32 %v1335, 1e-12
      %v1338 = vadd.f32 %v1336, 1e-12
      %v1339 = vrsqrt.pop %v1337
      %v1340 = vrsqrt.pop %v1338
      %v1341 = vmul.f32 %v1325, %v1339
      %v1342 = vmul.f32 %v1326, %v1340
      %v1343 = vlaneseq
      %v1344 = vshrl.u32 %v1343, 7
      %v1345 = vsub.s32 2, %v1344
      %v1346 = vrot.slane %v661, %v1345
      %v1347 = vmul.f32 %v1341, %v1346
      %v1348 = vmul.f32 %v1342, %v1346
      %v1349 = vlaneseq
      %v1350 = vshrl.u32 %v1349, 7
      %v1351 = vsub.s32 3, %v1350
      %v1352 = vrot.slane %v661, %v1351
      %v1353 = vadd.f32 %v1347, %v1352
      %v1354 = vadd.f32 %v1348, %v1352
      %v1355 = vld [vmem:[%s10] sm:$0xff]
      %v1356 = vld [vmem:[%s10 + $0x8] sm:$0xff]
      %v1357 = vld [vmem:[%s10 + $0x10] sm:$0xff]
      %v1358 = vld [vmem:[%s10 + $0x18] sm:$0xff]
      %v1359 = vld [vmem:[%s11] sm:$0x1]
      %v1361 = vlaneseq
      %v1362 = vshrl.u32 %v1361, 7
      %v1363 = vsub.s32 0, %v1362
      %v1364 = vrot.slane %v1359, %v1363
      %v1367 = vsel %vm662, %v1353, 0
      %v1370 = vsel %vm662, %v1354, 0
      %1372 = vmatprep.subr.mxu0 0.0
      %1373 = vmatpush1.msra.mxu0 0.0
      %1374 = vmatprep.subr.mxu0 0.0
      %1375 = vmatpush1.msra.mxu0 0.0
      %1376 = vmatprep.subr.mxu0 0.0
      %1377 = vmatpush1.msra.mxu0 0.0
      %1378 = vmatprep.subr.mxu0 0.0
      %1379 = vmatpush1.msra.mxu0 0.0
      %1380 = vmatprep.subr.mxu0 0.0
      %1381 = vmatpush1.msra.mxu0 0.0
      %1382 = vmatprep.subr.mxu0 0.0
      %1383 = vmatpush1.msra.mxu0 0.0
      %1384 = vmatprep.subr.mxu0 0.0
      %1385 = vmatpush1.msra.mxu0 0.0
      %1386 = vmatprep.subr.mxu0 0.0
      %1387 = vmatpush1.msra.mxu0 0.0
      %1388 = vmatprep.subr.mxu0 0.0
      %1389 = vmatpush1.msra.mxu0 0.0
      %1390 = vmatprep.subr.mxu0 0.0
      %1391 = vmatpush1.msra.mxu0 0.0
      %1392 = vmatprep.subr.mxu0 0.0
      %1393 = vmatpush1.msra.mxu0 0.0
      %1394 = vmatprep.subr.mxu0 0.0
      %1395 = vmatpush1.msra.mxu0 0.0
      %1396 = vmatprep.subr.mxu0 0.0
      %1397 = vmatpush1.msra.mxu0 %v1358
      %1398 = vmatprep.subr.mxu0 0.0
      %1399 = vmatpush1.msra.mxu0 %v1357
      %1400 = vmatprep.subr.mxu0 0.0
      %1401 = vmatpush1.msra.mxu0 %v1356
      %1402 = vmatprep.subr.mxu0 0.0
      %1403 = vmatpush1.msra.mxu0 %v1355
      %1404 = vmatprep.subr.mxu0 0.0
      %1405 = vmatpush2.msra.mxu0 0.0
      %1406 = vmatprep.subr.mxu0 0.0
      %1407 = vmatpush2.msra.mxu0 0.0
      %1408 = vmatprep.subr.mxu0 0.0
      %1409 = vmatpush2.msra.mxu0 0.0
      %1410 = vmatprep.subr.mxu0 0.0
      %1411 = vmatpush2.msra.mxu0 0.0
      %1412 = vmatprep.subr.mxu0 0.0
      %1413 = vmatpush2.msra.mxu0 0.0
      %1414 = vmatprep.subr.mxu0 0.0
      %1415 = vmatpush2.msra.mxu0 0.0
      %1416 = vmatprep.subr.mxu0 0.0
      %1417 = vmatpush2.msra.mxu0 0.0
      %1418 = vmatprep.subr.mxu0 0.0
      %1419 = vmatpush2.msra.mxu0 0.0
      %1420 = vmatprep.subr.mxu0 0.0
      %1421 = vmatpush2.msra.mxu0 0.0
      %1422 = vmatprep.subr.mxu0 0.0
      %1423 = vmatpush2.msra.mxu0 0.0
      %1424 = vmatprep.subr.mxu0 0.0
      %1425 = vmatpush2.msra.mxu0 0.0
      %1426 = vmatprep.subr.mxu0 0.0
      %1427 = vmatpush2.msra.mxu0 0.0
      %1428 = vmatprep.subr.mxu0 0.0
      %1429 = vmatpush2.msra.mxu0 0.0
      %1430 = vmatprep.subr.mxu0 0.0
      %1431 = vmatpush2.msra.mxu0 0.0
      %1432 = vmatprep.subr.mxu0 0.0
      %1433 = vmatpush2.msra.mxu0 0.0
      %1434 = vmatprep.subr.mxu0 0.0
      %1435 = vmatpush2.msra.mxu0 0.0
      %1436 = vmatprep.mubr.f32.mxu0 0.0
      %1437 = vmatmul.mubr.f32.gmra.mxu0 %v1367
      %v1438 = vpop.f32.mrf.mxu0
      %v1439 = vadd.f32 %v1364, %v1438
      %v1440 = vpop.f32.mrf.mxu0
      %1441 = vmatprep.mubr.f32.mxu0 0.0
      %1442 = vmatmul.mubr.f32.gmra.mxu0 %v1370
      %v1443 = vpop.f32.mrf.mxu0
      %v1444 = vadd.f32 %v1364, %v1443
      %v1445 = vpop.f32.mrf.mxu0
      %1446 = vdwg.mxu0
      %v1447 = vmax.f32 %v1439, 0.0
      %v1448 = vmax.f32 %v1444, 0.0
      %v1449 = vld [vmem:[%s12] sm:$0xff]
      %v1450 = vld [vmem:[%s12 + $0x8] sm:$0xff]
      %v1451 = vld [vmem:[%s12 + $0x10] sm:$0xff]
      %v1452 = vld [vmem:[%s12 + $0x18] sm:$0xff]
      %v1453 = vld [vmem:[%s12 + $0x20] sm:$0xff]
      %v1454 = vld [vmem:[%s12 + $0x28] sm:$0xff]
      %v1455 = vld [vmem:[%s12 + $0x30] sm:$0xff]
      %v1456 = vld [vmem:[%s12 + $0x38] sm:$0xff]
      %v1458 = vsel %vm499, %v1447, 0
      %v1461 = vsel %vm499, %v1448, 0
      %1463 = vmatprep.subr.mxu0 0.0
      %1464 = vmatpush1.msra.mxu0 0.0
      %1465 = vmatprep.subr.mxu0 0.0
      %1466 = vmatpush1.msra.mxu0 0.0
      %1467 = vmatprep.subr.mxu0 0.0
      %1468 = vmatpush1.msra.mxu0 0.0
      %1469 = vmatprep.subr.mxu0 0.0
      %1470 = vmatpush1.msra.mxu0 0.0
      %1471 = vmatprep.subr.mxu0 0.0
      %1472 = vmatpush1.msra.mxu0 0.0
      %1473 = vmatprep.subr.mxu0 0.0
      %1474 = vmatpush1.msra.mxu0 0.0
      %1475 = vmatprep.subr.mxu0 0.0
      %1476 = vmatpush1.msra.mxu0 0.0
      %1477 = vmatprep.subr.mxu0 0.0
      %1478 = vmatpush1.msra.mxu0 0.0
      %1479 = vmatprep.subr.mxu0 0.0
      %1480 = vmatpush1.msra.mxu0 %v1456
      %1481 = vmatprep.subr.mxu0 0.0
      %1482 = vmatpush1.msra.mxu0 %v1455
      %1483 = vmatprep.subr.mxu0 0.0
      %1484 = vmatpush1.msra.mxu0 %v1454
      %1485 = vmatprep.subr.mxu0 0.0
      %1486 = vmatpush1.msra.mxu0 %v1453
      %1487 = vmatprep.subr.mxu0 0.0
      %1488 = vmatpush1.msra.mxu0 %v1452
      %1489 = vmatprep.subr.mxu0 0.0
      %1490 = vmatpush1.msra.mxu0 %v1451
      %1491 = vmatprep.subr.mxu0 0.0
      %1492 = vmatpush1.msra.mxu0 %v1450
      %1493 = vmatprep.subr.mxu0 0.0
      %1494 = vmatpush1.msra.mxu0 %v1449
      %1495 = vmatprep.subr.mxu0 0.0
      %1496 = vmatpush2.msra.mxu0 0.0
      %1497 = vmatprep.subr.mxu0 0.0
      %1498 = vmatpush2.msra.mxu0 0.0
      %1499 = vmatprep.subr.mxu0 0.0
      %1500 = vmatpush2.msra.mxu0 0.0
      %1501 = vmatprep.subr.mxu0 0.0
      %1502 = vmatpush2.msra.mxu0 0.0
      %1503 = vmatprep.subr.mxu0 0.0
      %1504 = vmatpush2.msra.mxu0 0.0
      %1505 = vmatprep.subr.mxu0 0.0
      %1506 = vmatpush2.msra.mxu0 0.0
      %1507 = vmatprep.subr.mxu0 0.0
      %1508 = vmatpush2.msra.mxu0 0.0
      %1509 = vmatprep.subr.mxu0 0.0
      %1510 = vmatpush2.msra.mxu0 0.0
      %1511 = vmatprep.subr.mxu0 0.0
      %1512 = vmatpush2.msra.mxu0 0.0
      %1513 = vmatprep.subr.mxu0 0.0
      %1514 = vmatpush2.msra.mxu0 0.0
      %1515 = vmatprep.subr.mxu0 0.0
      %1516 = vmatpush2.msra.mxu0 0.0
      %1517 = vmatprep.subr.mxu0 0.0
      %1518 = vmatpush2.msra.mxu0 0.0
      %1519 = vmatprep.subr.mxu0 0.0
      %1520 = vmatpush2.msra.mxu0 0.0
      %1521 = vmatprep.subr.mxu0 0.0
      %1522 = vmatpush2.msra.mxu0 0.0
      %1523 = vmatprep.subr.mxu0 0.0
      %1524 = vmatpush2.msra.mxu0 0.0
      %1525 = vmatprep.subr.mxu0 0.0
      %1526 = vmatpush2.msra.mxu0 0.0
      %1527 = vmatprep.mubr.f32.mxu0 0.0
      %1528 = vmatmul.mubr.f32.gmra.mxu0 %v1458
      %v1529 = vpop.f32.mrf.mxu0
      %v1530 = vadd.f32 0.0, %v1529
      %v1531 = vpop.f32.mrf.mxu0
      %1532 = vmatprep.mubr.f32.mxu0 0.0
      %1533 = vmatmul.mubr.f32.gmra.mxu0 %v1461
      %v1534 = vpop.f32.mrf.mxu0
      %v1535 = vadd.f32 0.0, %v1534
      %v1536 = vpop.f32.mrf.mxu0
      %1537 = vdwg.mxu0
      %v1538 = vadd.f32 %v1315, %v1530
      %v1539 = vadd.f32 %v1316, %v1535
      %v1540 = vld [vmem:[%s13] sm:$0x1]
      %v1542 = vlaneseq
      %v1543 = vshrl.u32 %v1542, 7
      %v1544 = vsub.s32 0, %v1543
      %v1545 = vrot.slane %v1540, %v1544
      %v1547 = vadd.f32 %v1538, %v1545
      %v1548 = vadd.f32 %v1539, %v1545
      %s1549 = scalar_lea.vmem %s9, 4
      %v1550 = vld [vmem:[%s1549] sm:$0xf]
      %v1551 = vsel %vm662, %v1547, 0.0
      %1552 = vadd.xlane.f32.xlu0 %v1551
      %v1553 = vpop.xlane.xlu0 %1552
      %v1554 = vsel %vm662, %v1548, 0.0
      %1555 = vadd.xlane.f32.xlu0 %v1554
      %v1556 = vpop.xlane.xlu0 %1555
      %v1557 = vmul.f32 %v1553, %v669
      %v1558 = vmul.f32 %v1556, %v669
      %v1559 = vsub.f32 %v1547, %v1557
      %v1560 = vsub.f32 %v1548, %v1558
      %v1561 = vmul.f32 %v1559, %v1559
      %v1562 = vmul.f32 %v1560, %v1560
      %v1563 = vsel %vm662, %v1561, 0.0
      %1564 = vadd.xlane.f32.xlu0 %v1563
      %v1565 = vpop.xlane.xlu0 %1564
      %v1566 = vsel %vm662, %v1562, 0.0
      %1567 = vadd.xlane.f32.xlu0 %v1566
      %v1568 = vpop.xlane.xlu0 %1567
      %v1569 = vmul.f32 %v1565, %v669
      %v1570 = vmul.f32 %v1568, %v669
      %v1571 = vadd.f32 %v1569, 1e-12
      %v1572 = vadd.f32 %v1570, 1e-12
      %v1573 = vrsqrt.pop %v1571
      %v1574 = vrsqrt.pop %v1572
      %v1575 = vmul.f32 %v1559, %v1573
      %v1576 = vmul.f32 %v1560, %v1574
      %v1577 = vlaneseq
      %v1578 = vshrl.u32 %v1577, 7
      %v1579 = vsub.s32 0, %v1578
      %v1580 = vrot.slane %v1550, %v1579
      %v1581 = vmul.f32 %v1575, %v1580
      %v1582 = vmul.f32 %v1576, %v1580
      %v1583 = vlaneseq
      %v1584 = vshrl.u32 %v1583, 7
      %v1585 = vsub.s32 1, %v1584
      %v1586 = vrot.slane %v1550, %v1585
      %v1587 = vadd.f32 %v1581, %v1586
      %v1588 = vadd.f32 %v1582, %v1586
      %s1589 = scalar_lea.vmem %s5, 32
      %v1590 = vld [vmem:[%s1589] sm:$0xff]
      %v1591 = vld [vmem:[%s1589 + $0x8] sm:$0xff]
      %v1592 = vld [vmem:[%s1589 + $0x10] sm:$0xff]
      %v1593 = vld [vmem:[%s1589 + $0x18] sm:$0xff]
      %s1594 = scalar_lea.vmem %s6, 1
      %v1595 = vld [vmem:[%s1594] sm:$0x1]
      %v1597 = vlaneseq
      %v1598 = vshrl.u32 %v1597, 7
      %v1599 = vsub.s32 0, %v1598
      %v1600 = vrot.slane %v1595, %v1599
      %v1603 = vsel %vm662, %v1587, 0
      %v1606 = vsel %vm662, %v1588, 0
      %1608 = vmatprep.subr.mxu0 0.0
      %1609 = vmatpush1.msra.mxu0 0.0
      %1610 = vmatprep.subr.mxu0 0.0
      %1611 = vmatpush1.msra.mxu0 0.0
      %1612 = vmatprep.subr.mxu0 0.0
      %1613 = vmatpush1.msra.mxu0 0.0
      %1614 = vmatprep.subr.mxu0 0.0
      %1615 = vmatpush1.msra.mxu0 0.0
      %1616 = vmatprep.subr.mxu0 0.0
      %1617 = vmatpush1.msra.mxu0 0.0
      %1618 = vmatprep.subr.mxu0 0.0
      %1619 = vmatpush1.msra.mxu0 0.0
      %1620 = vmatprep.subr.mxu0 0.0
      %1621 = vmatpush1.msra.mxu0 0.0
      %1622 = vmatprep.subr.mxu0 0.0
      %1623 = vmatpush1.msra.mxu0 0.0
      %1624 = vmatprep.subr.mxu0 0.0
      %1625 = vmatpush1.msra.mxu0 0.0
      %1626 = vmatprep.subr.mxu0 0.0
      %1627 = vmatpush1.msra.mxu0 0.0
      %1628 = vmatprep.subr.mxu0 0.0
      %1629 = vmatpush1.msra.mxu0 0.0
      %1630 = vmatprep.subr.mxu0 0.0
      %1631 = vmatpush1.msra.mxu0 0.0
      %1632 = vmatprep.subr.mxu0 0.0
      %1633 = vmatpush1.msra.mxu0 %v1593
      %1634 = vmatprep.subr.mxu0 0.0
      %1635 = vmatpush1.msra.mxu0 %v1592
      %1636 = vmatprep.subr.mxu0 0.0
      %1637 = vmatpush1.msra.mxu0 %v1591
      %1638 = vmatprep.subr.mxu0 0.0
      %1639 = vmatpush1.msra.mxu0 %v1590
      %1640 = vmatprep.subr.mxu0 0.0
      %1641 = vmatpush2.msra.mxu0 0.0
      %1642 = vmatprep.subr.mxu0 0.0
      %1643 = vmatpush2.msra.mxu0 0.0
      %1644 = vmatprep.subr.mxu0 0.0
      %1645 = vmatpush2.msra.mxu0 0.0
      %1646 = vmatprep.subr.mxu0 0.0
      %1647 = vmatpush2.msra.mxu0 0.0
      %1648 = vmatprep.subr.mxu0 0.0
      %1649 = vmatpush2.msra.mxu0 0.0
      %1650 = vmatprep.subr.mxu0 0.0
      %1651 = vmatpush2.msra.mxu0 0.0
      %1652 = vmatprep.subr.mxu0 0.0
      %1653 = vmatpush2.msra.mxu0 0.0
      %1654 = vmatprep.subr.mxu0 0.0
      %1655 = vmatpush2.msra.mxu0 0.0
      %1656 = vmatprep.subr.mxu0 0.0
      %1657 = vmatpush2.msra.mxu0 0.0
      %1658 = vmatprep.subr.mxu0 0.0
      %1659 = vmatpush2.msra.mxu0 0.0
      %1660 = vmatprep.subr.mxu0 0.0
      %1661 = vmatpush2.msra.mxu0 0.0
      %1662 = vmatprep.subr.mxu0 0.0
      %1663 = vmatpush2.msra.mxu0 0.0
      %1664 = vmatprep.subr.mxu0 0.0
      %1665 = vmatpush2.msra.mxu0 0.0
      %1666 = vmatprep.subr.mxu0 0.0
      %1667 = vmatpush2.msra.mxu0 0.0
      %1668 = vmatprep.subr.mxu0 0.0
      %1669 = vmatpush2.msra.mxu0 0.0
      %1670 = vmatprep.subr.mxu0 0.0
      %1671 = vmatpush2.msra.mxu0 0.0
      %1672 = vmatprep.mubr.f32.mxu0 0.0
      %1673 = vmatmul.mubr.f32.gmra.mxu0 %v1603
      %v1674 = vpop.f32.mrf.mxu0
      %v1675 = vadd.f32 %v1600, %v1674
      %v1676 = vpop.f32.mrf.mxu0
      %1677 = vmatprep.mubr.f32.mxu0 0.0
      %1678 = vmatmul.mubr.f32.gmra.mxu0 %v1606
      %v1679 = vpop.f32.mrf.mxu0
      %v1680 = vadd.f32 %v1600, %v1679
      %v1681 = vpop.f32.mrf.mxu0
      %1682 = vdwg.mxu0
      %1685 = vrot.lane.b32.xlu0 %v1675, 112
      %v1686 = vpop.permute.xlu0 %1685
      %1687 = vrot.lane.b32.xlu0 %v1680, 112
      %v1688 = vpop.permute.xlu0 %1687
      %1689 = vrot.lane.b32.xlu0 %v1675, 96
      %v1690 = vpop.permute.xlu0 %1689
      %1691 = vrot.lane.b32.xlu0 %v1680, 96
      %v1692 = vpop.permute.xlu0 %1691
      %v1693 = vsel %vm804, %v1675, 0
      %v1695 = vsel %vm804, %v1680, 0
      %v1697 = vsel %vm804, %v1690, 0
      %v1699 = vsel %vm804, %v1692, 0
      %1701 = vmatprep.subr.mxu0 0.0
      %1702 = vmatpush1.xpose.msra.mxu0 0.0
      %1703 = vmatprep.subr.mxu0 0.0
      %1704 = vmatpush1.xpose.msra.mxu0 0.0
      %1705 = vmatprep.subr.mxu0 0.0
      %1706 = vmatpush1.xpose.msra.mxu0 0.0
      %1707 = vmatprep.subr.mxu0 0.0
      %1708 = vmatpush1.xpose.msra.mxu0 0.0
      %1709 = vmatprep.subr.mxu0 0.0
      %1710 = vmatpush1.xpose.msra.mxu0 0.0
      %1711 = vmatprep.subr.mxu0 0.0
      %1712 = vmatpush1.xpose.msra.mxu0 0.0
      %1713 = vmatprep.subr.mxu0 0.0
      %1714 = vmatpush1.xpose.msra.mxu0 0.0
      %1715 = vmatprep.subr.mxu0 0.0
      %1716 = vmatpush1.xpose.msra.mxu0 0.0
      %1717 = vmatprep.subr.mxu0 0.0
      %1718 = vmatpush1.xpose.msra.mxu0 0.0
      %1719 = vmatprep.subr.mxu0 0.0
      %1720 = vmatpush1.xpose.msra.mxu0 0.0
      %1721 = vmatprep.subr.mxu0 0.0
      %1722 = vmatpush1.xpose.msra.mxu0 0.0
      %1723 = vmatprep.subr.mxu0 0.0
      %1724 = vmatpush1.xpose.msra.mxu0 0.0
      %1725 = vmatprep.subr.mxu0 0.0
      %1726 = vmatpush1.xpose.msra.mxu0 0.0
      %1727 = vmatprep.subr.mxu0 0.0
      %1728 = vmatpush1.xpose.msra.mxu0 0.0
      %1729 = vmatprep.subr.mxu0 0.0
      %1730 = vmatpush1.xpose.msra.mxu0 %v1699
      %1731 = vmatprep.subr.mxu0 0.0
      %1732 = vmatpush1.xpose.msra.mxu0 %v1697
      %1733 = vmatprep.subr.mxu0 0.0
      %1734 = vmatpush2.xpose.msra.mxu0 0.0
      %1735 = vmatprep.subr.mxu0 0.0
      %1736 = vmatpush2.xpose.msra.mxu0 0.0
      %1737 = vmatprep.subr.mxu0 0.0
      %1738 = vmatpush2.xpose.msra.mxu0 0.0
      %1739 = vmatprep.subr.mxu0 0.0
      %1740 = vmatpush2.xpose.msra.mxu0 0.0
      %1741 = vmatprep.subr.mxu0 0.0
      %1742 = vmatpush2.xpose.msra.mxu0 0.0
      %1743 = vmatprep.subr.mxu0 0.0
      %1744 = vmatpush2.xpose.msra.mxu0 0.0
      %1745 = vmatprep.subr.mxu0 0.0
      %1746 = vmatpush2.xpose.msra.mxu0 0.0
      %1747 = vmatprep.subr.mxu0 0.0
      %1748 = vmatpush2.xpose.msra.mxu0 0.0
      %1749 = vmatprep.subr.mxu0 0.0
      %1750 = vmatpush2.xpose.msra.mxu0 0.0
      %1751 = vmatprep.subr.mxu0 0.0
      %1752 = vmatpush2.xpose.msra.mxu0 0.0
      %1753 = vmatprep.subr.mxu0 0.0
      %1754 = vmatpush2.xpose.msra.mxu0 0.0
      %1755 = vmatprep.subr.mxu0 0.0
      %1756 = vmatpush2.xpose.msra.mxu0 0.0
      %1757 = vmatprep.subr.mxu0 0.0
      %1758 = vmatpush2.xpose.msra.mxu0 0.0
      %1759 = vmatprep.subr.mxu0 0.0
      %1760 = vmatpush2.xpose.msra.mxu0 0.0
      %1761 = vmatprep.subr.mxu0 0.0
      %1762 = vmatpush2.xpose.msra.mxu0 0.0
      %1763 = vmatprep.subr.mxu0 0.0
      %1764 = vmatpush2.xpose.msra.mxu0 0.0
      %1765 = vmatprep.mubr.f32.mxu0 0.0
      %1766 = vmatmul.mubr.f32.gmra.mxu0 %v1693
      %v1767 = vpop.f32.mrf.mxu0
      %v1768 = vadd.f32 0.0, %v1767
      %v1769 = vpop.f32.mrf.mxu0
      %1770 = vmatprep.mubr.f32.mxu0 0.0
      %1771 = vmatmul.mubr.f32.gmra.mxu0 %v1695
      %v1772 = vpop.f32.mrf.mxu0
      %v1773 = vadd.f32 0.0, %v1772
      %v1774 = vpop.f32.mrf.mxu0
      %1775 = vdwg.mxu0
      %1776 = vrot.lane.b32.xlu0 %v1686, 96
      %v1777 = vpop.permute.xlu0 %1776
      %1778 = vrot.lane.b32.xlu0 %v1688, 96
      %v1779 = vpop.permute.xlu0 %1778
      %v1780 = vsel %vm804, %v1686, 0
      %v1782 = vsel %vm804, %v1688, 0
      %v1784 = vsel %vm804, %v1777, 0
      %v1786 = vsel %vm804, %v1779, 0
      %1788 = vmatprep.subr.mxu0 0.0
      %1789 = vmatpush1.xpose.msra.mxu0 0.0
      %1790 = vmatprep.subr.mxu0 0.0
      %1791 = vmatpush1.xpose.msra.mxu0 0.0
      %1792 = vmatprep.subr.mxu0 0.0
      %1793 = vmatpush1.xpose.msra.mxu0 0.0
      %1794 = vmatprep.subr.mxu0 0.0
      %1795 = vmatpush1.xpose.msra.mxu0 0.0
      %1796 = vmatprep.subr.mxu0 0.0
      %1797 = vmatpush1.xpose.msra.mxu0 0.0
      %1798 = vmatprep.subr.mxu0 0.0
      %1799 = vmatpush1.xpose.msra.mxu0 0.0
      %1800 = vmatprep.subr.mxu0 0.0
      %1801 = vmatpush1.xpose.msra.mxu0 0.0
      %1802 = vmatprep.subr.mxu0 0.0
      %1803 = vmatpush1.xpose.msra.mxu0 0.0
      %1804 = vmatprep.subr.mxu0 0.0
      %1805 = vmatpush1.xpose.msra.mxu0 0.0
      %1806 = vmatprep.subr.mxu0 0.0
      %1807 = vmatpush1.xpose.msra.mxu0 0.0
      %1808 = vmatprep.subr.mxu0 0.0
      %1809 = vmatpush1.xpose.msra.mxu0 0.0
      %1810 = vmatprep.subr.mxu0 0.0
      %1811 = vmatpush1.xpose.msra.mxu0 0.0
      %1812 = vmatprep.subr.mxu0 0.0
      %1813 = vmatpush1.xpose.msra.mxu0 0.0
      %1814 = vmatprep.subr.mxu0 0.0
      %1815 = vmatpush1.xpose.msra.mxu0 0.0
      %1816 = vmatprep.subr.mxu0 0.0
      %1817 = vmatpush1.xpose.msra.mxu0 %v1786
      %1818 = vmatprep.subr.mxu0 0.0
      %1819 = vmatpush1.xpose.msra.mxu0 %v1784
      %1820 = vmatprep.subr.mxu0 0.0
      %1821 = vmatpush2.xpose.msra.mxu0 0.0
      %1822 = vmatprep.subr.mxu0 0.0
      %1823 = vmatpush2.xpose.msra.mxu0 0.0
      %1824 = vmatprep.subr.mxu0 0.0
      %1825 = vmatpush2.xpose.msra.mxu0 0.0
      %1826 = vmatprep.subr.mxu0 0.0
      %1827 = vmatpush2.xpose.msra.mxu0 0.0
      %1828 = vmatprep.subr.mxu0 0.0
      %1829 = vmatpush2.xpose.msra.mxu0 0.0
      %1830 = vmatprep.subr.mxu0 0.0
      %1831 = vmatpush2.xpose.msra.mxu0 0.0
      %1832 = vmatprep.subr.mxu0 0.0
      %1833 = vmatpush2.xpose.msra.mxu0 0.0
      %1834 = vmatprep.subr.mxu0 0.0
      %1835 = vmatpush2.xpose.msra.mxu0 0.0
      %1836 = vmatprep.subr.mxu0 0.0
      %1837 = vmatpush2.xpose.msra.mxu0 0.0
      %1838 = vmatprep.subr.mxu0 0.0
      %1839 = vmatpush2.xpose.msra.mxu0 0.0
      %1840 = vmatprep.subr.mxu0 0.0
      %1841 = vmatpush2.xpose.msra.mxu0 0.0
      %1842 = vmatprep.subr.mxu0 0.0
      %1843 = vmatpush2.xpose.msra.mxu0 0.0
      %1844 = vmatprep.subr.mxu0 0.0
      %1845 = vmatpush2.xpose.msra.mxu0 0.0
      %1846 = vmatprep.subr.mxu0 0.0
      %1847 = vmatpush2.xpose.msra.mxu0 0.0
      %1848 = vmatprep.subr.mxu0 0.0
      %1849 = vmatpush2.xpose.msra.mxu0 0.0
      %1850 = vmatprep.subr.mxu0 0.0
      %1851 = vmatpush2.xpose.msra.mxu0 0.0
      %1852 = vmatprep.mubr.f32.mxu0 0.0
      %1853 = vmatmul.mubr.f32.gmra.mxu0 %v1780
      %v1854 = vpop.f32.mrf.mxu0
      %v1855 = vadd.f32 0.0, %v1854
      %v1856 = vpop.f32.mrf.mxu0
      %1857 = vmatprep.mubr.f32.mxu0 0.0
      %1858 = vmatmul.mubr.f32.gmra.mxu0 %v1782
      %v1859 = vpop.f32.mrf.mxu0
      %v1860 = vadd.f32 0.0, %v1859
      %v1861 = vpop.f32.mrf.mxu0
      %1862 = vdwg.mxu0
      %v1863 = vmul.f32 %v1768, 0.25
      %v1864 = vmul.f32 %v1773, 0.25
      %v1865 = vmul.f32 %v1855, 0.25
      %v1866 = vmul.f32 %v1860, 0.25
      %v1867 = vsel %vm984, %v1863, -3.4028235e+38
      %v1868 = vsel %vm984, %v1864, -3.4028235e+38
      %v1869 = vsel %vm984, %v1865, -3.4028235e+38
      %v1870 = vsel %vm984, %v1866, -3.4028235e+38
      %v1871 = vsel %vm804, %v1867, -inf
      %1872 = vmax.xlane.f32.xlu0 %v1871
      %v1873 = vpop.xlane.xlu0 %1872
      %v1874 = vsel %vm804, %v1868, -inf
      %1875 = vmax.xlane.f32.xlu0 %v1874
      %v1876 = vpop.xlane.xlu0 %1875
      %v1877 = vsel %vm804, %v1869, -inf
      %1878 = vmax.xlane.f32.xlu0 %v1877
      %v1879 = vpop.xlane.xlu0 %1878
      %v1880 = vsel %vm804, %v1870, -inf
      %1881 = vmax.xlane.f32.xlu0 %v1880
      %v1882 = vpop.xlane.xlu0 %1881
      %v1883 = vsub.f32 %v1867, %v1873
      %v1884 = vsub.f32 %v1868, %v1876
      %v1885 = vsub.f32 %v1869, %v1879
      %v1886 = vsub.f32 %v1870, %v1882
      %v1887 = vmul.f32 %v1883, 1.442695
      %v1888 = vpow.pop %v1887
      %v1889 = vmul.f32 %v1884, 1.442695
      %v1890 = vpow.pop %v1889
      %v1891 = vmul.f32 %v1885, 1.442695
      %v1892 = vpow.pop %v1891
      %v1893 = vmul.f32 %v1886, 1.442695
      %v1894 = vpow.pop %v1893
      %v1895 = vsel %vm804, %v1888, 0.0
      %1896 = vadd.xlane.f32.xlu0 %v1895
      %v1897 = vpop.xlane.xlu0 %1896
      %v1898 = vsel %vm804, %v1890, 0.0
      %1899 = vadd.xlane.f32.xlu0 %v1898
      %v1900 = vpop.xlane.xlu0 %1899
      %v1901 = vsel %vm804, %v1892, 0.0
      %1902 = vadd.xlane.f32.xlu0 %v1901
      %v1903 = vpop.xlane.xlu0 %1902
      %v1904 = vsel %vm804, %v1894, 0.0
      %1905 = vadd.xlane.f32.xlu0 %v1904
      %v1906 = vpop.xlane.xlu0 %1905
      %v1907 = vrcp.pop %v1897
      %v1908 = vmul.f32 %v1888, %v1907
      %v1909 = vrcp.pop %v1900
      %v1910 = vmul.f32 %v1890, %v1909
      %v1911 = vrcp.pop %v1903
      %v1912 = vmul.f32 %v1892, %v1911
      %v1913 = vrcp.pop %v1906
      %v1914 = vmul.f32 %v1894, %v1913
      %v1915 = vsel %vm984, %v1908, 0.0
      %v1916 = vsel %vm984, %v1910, 0.0
      %v1917 = vsel %vm984, %v1912, 0.0
      %v1918 = vsel %vm984, %v1914, 0.0
      %1919 = vrot.lane.b32.xlu0 %v1675, 64
      %v1920 = vpop.permute.xlu0 %1919
      %1921 = vrot.lane.b32.xlu0 %v1680, 64
      %v1922 = vpop.permute.xlu0 %1921
      %v1926 = vsel %vm804, %v1915, 0
      %v1929 = vsel %vm804, %v1916, 0
      %1931 = vmatprep.subr.mxu0 0.0
      %1932 = vmatpush1.msra.mxu0 0.0
      %1933 = vmatprep.subr.mxu0 0.0
      %1934 = vmatpush1.msra.mxu0 0.0
      %1935 = vmatprep.subr.mxu0 0.0
      %1936 = vmatpush1.msra.mxu0 0.0
      %1937 = vmatprep.subr.mxu0 0.0
      %1938 = vmatpush1.msra.mxu0 0.0
      %1939 = vmatprep.subr.mxu0 0.0
      %1940 = vmatpush1.msra.mxu0 0.0
      %1941 = vmatprep.subr.mxu0 0.0
      %1942 = vmatpush1.msra.mxu0 0.0
      %1943 = vmatprep.subr.mxu0 0.0
      %1944 = vmatpush1.msra.mxu0 0.0
      %1945 = vmatprep.subr.mxu0 0.0
      %1946 = vmatpush1.msra.mxu0 0.0
      %1947 = vmatprep.subr.mxu0 0.0
      %1948 = vmatpush1.msra.mxu0 0.0
      %1949 = vmatprep.subr.mxu0 0.0
      %1950 = vmatpush1.msra.mxu0 0.0
      %1951 = vmatprep.subr.mxu0 0.0
      %1952 = vmatpush1.msra.mxu0 0.0
      %1953 = vmatprep.subr.mxu0 0.0
      %1954 = vmatpush1.msra.mxu0 0.0
      %1955 = vmatprep.subr.mxu0 0.0
      %1956 = vmatpush1.msra.mxu0 0.0
      %1957 = vmatprep.subr.mxu0 0.0
      %1958 = vmatpush1.msra.mxu0 0.0
      %1959 = vmatprep.subr.mxu0 0.0
      %1960 = vmatpush1.msra.mxu0 %v1922
      %1961 = vmatprep.subr.mxu0 0.0
      %1962 = vmatpush1.msra.mxu0 %v1920
      %1963 = vmatprep.subr.mxu0 0.0
      %1964 = vmatpush2.msra.mxu0 0.0
      %1965 = vmatprep.subr.mxu0 0.0
      %1966 = vmatpush2.msra.mxu0 0.0
      %1967 = vmatprep.subr.mxu0 0.0
      %1968 = vmatpush2.msra.mxu0 0.0
      %1969 = vmatprep.subr.mxu0 0.0
      %1970 = vmatpush2.msra.mxu0 0.0
      %1971 = vmatprep.subr.mxu0 0.0
      %1972 = vmatpush2.msra.mxu0 0.0
      %1973 = vmatprep.subr.mxu0 0.0
      %1974 = vmatpush2.msra.mxu0 0.0
      %1975 = vmatprep.subr.mxu0 0.0
      %1976 = vmatpush2.msra.mxu0 0.0
      %1977 = vmatprep.subr.mxu0 0.0
      %1978 = vmatpush2.msra.mxu0 0.0
      %1979 = vmatprep.subr.mxu0 0.0
      %1980 = vmatpush2.msra.mxu0 0.0
      %1981 = vmatprep.subr.mxu0 0.0
      %1982 = vmatpush2.msra.mxu0 0.0
      %1983 = vmatprep.subr.mxu0 0.0
      %1984 = vmatpush2.msra.mxu0 0.0
      %1985 = vmatprep.subr.mxu0 0.0
      %1986 = vmatpush2.msra.mxu0 0.0
      %1987 = vmatprep.subr.mxu0 0.0
      %1988 = vmatpush2.msra.mxu0 0.0
      %1989 = vmatprep.subr.mxu0 0.0
      %1990 = vmatpush2.msra.mxu0 0.0
      %1991 = vmatprep.subr.mxu0 0.0
      %1992 = vmatpush2.msra.mxu0 0.0
      %1993 = vmatprep.subr.mxu0 0.0
      %1994 = vmatpush2.msra.mxu0 0.0
      %1995 = vmatprep.mubr.f32.mxu0 0.0
      %1996 = vmatmul.mubr.f32.gmra.mxu0 %v1926
      %v1997 = vpop.f32.mrf.mxu0
      %v1998 = vadd.f32 0.0, %v1997
      %v1999 = vpop.f32.mrf.mxu0
      %2000 = vmatprep.mubr.f32.mxu0 0.0
      %2001 = vmatmul.mubr.f32.gmra.mxu0 %v1929
      %v2002 = vpop.f32.mrf.mxu0
      %v2003 = vadd.f32 0.0, %v2002
      %v2004 = vpop.f32.mrf.mxu0
      %2005 = vdwg.mxu0
      %2006 = vrot.lane.b32.xlu0 %v1686, 64
      %v2007 = vpop.permute.xlu0 %2006
      %2008 = vrot.lane.b32.xlu0 %v1688, 64
      %v2009 = vpop.permute.xlu0 %2008
      %v2013 = vsel %vm804, %v1917, 0
      %v2016 = vsel %vm804, %v1918, 0
      %2018 = vmatprep.subr.mxu0 0.0
      %2019 = vmatpush1.msra.mxu0 0.0
      %2020 = vmatprep.subr.mxu0 0.0
      %2021 = vmatpush1.msra.mxu0 0.0
      %2022 = vmatprep.subr.mxu0 0.0
      %2023 = vmatpush1.msra.mxu0 0.0
      %2024 = vmatprep.subr.mxu0 0.0
      %2025 = vmatpush1.msra.mxu0 0.0
      %2026 = vmatprep.subr.mxu0 0.0
      %2027 = vmatpush1.msra.mxu0 0.0
      %2028 = vmatprep.subr.mxu0 0.0
      %2029 = vmatpush1.msra.mxu0 0.0
      %2030 = vmatprep.subr.mxu0 0.0
      %2031 = vmatpush1.msra.mxu0 0.0
      %2032 = vmatprep.subr.mxu0 0.0
      %2033 = vmatpush1.msra.mxu0 0.0
      %2034 = vmatprep.subr.mxu0 0.0
      %2035 = vmatpush1.msra.mxu0 0.0
      %2036 = vmatprep.subr.mxu0 0.0
      %2037 = vmatpush1.msra.mxu0 0.0
      %2038 = vmatprep.subr.mxu0 0.0
      %2039 = vmatpush1.msra.mxu0 0.0
      %2040 = vmatprep.subr.mxu0 0.0
      %2041 = vmatpush1.msra.mxu0 0.0
      %2042 = vmatprep.subr.mxu0 0.0
      %2043 = vmatpush1.msra.mxu0 0.0
      %2044 = vmatprep.subr.mxu0 0.0
      %2045 = vmatpush1.msra.mxu0 0.0
      %2046 = vmatprep.subr.mxu0 0.0
      %2047 = vmatpush1.msra.mxu0 %v2009
      %2048 = vmatprep.subr.mxu0 0.0
      %2049 = vmatpush1.msra.mxu0 %v2007
      %2050 = vmatprep.subr.mxu0 0.0
      %2051 = vmatpush2.msra.mxu0 0.0
      %2052 = vmatprep.subr.mxu0 0.0
      %2053 = vmatpush2.msra.mxu0 0.0
      %2054 = vmatprep.subr.mxu0 0.0
      %2055 = vmatpush2.msra.mxu0 0.0
      %2056 = vmatprep.subr.mxu0 0.0
      %2057 = vmatpush2.msra.mxu0 0.0
      %2058 = vmatprep.subr.mxu0 0.0
      %2059 = vmatpush2.msra.mxu0 0.0
      %2060 = vmatprep.subr.mxu0 0.0
      %2061 = vmatpush2.msra.mxu0 0.0
      %2062 = vmatprep.subr.mxu0 0.0
      %2063 = vmatpush2.msra.mxu0 0.0
      %2064 = vmatprep.subr.mxu0 0.0
      %2065 = vmatpush2.msra.mxu0 0.0
      %2066 = vmatprep.subr.mxu0 0.0
      %2067 = vmatpush2.msra.mxu0 0.0
      %2068 = vmatprep.subr.mxu0 0.0
      %2069 = vmatpush2.msra.mxu0 0.0
      %2070 = vmatprep.subr.mxu0 0.0
      %2071 = vmatpush2.msra.mxu0 0.0
      %2072 = vmatprep.subr.mxu0 0.0
      %2073 = vmatpush2.msra.mxu0 0.0
      %2074 = vmatprep.subr.mxu0 0.0
      %2075 = vmatpush2.msra.mxu0 0.0
      %2076 = vmatprep.subr.mxu0 0.0
      %2077 = vmatpush2.msra.mxu0 0.0
      %2078 = vmatprep.subr.mxu0 0.0
      %2079 = vmatpush2.msra.mxu0 0.0
      %2080 = vmatprep.subr.mxu0 0.0
      %2081 = vmatpush2.msra.mxu0 0.0
      %2082 = vmatprep.mubr.f32.mxu0 0.0
      %2083 = vmatmul.mubr.f32.gmra.mxu0 %v2013
      %v2084 = vpop.f32.mrf.mxu0
      %v2085 = vadd.f32 0.0, %v2084
      %v2086 = vpop.f32.mrf.mxu0
      %2087 = vmatprep.mubr.f32.mxu0 0.0
      %2088 = vmatmul.mubr.f32.gmra.mxu0 %v2016
      %v2089 = vpop.f32.mrf.mxu0
      %v2090 = vadd.f32 0.0, %v2089
      %v2091 = vpop.f32.mrf.mxu0
      %2092 = vdwg.mxu0
      %2095 = vrot.lane.b32.xlu0 %v2085, 16
      %v2096 = vpop.permute.xlu0 %2095
      %2097 = vrot.lane.b32.xlu0 %v2090, 16
      %v2098 = vpop.permute.xlu0 %2097
      %v2101 = vsel %vm804, %v1998, %v2096
      %v2102 = vsel %vm804, %v2003, %v2098
      %s2103 = scalar_lea.vmem %s7, 32
      %v2104 = vld [vmem:[%s2103] sm:$0xff]
      %v2105 = vld [vmem:[%s2103 + $0x8] sm:$0xff]
      %v2106 = vld [vmem:[%s2103 + $0x10] sm:$0xff]
      %v2107 = vld [vmem:[%s2103 + $0x18] sm:$0xff]
      %v2109 = vsel %vm662, %v2101, 0
      %v2112 = vsel %vm662, %v2102, 0
      %2114 = vmatprep.subr.mxu0 0.0
      %2115 = vmatpush1.msra.mxu0 0.0
      %2116 = vmatprep.subr.mxu0 0.0
      %2117 = vmatpush1.msra.mxu0 0.0
      %2118 = vmatprep.subr.mxu0 0.0
      %2119 = vmatpush1.msra.mxu0 0.0
      %2120 = vmatprep.subr.mxu0 0.0
      %2121 = vmatpush1.msra.mxu0 0.0
      %2122 = vmatprep.subr.mxu0 0.0
      %2123 = vmatpush1.msra.mxu0 0.0
      %2124 = vmatprep.subr.mxu0 0.0
      %2125 = vmatpush1.msra.mxu0 0.0
      %2126 = vmatprep.subr.mxu0 0.0
      %2127 = vmatpush1.msra.mxu0 0.0
      %2128 = vmatprep.subr.mxu0 0.0
      %2129 = vmatpush1.msra.mxu0 0.0
      %2130 = vmatprep.subr.mxu0 0.0
      %2131 = vmatpush1.msra.mxu0 0.0
      %2132 = vmatprep.subr.mxu0 0.0
      %2133 = vmatpush1.msra.mxu0 0.0
      %2134 = vmatprep.subr.mxu0 0.0
      %2135 = vmatpush1.msra.mxu0 0.0
      %2136 = vmatprep.subr.mxu0 0.0
      %2137 = vmatpush1.msra.mxu0 0.0
      %2138 = vmatprep.subr.mxu0 0.0
      %2139 = vmatpush1.msra.mxu0 %v2107
      %2140 = vmatprep.subr.mxu0 0.0
      %2141 = vmatpush1.msra.mxu0 %v2106
      %2142 = vmatprep.subr.mxu0 0.0
      %2143 = vmatpush1.msra.mxu0 %v2105
      %2144 = vmatprep.subr.mxu0 0.0
      %2145 = vmatpush1.msra.mxu0 %v2104
      %2146 = vmatprep.subr.mxu0 0.0
      %2147 = vmatpush2.msra.mxu0 0.0
      %2148 = vmatprep.subr.mxu0 0.0
      %2149 = vmatpush2.msra.mxu0 0.0
      %2150 = vmatprep.subr.mxu0 0.0
      %2151 = vmatpush2.msra.mxu0 0.0
      %2152 = vmatprep.subr.mxu0 0.0
      %2153 = vmatpush2.msra.mxu0 0.0
      %2154 = vmatprep.subr.mxu0 0.0
      %2155 = vmatpush2.msra.mxu0 0.0
      %2156 = vmatprep.subr.mxu0 0.0
      %2157 = vmatpush2.msra.mxu0 0.0
      %2158 = vmatprep.subr.mxu0 0.0
      %2159 = vmatpush2.msra.mxu0 0.0
      %2160 = vmatprep.subr.mxu0 0.0
      %2161 = vmatpush2.msra.mxu0 0.0
      %2162 = vmatprep.subr.mxu0 0.0
      %2163 = vmatpush2.msra.mxu0 0.0
      %2164 = vmatprep.subr.mxu0 0.0
      %2165 = vmatpush2.msra.mxu0 0.0
      %2166 = vmatprep.subr.mxu0 0.0
      %2167 = vmatpush2.msra.mxu0 0.0
      %2168 = vmatprep.subr.mxu0 0.0
      %2169 = vmatpush2.msra.mxu0 0.0
      %2170 = vmatprep.subr.mxu0 0.0
      %2171 = vmatpush2.msra.mxu0 0.0
      %2172 = vmatprep.subr.mxu0 0.0
      %2173 = vmatpush2.msra.mxu0 0.0
      %2174 = vmatprep.subr.mxu0 0.0
      %2175 = vmatpush2.msra.mxu0 0.0
      %2176 = vmatprep.subr.mxu0 0.0
      %2177 = vmatpush2.msra.mxu0 0.0
      %2178 = vmatprep.mubr.f32.mxu0 0.0
      %2179 = vmatmul.mubr.f32.gmra.mxu0 %v2109
      %v2180 = vpop.f32.mrf.mxu0
      %v2181 = vadd.f32 0.0, %v2180
      %v2182 = vpop.f32.mrf.mxu0
      %2183 = vmatprep.mubr.f32.mxu0 0.0
      %2184 = vmatmul.mubr.f32.gmra.mxu0 %v2112
      %v2185 = vpop.f32.mrf.mxu0
      %v2186 = vadd.f32 0.0, %v2185
      %v2187 = vpop.f32.mrf.mxu0
      %2188 = vdwg.mxu0
      %v2189 = vadd.f32 %v1547, %v2181
      %v2190 = vadd.f32 %v1548, %v2186
      %s2191 = scalar_lea.vmem %s8, 1
      %v2192 = vld [vmem:[%s2191] sm:$0x1]
      %v2194 = vlaneseq
      %v2195 = vshrl.u32 %v2194, 7
      %v2196 = vsub.s32 0, %v2195
      %v2197 = vrot.slane %v2192, %v2196
      %v2199 = vadd.f32 %v2189, %v2197
      %v2200 = vadd.f32 %v2190, %v2197
      %v2201 = vsel %vm662, %v2199, 0.0
      %2202 = vadd.xlane.f32.xlu0 %v2201
      %v2203 = vpop.xlane.xlu0 %2202
      %v2204 = vsel %vm662, %v2200, 0.0
      %2205 = vadd.xlane.f32.xlu0 %v2204
      %v2206 = vpop.xlane.xlu0 %2205
      %v2207 = vmul.f32 %v2203, %v669
      %v2208 = vmul.f32 %v2206, %v669
      %v2209 = vsub.f32 %v2199, %v2207
      %v2210 = vsub.f32 %v2200, %v2208
      %v2211 = vmul.f32 %v2209, %v2209
      %v2212 = vmul.f32 %v2210, %v2210
      %v2213 = vsel %vm662, %v2211, 0.0
      %2214 = vadd.xlane.f32.xlu0 %v2213
      %v2215 = vpop.xlane.xlu0 %2214
      %v2216 = vsel %vm662, %v2212, 0.0
      %2217 = vadd.xlane.f32.xlu0 %v2216
      %v2218 = vpop.xlane.xlu0 %2217
      %v2219 = vmul.f32 %v2215, %v669
      %v2220 = vmul.f32 %v2218, %v669
      %v2221 = vadd.f32 %v2219, 1e-12
      %v2222 = vadd.f32 %v2220, 1e-12
      %v2223 = vrsqrt.pop %v2221
      %v2224 = vrsqrt.pop %v2222
      %v2225 = vmul.f32 %v2209, %v2223
      %v2226 = vmul.f32 %v2210, %v2224
      %v2227 = vlaneseq
      %v2228 = vshrl.u32 %v2227, 7
      %v2229 = vsub.s32 2, %v2228
      %v2230 = vrot.slane %v1550, %v2229
      %v2231 = vmul.f32 %v2225, %v2230
      %v2232 = vmul.f32 %v2226, %v2230
      %v2233 = vlaneseq
      %v2234 = vshrl.u32 %v2233, 7
      %v2235 = vsub.s32 3, %v2234
      %v2236 = vrot.slane %v1550, %v2235
      %v2237 = vadd.f32 %v2231, %v2236
      %v2238 = vadd.f32 %v2232, %v2236
      %s2239 = scalar_lea.vmem %s10, 32
      %v2240 = vld [vmem:[%s2239] sm:$0xff]
      %v2241 = vld [vmem:[%s2239 + $0x8] sm:$0xff]
      %v2242 = vld [vmem:[%s2239 + $0x10] sm:$0xff]
      %v2243 = vld [vmem:[%s2239 + $0x18] sm:$0xff]
      %s2244 = scalar_lea.vmem %s11, 1
      %v2245 = vld [vmem:[%s2244] sm:$0x1]
      %v2247 = vlaneseq
      %v2248 = vshrl.u32 %v2247, 7
      %v2249 = vsub.s32 0, %v2248
      %v2250 = vrot.slane %v2245, %v2249
      %v2253 = vsel %vm662, %v2237, 0
      %v2256 = vsel %vm662, %v2238, 0
      %2258 = vmatprep.subr.mxu0 0.0
      %2259 = vmatpush1.msra.mxu0 0.0
      %2260 = vmatprep.subr.mxu0 0.0
      %2261 = vmatpush1.msra.mxu0 0.0
      %2262 = vmatprep.subr.mxu0 0.0
      %2263 = vmatpush1.msra.mxu0 0.0
      %2264 = vmatprep.subr.mxu0 0.0
      %2265 = vmatpush1.msra.mxu0 0.0
      %2266 = vmatprep.subr.mxu0 0.0
      %2267 = vmatpush1.msra.mxu0 0.0
      %2268 = vmatprep.subr.mxu0 0.0
      %2269 = vmatpush1.msra.mxu0 0.0
      %2270 = vmatprep.subr.mxu0 0.0
      %2271 = vmatpush1.msra.mxu0 0.0
      %2272 = vmatprep.subr.mxu0 0.0
      %2273 = vmatpush1.msra.mxu0 0.0
      %2274 = vmatprep.subr.mxu0 0.0
      %2275 = vmatpush1.msra.mxu0 0.0
      %2276 = vmatprep.subr.mxu0 0.0
      %2277 = vmatpush1.msra.mxu0 0.0
      %2278 = vmatprep.subr.mxu0 0.0
      %2279 = vmatpush1.msra.mxu0 0.0
      %2280 = vmatprep.subr.mxu0 0.0
      %2281 = vmatpush1.msra.mxu0 0.0
      %2282 = vmatprep.subr.mxu0 0.0
      %2283 = vmatpush1.msra.mxu0 %v2243
      %2284 = vmatprep.subr.mxu0 0.0
      %2285 = vmatpush1.msra.mxu0 %v2242
      %2286 = vmatprep.subr.mxu0 0.0
      %2287 = vmatpush1.msra.mxu0 %v2241
      %2288 = vmatprep.subr.mxu0 0.0
      %2289 = vmatpush1.msra.mxu0 %v2240
      %2290 = vmatprep.subr.mxu0 0.0
      %2291 = vmatpush2.msra.mxu0 0.0
      %2292 = vmatprep.subr.mxu0 0.0
      %2293 = vmatpush2.msra.mxu0 0.0
      %2294 = vmatprep.subr.mxu0 0.0
      %2295 = vmatpush2.msra.mxu0 0.0
      %2296 = vmatprep.subr.mxu0 0.0
      %2297 = vmatpush2.msra.mxu0 0.0
      %2298 = vmatprep.subr.mxu0 0.0
      %2299 = vmatpush2.msra.mxu0 0.0
      %2300 = vmatprep.subr.mxu0 0.0
      %2301 = vmatpush2.msra.mxu0 0.0
      %2302 = vmatprep.subr.mxu0 0.0
      %2303 = vmatpush2.msra.mxu0 0.0
      %2304 = vmatprep.subr.mxu0 0.0
      %2305 = vmatpush2.msra.mxu0 0.0
      %2306 = vmatprep.subr.mxu0 0.0
      %2307 = vmatpush2.msra.mxu0 0.0
      %2308 = vmatprep.subr.mxu0 0.0
      %2309 = vmatpush2.msra.mxu0 0.0
      %2310 = vmatprep.subr.mxu0 0.0
      %2311 = vmatpush2.msra.mxu0 0.0
      %2312 = vmatprep.subr.mxu0 0.0
      %2313 = vmatpush2.msra.mxu0 0.0
      %2314 = vmatprep.subr.mxu0 0.0
      %2315 = vmatpush2.msra.mxu0 0.0
      %2316 = vmatprep.subr.mxu0 0.0
      %2317 = vmatpush2.msra.mxu0 0.0
      %2318 = vmatprep.subr.mxu0 0.0
      %2319 = vmatpush2.msra.mxu0 0.0
      %2320 = vmatprep.subr.mxu0 0.0
      %2321 = vmatpush2.msra.mxu0 0.0
      %2322 = vmatprep.mubr.f32.mxu0 0.0
      %2323 = vmatmul.mubr.f32.gmra.mxu0 %v2253
      %v2324 = vpop.f32.mrf.mxu0
      %v2325 = vadd.f32 %v2250, %v2324
      %v2326 = vpop.f32.mrf.mxu0
      %2327 = vmatprep.mubr.f32.mxu0 0.0
      %2328 = vmatmul.mubr.f32.gmra.mxu0 %v2256
      %v2329 = vpop.f32.mrf.mxu0
      %v2330 = vadd.f32 %v2250, %v2329
      %v2331 = vpop.f32.mrf.mxu0
      %2332 = vdwg.mxu0
      %v2333 = vmax.f32 %v2325, 0.0
      %v2334 = vmax.f32 %v2330, 0.0
      %s2335 = scalar_lea.vmem %s12, 64
      %v2336 = vld [vmem:[%s2335] sm:$0xff]
      %v2337 = vld [vmem:[%s2335 + $0x8] sm:$0xff]
      %v2338 = vld [vmem:[%s2335 + $0x10] sm:$0xff]
      %v2339 = vld [vmem:[%s2335 + $0x18] sm:$0xff]
      %v2340 = vld [vmem:[%s2335 + $0x20] sm:$0xff]
      %v2341 = vld [vmem:[%s2335 + $0x28] sm:$0xff]
      %v2342 = vld [vmem:[%s2335 + $0x30] sm:$0xff]
      %v2343 = vld [vmem:[%s2335 + $0x38] sm:$0xff]
      %v2345 = vsel %vm499, %v2333, 0
      %v2348 = vsel %vm499, %v2334, 0
      %2350 = vmatprep.subr.mxu0 0.0
      %2351 = vmatpush1.msra.mxu0 0.0
      %2352 = vmatprep.subr.mxu0 0.0
      %2353 = vmatpush1.msra.mxu0 0.0
      %2354 = vmatprep.subr.mxu0 0.0
      %2355 = vmatpush1.msra.mxu0 0.0
      %2356 = vmatprep.subr.mxu0 0.0
      %2357 = vmatpush1.msra.mxu0 0.0
      %2358 = vmatprep.subr.mxu0 0.0
      %2359 = vmatpush1.msra.mxu0 0.0
      %2360 = vmatprep.subr.mxu0 0.0
      %2361 = vmatpush1.msra.mxu0 0.0
      %2362 = vmatprep.subr.mxu0 0.0
      %2363 = vmatpush1.msra.mxu0 0.0
      %2364 = vmatprep.subr.mxu0 0.0
      %2365 = vmatpush1.msra.mxu0 0.0
      %2366 = vmatprep.subr.mxu0 0.0
      %2367 = vmatpush1.msra.mxu0 %v2343
      %2368 = vmatprep.subr.mxu0 0.0
      %2369 = vmatpush1.msra.mxu0 %v2342
      %2370 = vmatprep.subr.mxu0 0.0
      %2371 = vmatpush1.msra.mxu0 %v2341
      %2372 = vmatprep.subr.mxu0 0.0
      %2373 = vmatpush1.msra.mxu0 %v2340
      %2374 = vmatprep.subr.mxu0 0.0
      %2375 = vmatpush1.msra.mxu0 %v2339
      %2376 = vmatprep.subr.mxu0 0.0
      %2377 = vmatpush1.msra.mxu0 %v2338
      %2378 = vmatprep.subr.mxu0 0.0
      %2379 = vmatpush1.msra.mxu0 %v2337
      %2380 = vmatprep.subr.mxu0 0.0
      %2381 = vmatpush1.msra.mxu0 %v2336
      %2382 = vmatprep.subr.mxu0 0.0
      %2383 = vmatpush2.msra.mxu0 0.0
      %2384 = vmatprep.subr.mxu0 0.0
      %2385 = vmatpush2.msra.mxu0 0.0
      %2386 = vmatprep.subr.mxu0 0.0
      %2387 = vmatpush2.msra.mxu0 0.0
      %2388 = vmatprep.subr.mxu0 0.0
      %2389 = vmatpush2.msra.mxu0 0.0
      %2390 = vmatprep.subr.mxu0 0.0
      %2391 = vmatpush2.msra.mxu0 0.0
      %2392 = vmatprep.subr.mxu0 0.0
      %2393 = vmatpush2.msra.mxu0 0.0
      %2394 = vmatprep.subr.mxu0 0.0
      %2395 = vmatpush2.msra.mxu0 0.0
      %2396 = vmatprep.subr.mxu0 0.0
      %2397 = vmatpush2.msra.mxu0 0.0
      %2398 = vmatprep.subr.mxu0 0.0
      %2399 = vmatpush2.msra.mxu0 0.0
      %2400 = vmatprep.subr.mxu0 0.0
      %2401 = vmatpush2.msra.mxu0 0.0
      %2402 = vmatprep.subr.mxu0 0.0
      %2403 = vmatpush2.msra.mxu0 0.0
      %2404 = vmatprep.subr.mxu0 0.0
      %2405 = vmatpush2.msra.mxu0 0.0
      %2406 = vmatprep.subr.mxu0 0.0
      %2407 = vmatpush2.msra.mxu0 0.0
      %2408 = vmatprep.subr.mxu0 0.0
      %2409 = vmatpush2.msra.mxu0 0.0
      %2410 = vmatprep.subr.mxu0 0.0
      %2411 = vmatpush2.msra.mxu0 0.0
      %2412 = vmatprep.subr.mxu0 0.0
      %2413 = vmatpush2.msra.mxu0 0.0
      %2414 = vmatprep.mubr.f32.mxu0 0.0
      %2415 = vmatmul.mubr.f32.gmra.mxu0 %v2345
      %v2416 = vpop.f32.mrf.mxu0
      %v2417 = vadd.f32 0.0, %v2416
      %v2418 = vpop.f32.mrf.mxu0
      %2419 = vmatprep.mubr.f32.mxu0 0.0
      %2420 = vmatmul.mubr.f32.gmra.mxu0 %v2348
      %v2421 = vpop.f32.mrf.mxu0
      %v2422 = vadd.f32 0.0, %v2421
      %v2423 = vpop.f32.mrf.mxu0
      %2424 = vdwg.mxu0
      %v2425 = vadd.f32 %v2199, %v2417
      %v2426 = vadd.f32 %v2200, %v2422
      %s2427 = scalar_lea.vmem %s13, 1
      %v2428 = vld [vmem:[%s2427] sm:$0x1]
      %v2430 = vlaneseq
      %v2431 = vshrl.u32 %v2430, 7
      %v2432 = vsub.s32 0, %v2431
      %v2433 = vrot.slane %v2428, %v2432
      %v2435 = vadd.f32 %v2425, %v2433
      %v2436 = vadd.f32 %v2426, %v2433
      %2437 = vst.msk [vmem:[%s481] sm:$0xff] %vm662, %v2435
      %2438 = vst.msk [vmem:[%s481 + $0x8] sm:$0xff] %vm662, %v2436
      %p2439 = scmp.lt.s32.totalorder %s25, 1
      %s2440 = scalar_select %p2439, %s25, 1
      %s2441 = smul.addr %s2440, 2
      %s2442 = smul.addr %s2441, 8
      %s2443 = scalar_lea.vmem %s14, %s2442
      // Predicated region
      $region77: #{prosody_predictor_forward.1} parent=75 // pred_check
        %p2444 = pneg %p347
      $region78: #{prosody_predictor_forward.1} parent=75 // pred_check_branch
        %2446 = sbr.rel (%p2444) target = $region80
      $region79: #{prosody_predictor_forward.1} parent=75 // pred_region
        _
      $region80: #{prosody_predictor_forward.1} parent=75 // pred_fallthru
        _
    $region76: #{prosody_predictor_forward.1} parent=5 // pred_fallthru
      _
    %p2447 = scmp.le.s32.totalorder 2, %s20
    // Predicated region
    $region81: #{prosody_predictor_forward.1} parent=5 // pred_check
      %p2448 = pneg %p2447
    $region82: #{prosody_predictor_forward.1} parent=5 // pred_check_branch
      %2450 = sbr.rel (%p2448) target = $region84
    $region83: #{prosody_predictor_forward.1} parent=5 // pred_region
      %s2451 = ssub.s32 %s20, 2
      // Predicated region
      $region85: #{prosody_predictor_forward.1} parent=83 // pred_check
        %p2452 = pneg %p353
      $region86: #{prosody_predictor_forward.1} parent=83 // pred_check_branch
        %2454 = sbr.rel (%p2452) target = $region88
      $region87: #{prosody_predictor_forward.1} parent=83 // pred_region
        %p2455 = scmp.lt.s32.totalorder %s26, 1
        %s2456 = scalar_select %p2455, %s26, 1
        %s2457 = smul.addr %s2456, 2
        %s2458 = smul.addr %s2457, 8
        %s2459 = scalar_lea.vmem %s14, %s2458
      $region88: #{prosody_predictor_forward.1} parent=83 // pred_fallthru
        _
    $region84: #{prosody_predictor_forward.1} parent=5 // pred_fallthru
      _
  $region6: #{prosody_predictor_forward.1} parent=0 // loop_footer
    %s24 = sadd.s32 1, %s20
  $region7: #{prosody_predictor_forward.1} parent=0 // loop_footer_branch
    %19 = sbr.rel target = $region3
  $region8: #{prosody_predictor_forward.1} parent=0 // loop_exit
    _

</llo_original>
